<compile_context>
chip_gen: v7x
topology: tpu7x:2x2x1
jax: 0.10.0
libtpu: 0.0.40
codegen_flags: <defaults>
</compile_context>

<pallas_src>
import functools

import jax
import jax.numpy as jnp
from jax import lax
from jax.experimental import pallas as pl
from jax.experimental.pallas import tpu as pltpu

LEAKY_SLOPE = 0.01               # nn.LeakyReLU() default
EPS = 1e-5                       # InstanceNorm2d eps
LANE = 128                       # channel padding -> lane-dense loads/stores


def _round_up(v, m):
    return (v + m - 1) // m * m


def _leaky(v):
    return jnp.where(v >= 0, v, LEAKY_SLOPE * v)


def _tpu_vmem_bytes():
    get_info = getattr(pltpu, "get_tpu_info", None)
    if get_info is not None:
        try:
            info = get_info()
            for attr in ("vmem_capacity_bytes", "vmem_bytes", "vmem_size_bytes"):
                v = getattr(info, attr, None)
                if v:
                    return int(v)
        except Exception:
            pass
    return 64 * 1024 * 1024      # conservative default (v7x per-core VMEM)


def _vmem_budget():
    """(vmem_limit_bytes, target GEMM rows per grid step) per TPU generation."""
    cap = _tpu_vmem_bytes()
    if cap >= 96 * (1 << 20):                                   # v5e / v6e
        return min(cap - 24 * (1 << 20), 100 * (1 << 20)), 2048
    return min(cap - 20 * (1 << 20), 44 * (1 << 20)), 1024      # v7x


def _row_tile(Ho, Wo, C4, Cp, Cinp, keep_channels, vmem_limit, target_m,
              max_rows=None):
    """Largest divisor TR of Ho whose resident set fits the VMEM budget and
    whose GEMM M = TR*Wo stays near target_m."""
    # double-buffered bf16 weights + params/stats slack
    w_bytes = 2 * (2 * (2 * C4) * Cp * 2) + 2 * (3 * (3 * Cp) * Cp * 2)
    if not keep_channels:
        w_bytes += 2 * Cinp * Cp * 2
    fixed = w_bytes + 4 * (1 << 20)
    # per-TR-row bytes: worst of stage 1 / stage 2 (double-buffered in/out
    # blocks, band scratch, f32 accumulators, K-merged LHS temporaries)
    per_row_s1 = (2 * Wo * C4 * 2 + (Wo + 1) * C4 * 2
                  + 2 * 2 * Wo * Cp * 2 + 2 * Wo * Cp * 4 + Wo * 2 * C4 * 2)
    per_row_s2 = (3 * 2 * Wo * Cp * 2 + (Wo + 2) * Cp * 2
                  + 2 * Wo * Cp * 2 + Wo * Cp * 4 + Wo * 3 * Cp * 2)
    per_row = max(per_row_s1, per_row_s2)
    cap_rows = max(1, (vmem_limit - fixed) // per_row)
    tr = max(1, min(Ho, int(min(cap_rows, max(1, target_m // max(Wo, 1))))))
    if max_rows is not None:
        tr = max(1, min(tr, max_rows))
    while Ho % tr:
        tr -= 1
    # TODO(synk): support a ragged last row tile instead of requiring TR | Ho.
    return tr


# ---------------------------------------------------------------------------
# Pallas kernels (grid = (N, n_row_tiles); t axis is the IN-stat accumulator)
# ---------------------------------------------------------------------------
def _stage1_kernel(*refs, TR, Wo, Cinp, keep_channels):
    """conv3x3/stride2 as 2 K-merged GEMMs on the space-to-depth band + bias,
    bypass branch, and per-channel IN statistics."""
    if keep_channels:
        (x_ref, top_ref, w1_ref, prm_ref,
         y1_ref, byp_ref, st1_ref, band) = refs
        wb_ref = stb_ref = None
    else:
        (x_ref, top_ref, w1_ref, wb_ref, prm_ref,
         y1_ref, byp_ref, st1_ref, stb_ref, band) = refs

    t = pl.program_id(1)
    C4 = 4 * Cinp
    Cp = y1_ref.shape[-1]
    M = TR * Wo

    # assemble the (TR+1, Wo+1, C4) bf16 band: top row / left col zero pad,
    # interior = this tile's s2d rows, row 0 = halo row from the previous tile.
    band[:, pl.ds(0, 1), :] = jnp.zeros((TR + 1, 1, C4), jnp.bfloat16)
    band[pl.ds(1, TR), pl.ds(1, Wo), :] = x_ref[...]

    @pl.when(t > 0)
    def _():
        band[pl.ds(0, 1), pl.ds(1, Wo), :] = top_ref[...]

    @pl.when(t == 0)
    def _():
        band[pl.ds(0, 1), pl.ds(1, Wo), :] = jnp.zeros((1, Wo, C4), jnp.bfloat16)

    # main branch: 3x3 stride-2 conv == 2x2 stride-1 conv on the s2d band ==
    # 2 GEMMs with the two column taps merged along K (K = 2*C4, bf16 x bf16
    # -> f32 accumulation).
    acc = jnp.zeros((M, Cp), jnp.float32)
    for dr in range(2):
        lhs = jnp.concatenate(
            [band[pl.ds(dr, TR), pl.ds(dc, Wo), :] for dc in range(2)],
            axis=-1).reshape(M, 2 * C4)
        acc = acc + jnp.dot(lhs, w1_ref[dr], preferred_element_type=jnp.float32)
    y1 = acc + prm_ref[0:1, :]                                    # conv-1 bias
    y1_ref[...] = y1.reshape(TR, Wo, Cp).astype(jnp.bfloat16)

    # bypass: AvgPool2d(2,2) == mean of the 4 s2d channel groups (f32 math).
    z = x_ref[...].reshape(M, C4)
    avg = 0.25 * (z[:, 0:Cinp].astype(jnp.float32)
                  + z[:, Cinp:2 * Cinp].astype(jnp.float32)
                  + z[:, 2 * Cinp:3 * Cinp].astype(jnp.float32)
                  + z[:, 3 * Cinp:4 * Cinp].astype(jnp.float32))
    if keep_channels:
        byp = avg
    else:
        byp = jnp.dot(avg.astype(jnp.bfloat16), wb_ref[...],
                      preferred_element_type=jnp.float32) + prm_ref[1:2, :]
    byp_ref[...] = byp.reshape(TR, Wo, Cp).astype(jnp.bfloat16)

    # per-channel sum / sum-of-squares accumulated across the row-tile axis
    # (f32, taken from the f32 accumulators before the bf16 store).
    @pl.when(t == 0)
    def _():
        st1_ref[...] = jnp.zeros_like(st1_ref)
        if not keep_channels:
            stb_ref[...] = jnp.zeros_like(stb_ref)

    st1_ref[0:1, :] += jnp.sum(y1, axis=0, keepdims=True)
    st1_ref[1:2, :] += jnp.sum(y1 * y1, axis=0, keepdims=True)
    if not keep_channels:
        stb_ref[0:1, :] += jnp.sum(byp, axis=0, keepdims=True)
        stb_ref[1:2, :] += jnp.sum(byp * byp, axis=0, keepdims=True)


def _stage2_kernel(y1_ref, top_ref, bot_ref, prm_ref, w2_ref,
                   y2_ref, st2_ref, band, *, TR, Wo):
    """IN1 + LeakyReLU into a zero-ring bf16 band, conv3x3/stride1 as 3
    kw-merged GEMMs (K = 3*Cp) + bias, IN2 statistics."""
    t = pl.program_id(1)
    n_t = pl.num_programs(1)
    Cp = y2_ref.shape[-1]
    M = TR * Wo

    scale1 = prm_ref[0:1, :]
    shift1 = prm_ref[1:2, :]
    b2 = prm_ref[2:3, :]

    def act(v):     # bf16 -> f32 affine + LeakyReLU -> bf16 (one hoisted cast)
        return _leaky(v.astype(jnp.float32) * scale1 + shift1).astype(jnp.bfloat16)

    # assemble the (TR+2, Wo+2, Cp) activation band; conv-2's spatial zero
    # padding ring is written directly (border-only zeroing, no iota mask).
    zcol = jnp.zeros((TR + 2, 1, Cp), jnp.bfloat16)
    zrow = jnp.zeros((1, Wo, Cp), jnp.bfloat16)
    band[:, pl.ds(0, 1), :] = zcol
    band[:, pl.ds(Wo + 1, 1), :] = zcol
    band[pl.ds(1, TR), pl.ds(1, Wo), :] = act(y1_ref[...])

    @pl.when(t > 0)
    def _():
        band[pl.ds(0, 1), pl.ds(1, Wo), :] = act(top_ref[...])

    @pl.when(t == 0)
    def _():
        band[pl.ds(0, 1), pl.ds(1, Wo), :] = zrow

    @pl.when(t < n_t - 1)
    def _():
        band[pl.ds(TR + 1, 1), pl.ds(1, Wo), :] = act(bot_ref[...])

    @pl.when(t == n_t - 1)
    def _():
        band[pl.ds(TR + 1, 1), pl.ds(1, Wo), :] = zrow

    # conv 3x3 stride 1: one GEMM per kh with the 3 kw taps merged along K.
    acc = jnp.zeros((M, Cp), jnp.float32)
    for kh in range(3):
        lhs = jnp.concatenate(
            [band[pl.ds(kh, TR), pl.ds(kw, Wo), :] for kw in range(3)],
            axis=-1).reshape(M, 3 * Cp)
        acc = acc + jnp.dot(lhs, w2_ref[kh], preferred_element_type=jnp.float32)
    y2 = acc + b2
    y2_ref[...] = y2.reshape(TR, Wo, Cp).astype(jnp.bfloat16)

    @pl.when(t == 0)
    def _():
        st2_ref[...] = jnp.zeros_like(st2_ref)

    st2_ref[0:1, :] += jnp.sum(y2, axis=0, keepdims=True)
    st2_ref[1:2, :] += jnp.sum(y2 * y2, axis=0, keepdims=True)


def _stage3_kernel(y2_ref, byp_ref, prm_ref, out_ref):
    """IN2 + LeakyReLU, add bypass (optionally IN-normalised), final LeakyReLU."""
    y = _leaky(y2_ref[...].astype(jnp.float32) * prm_ref[0:1, :] + prm_ref[1:2, :])
    res = byp_ref[...].astype(jnp.float32) * prm_ref[2:3, :] + prm_ref[3:4, :]
    out_ref[...] = _leaky(y + res)


# ---------------------------------------------------------------------------
# Plain-JAX glue (per-channel scalars only)
# ---------------------------------------------------------------------------
def _in_affine(stats, gamma, beta, hw):
    """Fold per-sample IN statistics and affine params into (scale, shift)."""
    mean = stats[:, 0, :] / hw
    var = jnp.maximum(stats[:, 1, :] / hw - mean * mean, 0.0)
    inv = lax.rsqrt(var + EPS)
    scale = gamma[None, :] * inv
    shift = beta[None, :] - mean * scale
    return scale, shift


def _prepare_params(p, Cin, Cout, Cinp, Coutp, keep_channels):
    def padc(v):
        return jnp.pad(v.astype(jnp.float32), (0, Coutp - Cout))

    prep = {}
    C4 = 4 * Cinp

    # conv-1: 3x3 stride-2 re-expressed as a 2x2 stride-1 kernel over the
    # space-to-depth input, then the two column taps merged along K.
    w1 = p["w1"].astype(jnp.float32)                          # (Cout, Cin, 3, 3)
    w1c = jnp.zeros((2, 2, C4, Coutp), jnp.float32)
    for kh in range(3):
        dr = 0 if kh == 0 else 1
        pr = 0 if kh == 1 else 1
        for kw in range(3):
            dc = 0 if kw == 0 else 1
            pc = 0 if kw == 1 else 1
            g = 2 * pr + pc
            blk = jnp.transpose(w1[:, :, kh, kw], (1, 0))     # (Cin, Cout)
            w1c = w1c.at[dr, dc, g * Cinp:g * Cinp + Cin, :Cout].set(blk)
    prep["w1m"] = w1c.reshape(2, 2 * C4, Coutp).astype(jnp.bfloat16)

    # conv-2: 3x3 stride-1, the 3 kw taps merged along K (K = 3*Coutp).
    w2 = p["w2"].astype(jnp.float32)                          # (Cout, Cout, 3, 3)
    w2c = jnp.zeros((3, 3, Coutp, Coutp), jnp.float32)
    for kh in range(3):
        for kw in range(3):
            w2c = w2c.at[kh, kw, :Cout, :Cout].set(
                jnp.transpose(w2[:, :, kh, kw], (1, 0)))
    prep["w2m"] = w2c.reshape(3, 3 * Coutp, Coutp).astype(jnp.bfloat16)

    prm1 = jnp.zeros((8, Coutp), jnp.float32).at[0, :].set(padc(p["b1"]))
    prep["g1"], prep["be1"] = padc(p["g1"]), padc(p["be1"])
    prep["b2"] = padc(p["b2"])
    prep["g2"], prep["be2"] = padc(p["g2"]), padc(p["be2"])

    if not keep_channels:
        wb = p["wb"].astype(jnp.float32)[:, :, 0, 0]          # (Cout, Cin)
        wbp = jnp.zeros((Cinp, Coutp), jnp.float32)
        wbp = wbp.at[:Cin, :Cout].set(jnp.transpose(wb, (1, 0)))
        prep["wbp"] = wbp.astype(jnp.bfloat16)
        prm1 = prm1.at[1, :].set(padc(p["bb"]))
        prep["gb"], prep["beb"] = padc(p["gb"]), padc(p["beb"])

    prep["prm1"] = prm1
    return prep


def down_block_pallas(x_nchw, params, keep_channels, max_row_tile=None):
    N, Cin, H, W = x_nchw.shape
    assert H % 2 == 0 and W % 2 == 0, "DownBlock assumes even spatial dims"
    Ho, Wo = H // 2, W // 2
    assert Wo % 8 == 0, "row-tiled shifted-GEMM path assumes Wo % 8 == 0"

    Cout = Cin if keep_channels else 2 * Cin
    Cinp = _round_up(Cin, LANE)
    Coutp = _round_up(Cout, LANE)
    C4 = 4 * Cinp
    HW = Ho * Wo

    vmem_limit, target_m = _vmem_budget()
    TR = _row_tile(Ho, Wo, C4, Coutp, Cinp, keep_channels, vmem_limit,
                   target_m, max_row_tile)
    n_t = Ho // TR
    grid = (N, n_t)

    prep = _prepare_params(params, Cin, Cout, Cinp, Coutp, keep_channels)

    # NCHW -> bf16 space-to-depth NHWC in one fused XLA pass (no halo copies,
    # no intermediate NHWC array).
    xc = x_nchw.astype(jnp.bfloat16).reshape(N, Cin, Ho, 2, Wo, 2)
    xc = jnp.transpose(xc, (0, 2, 4, 3, 5, 1))                 # (N,Ho,Wo,2,2,Cin)
    xc = jnp.pad(xc, ((0, 0),) * 5 + ((0, Cinp - Cin),)).reshape(N, Ho, Wo, C4)

    # Halo rows come from extra 1-row BlockSpecs on the SAME array (clamped
    # row index maps), so no host-side halo duplication is ever materialised.
    row_in_x = pl.BlockSpec((None, TR, Wo, C4), lambda n, t: (n, t, 0, 0))
    halo_top_x = pl.BlockSpec(
        (None, 1, Wo, C4), lambda n, t: (n, jnp.maximum(t * TR - 1, 0), 0, 0))
    row_y = pl.BlockSpec((None, TR, Wo, Coutp), lambda n, t: (n, t, 0, 0))
    halo_top_y = pl.BlockSpec(
        (None, 1, Wo, Coutp), lambda n, t: (n, jnp.maximum(t * TR - 1, 0), 0, 0))
    halo_bot_y = pl.BlockSpec(
        (None, 1, Wo, Coutp),
        lambda n, t: (n, jnp.minimum(t * TR + TR, Ho - 1), 0, 0))
    stat_spec = pl.BlockSpec((None, 8, Coutp), lambda n, t: (n, 0, 0))

    cparams_acc = pltpu.CompilerParams(
        dimension_semantics=("parallel", "arbitrary"),   # stats accumulate over t
        vmem_limit_bytes=int(vmem_limit))
    cparams_par = pltpu.CompilerParams(
        dimension_semantics=("parallel", "parallel"),
        vmem_limit_bytes=int(vmem_limit))

    # ---- stage 1 ----------------------------------------------------------
    in_specs = [row_in_x, halo_top_x,
                pl.BlockSpec((2, 2 * C4, Coutp), lambda n, t: (0, 0, 0)),
                pl.BlockSpec((8, Coutp), lambda n, t: (0, 0))]
    args = [xc, xc, prep["w1m"], prep["prm1"]]
    if not keep_channels:
        in_specs.insert(3, pl.BlockSpec((Cinp, Coutp), lambda n, t: (0, 0)))
        args.insert(3, prep["wbp"])

    out_shape = [jax.ShapeDtypeStruct((N, Ho, Wo, Coutp), jnp.bfloat16),  # conv1
                 jax.ShapeDtypeStruct((N, Ho, Wo, Coutp), jnp.bfloat16),  # bypass
                 jax.ShapeDtypeStruct((N, 8, Coutp), jnp.float32)]        # stats
    out_specs = [row_y, row_y, stat_spec]
    if not keep_channels:
        out_shape.append(jax.ShapeDtypeStruct((N, 8, Coutp), jnp.float32))
        out_specs.append(stat_spec)

    outs = pl.pallas_call(
        functools.partial(_stage1_kernel, TR=TR, Wo=Wo, Cinp=Cinp,
                          keep_channels=keep_channels),
        grid=grid, in_specs=in_specs, out_specs=out_specs, out_shape=out_shape,
        scratch_shapes=[pltpu.VMEM((TR + 1, Wo + 1, C4), jnp.bfloat16)],
        compiler_params=cparams_acc,
    )(*args)
    if keep_channels:
        y1_raw, byp_raw, st1 = outs
        stb = None
    else:
        y1_raw, byp_raw, st1, stb = outs

    # ---- stage 2 ----------------------------------------------------------
    scale1, shift1 = _in_affine(st1, prep["g1"], prep["be1"], HW)
    prm2 = jnp.zeros((N, 8, Coutp), jnp.float32)
    prm2 = prm2.at[:, 0, :].set(scale1).at[:, 1, :].set(shift1)
    prm2 = prm2.at[:, 2, :].set(jnp.broadcast_to(prep["b2"], (N, Coutp)))

    y2_raw, st2 = pl.pallas_call(
        functools.partial(_stage2_kernel, TR=TR, Wo=Wo),
        grid=grid,
        in_specs=[row_y, halo_top_y, halo_bot_y, stat_spec,
                  pl.BlockSpec((3, 3 * Coutp, Coutp), lambda n, t: (0, 0, 0))],
        out_specs=[row_y, stat_spec],
        out_shape=[jax.ShapeDtypeStruct((N, Ho, Wo, Coutp), jnp.bfloat16),
                   jax.ShapeDtypeStruct((N, 8, Coutp), jnp.float32)],
        scratch_shapes=[pltpu.VMEM((TR + 2, Wo + 2, Coutp), jnp.bfloat16)],
        compiler_params=cparams_acc,
    )(y1_raw, y1_raw, y1_raw, prm2, prep["w2m"])

    # ---- stage 3 ----------------------------------------------------------
    scale2, shift2 = _in_affine(st2, prep["g2"], prep["be2"], HW)
    if keep_channels:
        scaleb = jnp.ones((N, Coutp), jnp.float32)
        shiftb = jnp.zeros((N, Coutp), jnp.float32)
    else:
        scaleb, shiftb = _in_affine(stb, prep["gb"], prep["beb"], HW)
    prm3 = jnp.zeros((N, 8, Coutp), jnp.float32)
    prm3 = prm3.at[:, 0, :].set(scale2).at[:, 1, :].set(shift2)
    prm3 = prm3.at[:, 2, :].set(scaleb).at[:, 3, :].set(shiftb)

    out = pl.pallas_call(
        _stage3_kernel,
        grid=grid,
        in_specs=[row_y, row_y, stat_spec],
        out_specs=row_y,
        out_shape=jax.ShapeDtypeStruct((N, Ho, Wo, Coutp), jnp.float32),
        compiler_params=cparams_par,
    )(y2_raw, byp_raw, prm3)

    # TODO(synk): emit bf16 / keep NHWC when the consumer allows it, to save
    # the trailing channel-slice + transpose pass.
    out = out[..., :Cout]
    return jnp.transpose(out, (0, 3, 1, 2))                       # back to NCHW


# ---------------------------------------------------------------------------
# Deterministic parameter init (torch layout, shapes from DownBlock.__init__)
# ---------------------------------------------------------------------------
def make_params(key, in_channels, keep_channels):
    Cout = in_channels if keep_channels else 2 * in_channels
    ks = jax.random.split(key, 12)
    rnd = lambda k, s, sc: sc * jax.random.normal(k, s, jnp.float32)
    p = {
        "w1": rnd(ks[0], (Cout, in_channels, 3, 3), 0.2),
        "b1": rnd(ks[1], (Cout,), 0.1),
        "g1": 1.0 + rnd(ks[2], (Cout,), 0.1),
        "be1": rnd(ks[3], (Cout,), 0.1),
        "w2": rnd(ks[4], (Cout, Cout, 3, 3), 0.2),
        "b2": rnd(ks[5], (Cout,), 0.1),
        "g2": 1.0 + rnd(ks[6], (Cout,), 0.1),
        "be2": rnd(ks[7], (Cout,), 0.1),
    }
    if not keep_channels:
        p["wb"] = rnd(ks[8], (Cout, in_channels, 1, 1), 0.2)
        p["bb"] = rnd(ks[9], (Cout,), 0.1)
        p["gb"] = 1.0 + rnd(ks[10], (Cout,), 0.1)
        p["beb"] = rnd(ks[11], (Cout,), 0.1)
    return p


# ---------------------------------------------------------------------------
# Pure-JAX fp32 reference (mirrors the PyTorch forward)
# ---------------------------------------------------------------------------
def down_block_ref(x_nchw, params, keep_channels):
    x = jnp.transpose(x_nchw, (0, 2, 3, 1)).astype(jnp.float32)

    def conv(z, w_oihw, b, stride):
        w = jnp.transpose(w_oihw, (2, 3, 1, 0))               # HWIO
        k = w.shape[0]
        y = lax.conv_general_dilated(
            z, w, (stride, stride), ((k // 2, k // 2), (k // 2, k // 2)),
            dimension_numbers=("NHWC", "HWIO", "NHWC"),
            precision=lax.Precision.HIGHEST)
        return y + b

    def inorm(y, g, be):
        mean = jnp.mean(y, axis=(1, 2), keepdims=True)
        var = jnp.mean((y - mean) ** 2, axis=(1, 2), keepdims=True)
        return (y - mean) * lax.rsqrt(var + EPS) * g + be

    leaky = lambda v: jnp.where(v >= 0, v, LEAKY_SLOPE * v)

    y = leaky(inorm(conv(x, params["w1"], params["b1"], 2),
                    params["g1"], params["be1"]))
    y = leaky(inorm(conv(y, params["w2"], params["b2"], 1),
                    params["g2"], params["be2"]))

    N, H, W, C = x.shape
    avg = x.reshape(N, H // 2, 2, W // 2, 2, C).mean(axis=(2, 4))
    if keep_channels:
        res = avg
    else:
        res = inorm(conv(avg, params["wb"], params["bb"], 1),
                    params["gb"], params["beb"])
    out = leaky(y + res)
    return jnp.transpose(out, (0, 3, 1, 2))


# ---------------------------------------------------------------------------
if __name__ == "__main__":
    key = jax.random.PRNGKey(0)
    kx, kp_proj, kp_keep = jax.random.split(key, 3)

    x = jax.random.normal(kx, (2, 4, 16, 16), jnp.float32)   # NCHW, like PyTorch

    # (keep_channels, params_key, forced max row tile) -- the last case forces
    # multiple row tiles so the halo blocks and cross-tile stat accumulation
    # are exercised even at this small spatial size.
    cases = ((False, kp_proj, None), (True, kp_keep, None), (False, kp_proj, 2))
    for keep_channels, kp, max_rt in cases:
        params = make_params(kp, in_channels=4, keep_channels=keep_channels)
        out = jax.block_until_ready(
            down_block_pallas(x, params, keep_channels, max_row_tile=max_rt))
        expected_shape = (2, 4, 8, 8) if keep_channels else (2, 8, 8, 8)
        assert out.shape == expected_shape, (out.shape, expected_shape)

        ref = down_block_ref(x, params, keep_channels)
        # bf16 GEMM operands + bf16 inter-stage storage (f32 accumulation and
        # f32 IN statistics) -> loosened tolerance.
        if not jnp.allclose(out, ref, atol=5e-2, rtol=5e-2):
            raise AssertionError(
                f"mismatch (keep_channels={keep_channels}, max_rt={max_rt}): "
                f"max abs diff = {float(jnp.max(jnp.abs(out - ref)))}")

    print("KERNEL_OK")
</pallas_src>

<mosaic_0001>
module attributes {stable_mosaic.version = 11 : i64} {
  func.func @_stage1_kernel(%arg0: i32, %arg1: i32, %arg2: memref<1x8x8x512xbf16, #tpu.memory_space<vmem>>, %arg3: memref<1x1x8x512xbf16, #tpu.memory_space<vmem>>, %arg4: memref<2x1024x128xbf16, #tpu.memory_space<vmem>>, %arg5: memref<128x128xbf16, #tpu.memory_space<vmem>>, %arg6: memref<8x128xf32, #tpu.memory_space<vmem>>, %arg7: memref<1x8x8x128xbf16, #tpu.memory_space<vmem>>, %arg8: memref<1x8x8x128xbf16, #tpu.memory_space<vmem>>, %arg9: memref<1x8x128xf32, #tpu.memory_space<vmem>>, %arg10: memref<1x8x128xf32, #tpu.memory_space<vmem>>, %arg11: memref<9x9x512xbf16, #tpu.memory_space<vmem>>) attributes {dimension_semantics = [#tpu.dimension_semantics<parallel>, #tpu.dimension_semantics<arbitrary>], iteration_bounds = array<i64: 2, 1>, scalar_prefetch = 0 : i64, scratch_operands = 1 : i64, tpu.core_type = #tpu.core_type<tc>, window_params = [{transform_indices = @transform_0, window_bounds = array<i64: 1, 8, 8, 512>}, {transform_indices = @transform_1, window_bounds = array<i64: 1, 1, 8, 512>}, {pipeline_mode = #tpu.pipeline_mode<synchronous>, transform_indices = @transform_2, window_bounds = array<i64: 2, 1024, 128>}, {pipeline_mode = #tpu.pipeline_mode<synchronous>, transform_indices = @transform_3, window_bounds = array<i64: 128, 128>}, {pipeline_mode = #tpu.pipeline_mode<synchronous>, transform_indices = @transform_4, window_bounds = array<i64: 8, 128>}, {transform_indices = @transform_5, window_bounds = array<i64: 1, 8, 8, 128>}, {transform_indices = @transform_6, window_bounds = array<i64: 1, 8, 8, 128>}, {transform_indices = @transform_7, window_bounds = array<i64: 1, 8, 128>}, {transform_indices = @transform_8, window_bounds = array<i64: 1, 8, 128>}]} {
    %cst = arith.constant 0.000000e+00 : bf16
    %0 = vector.broadcast %cst : bf16 to vector<9x1x512xbf16>
    %c0 = arith.constant 0 : index
    %c0_0 = arith.constant 0 : index
    %c0_1 = arith.constant 0 : index
    %1 = vector.load %arg11[%c0, %c0_0, %c0_1] : memref<9x9x512xbf16, #tpu.memory_space<vmem>>, vector<9x1x512xbf16>
    tpu.vector_store %arg11[%c0, %c0_0, %c0_1], %0 {strides = array<i32>} : memref<9x9x512xbf16, #tpu.memory_space<vmem>>, vector<9x1x512xbf16>,
    %c0_2 = arith.constant 0 : index
    %c0_3 = arith.constant 0 : index
    %c0_4 = arith.constant 0 : index
    %c0_5 = arith.constant 0 : index
    %2 = vector.load %arg2[%c0_2, %c0_3, %c0_4, %c0_5] : memref<1x8x8x512xbf16, #tpu.memory_space<vmem>>, vector<1x8x8x512xbf16>
    %3 = vector.shape_cast %2 : vector<1x8x8x512xbf16> to vector<8x8x512xbf16>
    %c1 = arith.constant 1 : index
    %c1_6 = arith.constant 1 : index
    %c0_7 = arith.constant 0 : index
    %4 = vector.load %arg11[%c1, %c1_6, %c0_7] : memref<9x9x512xbf16, #tpu.memory_space<vmem>>, vector<8x8x512xbf16>
    tpu.vector_store %arg11[%c1, %c1_6, %c0_7], %3 {strides = array<i32>} : memref<9x9x512xbf16, #tpu.memory_space<vmem>>, vector<8x8x512xbf16>,
    %c0_i32 = arith.constant 0 : i32
    %5 = arith.cmpi sgt, %arg1, %c0_i32 : i32
    %6 = arith.extui %5 : i1 to i32
    %c0_i32_8 = arith.constant 0 : i32
    %7 = arith.cmpi ne, %6, %c0_i32_8 : i32
    scf.if %7 {
      %c0_82 = arith.constant 0 : index
      %c0_83 = arith.constant 0 : index
      %c0_84 = arith.constant 0 : index
      %c0_85 = arith.constant 0 : index
      %100 = vector.load %arg3[%c0_82, %c0_83, %c0_84, %c0_85] : memref<1x1x8x512xbf16, #tpu.memory_space<vmem>>, vector<1x1x8x512xbf16>
      %101 = vector.shape_cast %100 : vector<1x1x8x512xbf16> to vector<1x8x512xbf16>
      %c0_86 = arith.constant 0 : index
      %c1_87 = arith.constant 1 : index
      %c0_88 = arith.constant 0 : index
      %102 = vector.load %arg11[%c0_86, %c1_87, %c0_88] : memref<9x9x512xbf16, #tpu.memory_space<vmem>>, vector<1x8x512xbf16>
      tpu.vector_store %arg11[%c0_86, %c1_87, %c0_88], %101 {strides = array<i32>} : memref<9x9x512xbf16, #tpu.memory_space<vmem>>, vector<1x8x512xbf16>,
    } else {
    }
    %c0_i32_9 = arith.constant 0 : i32
    %8 = arith.cmpi eq, %arg1, %c0_i32_9 : i32
    %9 = arith.extui %8 : i1 to i32
    %c0_i32_10 = arith.constant 0 : i32
    %10 = arith.cmpi ne, %9, %c0_i32_10 : i32
    scf.if %10 {
      %cst_82 = arith.constant 0.000000e+00 : bf16
      %100 = vector.broadcast %cst_82 : bf16 to vector<1x8x512xbf16>
      %c0_83 = arith.constant 0 : index
      %c1_84 = arith.constant 1 : index
      %c0_85 = arith.constant 0 : index
      %101 = vector.load %arg11[%c0_83, %c1_84, %c0_85] : memref<9x9x512xbf16, #tpu.memory_space<vmem>>, vector<1x8x512xbf16>
      tpu.vector_store %arg11[%c0_83, %c1_84, %c0_85], %100 {strides = array<i32>} : memref<9x9x512xbf16, #tpu.memory_space<vmem>>, vector<1x8x512xbf16>,
    } else {
    }
    %cst_11 = arith.constant 0.000000e+00 : f32
    %11 = vector.broadcast %cst_11 : f32 to vector<64x128xf32>
    %c0_12 = arith.constant 0 : index
    %c0_13 = arith.constant 0 : index
    %c0_14 = arith.constant 0 : index
    %12 = vector.load %arg11[%c0_12, %c0_13, %c0_14] : memref<9x9x512xbf16, #tpu.memory_space<vmem>>, vector<8x8x512xbf16>
    %c0_15 = arith.constant 0 : index
    %c1_16 = arith.constant 1 : index
    %c0_17 = arith.constant 0 : index
    %13 = vector.load %arg11[%c0_15, %c1_16, %c0_17] : memref<9x9x512xbf16, #tpu.memory_space<vmem>>, vector<8x8x512xbf16>
    %14 = tpu.concatenate %12, %13 in 2 : vector<8x8x512xbf16>, vector<8x8x512xbf16> -> vector<8x8x1024xbf16>
    %15 = vector.shape_cast %14 : vector<8x8x1024xbf16> to vector<64x1024xbf16>
    %c0_18 = arith.constant 0 : index
    %c0_19 = arith.constant 0 : index
    %c0_20 = arith.constant 0 : index
    %16 = vector.load %arg4[%c0_18, %c0_19, %c0_20] : memref<2x1024x128xbf16, #tpu.memory_space<vmem>>, vector<1x1024x128xbf16>
    %17 = vector.shape_cast %16 : vector<1x1024x128xbf16> to vector<1024x128xbf16>
    %cst_21 = arith.constant dense<0.000000e+00> : vector<64x128xf32>
    %18 = tpu.matmul %15, %17, %cst_21 {dimension_numbers = #tpu.dot_dimension_numbers<[1], [0], [0], [1], [0, 0, 1, 1], [], []>} : vector<64x1024xbf16>, vector<1024x128xbf16>, vector<64x128xf32> -> vector<64x128xf32>
    %19 = arith.addf %11, %18 : vector<64x128xf32>
    %c1_22 = arith.constant 1 : index
    %c0_23 = arith.constant 0 : index
    %c0_24 = arith.constant 0 : index
    %20 = vector.load %arg11[%c1_22, %c0_23, %c0_24] : memref<9x9x512xbf16, #tpu.memory_space<vmem>>, vector<8x8x512xbf16>
    %c1_25 = arith.constant 1 : index
    %c1_26 = arith.constant 1 : index
    %c0_27 = arith.constant 0 : index
    %21 = vector.load %arg11[%c1_25, %c1_26, %c0_27] : memref<9x9x512xbf16, #tpu.memory_space<vmem>>, vector<8x8x512xbf16>
    %22 = tpu.concatenate %20, %21 in 2 : vector<8x8x512xbf16>, vector<8x8x512xbf16> -> vector<8x8x1024xbf16>
    %23 = vector.shape_cast %22 : vector<8x8x1024xbf16> to vector<64x1024xbf16>
    %c1_28 = arith.constant 1 : index
    %c0_29 = arith.constant 0 : index
    %c0_30 = arith.constant 0 : index
    %24 = vector.load %arg4[%c1_28, %c0_29, %c0_30] : memref<2x1024x128xbf16, #tpu.memory_space<vmem>>, vector<1x1024x128xbf16>
    %25 = vector.shape_cast %24 : vector<1x1024x128xbf16> to vector<1024x128xbf16>
    %cst_31 = arith.constant dense<0.000000e+00> : vector<64x128xf32>
    %26 = tpu.matmul %23, %25, %cst_31 {dimension_numbers = #tpu.dot_dimension_numbers<[1], [0], [0], [1], [0, 0, 1, 1], [], []>} : vector<64x1024xbf16>, vector<1024x128xbf16>, vector<64x128xf32> -> vector<64x128xf32>
    %27 = arith.addf %19, %26 : vector<64x128xf32>
    %c0_32 = arith.constant 0 : index
    %c0_33 = arith.constant 0 : index
    %28 = vector.load %arg6[%c0_32, %c0_33] : memref<8x128xf32, #tpu.memory_space<vmem>>, vector<1x128xf32>
    %29 = vector.broadcast %28 : vector<1x128xf32> to vector<64x128xf32>
    %30 = arith.addf %27, %29 : vector<64x128xf32>
    %31 = vector.shape_cast %30 : vector<64x128xf32> to vector<8x8x128xf32>
    %32 = arith.truncf %31 : vector<8x8x128xf32> to vector<8x8x128xbf16>
    %c0_34 = arith.constant 0 : index
    %c0_35 = arith.constant 0 : index
    %c0_36 = arith.constant 0 : index
    %c0_37 = arith.constant 0 : index
    %33 = vector.load %arg7[%c0_34, %c0_35, %c0_36, %c0_37] : memref<1x8x8x128xbf16, #tpu.memory_space<vmem>>, vector<1x8x8x128xbf16>
    %34 = vector.shape_cast %33 : vector<1x8x8x128xbf16> to vector<8x8x128xbf16>
    %35 = vector.shape_cast %32 : vector<8x8x128xbf16> to vector<1x8x8x128xbf16>
    tpu.vector_store %arg7[%c0_34, %c0_35, %c0_36, %c0_37], %35 {strides = array<i32>} : memref<1x8x8x128xbf16, #tpu.memory_space<vmem>>, vector<1x8x8x128xbf16>,
    %c0_38 = arith.constant 0 : index
    %c0_39 = arith.constant 0 : index
    %c0_40 = arith.constant 0 : index
    %c0_41 = arith.constant 0 : index
    %36 = vector.load %arg2[%c0_38, %c0_39, %c0_40, %c0_41] : memref<1x8x8x512xbf16, #tpu.memory_space<vmem>>, vector<1x8x8x512xbf16>
    %37 = vector.shape_cast %36 : vector<1x8x8x512xbf16> to vector<8x8x512xbf16>
    %38 = vector.shape_cast %37 : vector<8x8x512xbf16> to vector<64x512xbf16>
    %39 = vector.extract_strided_slice %38 {offsets = [0, 0], sizes = [64, 128], strides = [1, 1]} : vector<64x512xbf16> to vector<64x128xbf16>
    %40 = arith.extf %39 : vector<64x128xbf16> to vector<64x128xf32>
    %41 = vector.extract_strided_slice %38 {offsets = [0, 128], sizes = [64, 128], strides = [1, 1]} : vector<64x512xbf16> to vector<64x128xbf16>
    %42 = arith.extf %41 : vector<64x128xbf16> to vector<64x128xf32>
    %43 = arith.addf %40, %42 : vector<64x128xf32>
    %44 = vector.extract_strided_slice %38 {offsets = [0, 256], sizes = [64, 128], strides = [1, 1]} : vector<64x512xbf16> to vector<64x128xbf16>
    %45 = arith.extf %44 : vector<64x128xbf16> to vector<64x128xf32>
    %46 = arith.addf %43, %45 : vector<64x128xf32>
    %47 = vector.extract_strided_slice %38 {offsets = [0, 384], sizes = [64, 128], strides = [1, 1]} : vector<64x512xbf16> to vector<64x128xbf16>
    %48 = arith.extf %47 : vector<64x128xbf16> to vector<64x128xf32>
    %49 = arith.addf %46, %48 : vector<64x128xf32>
    %cst_42 = arith.constant 2.500000e-01 : f32
    %50 = vector.broadcast %cst_42 : f32 to vector<64x128xf32>
    %51 = arith.mulf %50, %49 : vector<64x128xf32>
    %52 = arith.truncf %51 : vector<64x128xf32> to vector<64x128xbf16>
    %c0_43 = arith.constant 0 : index
    %c0_44 = arith.constant 0 : index
    %53 = vector.load %arg5[%c0_43, %c0_44] : memref<128x128xbf16, #tpu.memory_space<vmem>>, vector<128x128xbf16>
    %cst_45 = arith.constant dense<0.000000e+00> : vector<64x128xf32>
    %54 = tpu.matmul %52, %53, %cst_45 {dimension_numbers = #tpu.dot_dimension_numbers<[1], [0], [0], [1], [0, 0, 1, 1], [], []>} : vector<64x128xbf16>, vector<128x128xbf16>, vector<64x128xf32> -> vector<64x128xf32>
    %c1_46 = arith.constant 1 : index
    %c0_47 = arith.constant 0 : index
    %55 = vector.load %arg6[%c1_46, %c0_47] : memref<8x128xf32, #tpu.memory_space<vmem>>, vector<1x128xf32>
    %56 = vector.broadcast %55 : vector<1x128xf32> to vector<64x128xf32>
    %57 = arith.addf %54, %56 : vector<64x128xf32>
    %58 = vector.shape_cast %57 : vector<64x128xf32> to vector<8x8x128xf32>
    %59 = arith.truncf %58 : vector<8x8x128xf32> to vector<8x8x128xbf16>
    %c0_48 = arith.constant 0 : index
    %c0_49 = arith.constant 0 : index
    %c0_50 = arith.constant 0 : index
    %c0_51 = arith.constant 0 : index
    %60 = vector.load %arg8[%c0_48, %c0_49, %c0_50, %c0_51] : memref<1x8x8x128xbf16, #tpu.memory_space<vmem>>, vector<1x8x8x128xbf16>
    %61 = vector.shape_cast %60 : vector<1x8x8x128xbf16> to vector<8x8x128xbf16>
    %62 = vector.shape_cast %59 : vector<8x8x128xbf16> to vector<1x8x8x128xbf16>
    tpu.vector_store %arg8[%c0_48, %c0_49, %c0_50, %c0_51], %62 {strides = array<i32>} : memref<1x8x8x128xbf16, #tpu.memory_space<vmem>>, vector<1x8x8x128xbf16>,
    %c0_i32_52 = arith.constant 0 : i32
    %63 = arith.cmpi eq, %arg1, %c0_i32_52 : i32
    %64 = arith.extui %63 : i1 to i32
    %c0_i32_53 = arith.constant 0 : i32
    %65 = arith.cmpi ne, %64, %c0_i32_53 : i32
    scf.if %65 {
      %cst_82 = arith.constant 0.000000e+00 : f32
      %100 = vector.broadcast %cst_82 : f32 to vector<8x128xf32>
      %c0_83 = arith.constant 0 : index
      %c0_84 = arith.constant 0 : index
      %c0_85 = arith.constant 0 : index
      %101 = vector.load %arg9[%c0_83, %c0_84, %c0_85] : memref<1x8x128xf32, #tpu.memory_space<vmem>>, vector<1x8x128xf32>
      %102 = vector.shape_cast %101 : vector<1x8x128xf32> to vector<8x128xf32>
      %103 = vector.shape_cast %100 : vector<8x128xf32> to vector<1x8x128xf32>
      tpu.vector_store %arg9[%c0_83, %c0_84, %c0_85], %103 {strides = array<i32>} : memref<1x8x128xf32, #tpu.memory_space<vmem>>, vector<1x8x128xf32>,
      %cst_86 = arith.constant 0.000000e+00 : f32
      %104 = vector.broadcast %cst_86 : f32 to vector<8x128xf32>
      %c0_87 = arith.constant 0 : index
      %c0_88 = arith.constant 0 : index
      %c0_89 = arith.constant 0 : index
      %105 = vector.load %arg10[%c0_87, %c0_88, %c0_89] : memref<1x8x128xf32, #tpu.memory_space<vmem>>, vector<1x8x128xf32>
      %106 = vector.shape_cast %105 : vector<1x8x128xf32> to vector<8x128xf32>
      %107 = vector.shape_cast %104 : vector<8x128xf32> to vector<1x8x128xf32>
      tpu.vector_store %arg10[%c0_87, %c0_88, %c0_89], %107 {strides = array<i32>} : memref<1x8x128xf32, #tpu.memory_space<vmem>>, vector<1x8x128xf32>,
    } else {
    }
    %c0_54 = arith.constant 0 : index
    %c0_55 = arith.constant 0 : index
    %c0_56 = arith.constant 0 : index
    %66 = vector.load %arg9[%c0_54, %c0_55, %c0_56] : memref<1x8x128xf32, #tpu.memory_space<vmem>>, vector<1x1x128xf32>
    %67 = vector.shape_cast %66 : vector<1x1x128xf32> to vector<1x128xf32>
    %cst_57 = arith.constant dense<0.000000e+00> : vector<128xf32>
    %68 = vector.multi_reduction <add>, %30, %cst_57 [0] : vector<64x128xf32> to vector<128xf32>
    %69 = vector.shape_cast %68 : vector<128xf32> to vector<1x128xf32>
    %70 = arith.addf %67, %69 : vector<1x128xf32>
    %c0_58 = arith.constant 0 : index
    %c0_59 = arith.constant 0 : index
    %c0_60 = arith.constant 0 : index
    %71 = vector.load %arg9[%c0_58, %c0_59, %c0_60] : memref<1x8x128xf32, #tpu.memory_space<vmem>>, vector<1x1x128xf32>
    %72 = vector.shape_cast %71 : vector<1x1x128xf32> to vector<1x128xf32>
    %73 = vector.shape_cast %70 : vector<1x128xf32> to vector<1x1x128xf32>
    tpu.vector_store %arg9[%c0_58, %c0_59, %c0_60], %73 {strides = array<i32>} : memref<1x8x128xf32, #tpu.memory_space<vmem>>, vector<1x1x128xf32>,
    %c0_61 = arith.constant 0 : index
    %c1_62 = arith.constant 1 : index
    %c0_63 = arith.constant 0 : index
    %74 = vector.load %arg9[%c0_61, %c1_62, %c0_63] : memref<1x8x128xf32, #tpu.memory_space<vmem>>, vector<1x1x128xf32>
    %75 = vector.shape_cast %74 : vector<1x1x128xf32> to vector<1x128xf32>
    %76 = arith.mulf %30, %30 : vector<64x128xf32>
    %cst_64 = arith.constant dense<0.000000e+00> : vector<128xf32>
    %77 = vector.multi_reduction <add>, %76, %cst_64 [0] : vector<64x128xf32> to vector<128xf32>
    %78 = vector.shape_cast %77 : vector<128xf32> to vector<1x128xf32>
    %79 = arith.addf %75, %78 : vector<1x128xf32>
    %c0_65 = arith.constant 0 : index
    %c1_66 = arith.constant 1 : index
    %c0_67 = arith.constant 0 : index
    %80 = vector.load %arg9[%c0_65, %c1_66, %c0_67] : memref<1x8x128xf32, #tpu.memory_space<vmem>>, vector<1x1x128xf32>
    %81 = vector.shape_cast %80 : vector<1x1x128xf32> to vector<1x128xf32>
    %82 = vector.shape_cast %79 : vector<1x128xf32> to vector<1x1x128xf32>
    tpu.vector_store %arg9[%c0_65, %c1_66, %c0_67], %82 {strides = array<i32>} : memref<1x8x128xf32, #tpu.memory_space<vmem>>, vector<1x1x128xf32>,
    %c0_68 = arith.constant 0 : index
    %c0_69 = arith.constant 0 : index
    %c0_70 = arith.constant 0 : index
    %83 = vector.load %arg10[%c0_68, %c0_69, %c0_70] : memref<1x8x128xf32, #tpu.memory_space<vmem>>, vector<1x1x128xf32>
    %84 = vector.shape_cast %83 : vector<1x1x128xf32> to vector<1x128xf32>
    %cst_71 = arith.constant dense<0.000000e+00> : vector<128xf32>
    %85 = vector.multi_reduction <add>, %57, %cst_71 [0] : vector<64x128xf32> to vector<128xf32>
    %86 = vector.shape_cast %85 : vector<128xf32> to vector<1x128xf32>
    %87 = arith.addf %84, %86 : vector<1x128xf32>
    %c0_72 = arith.constant 0 : index
    %c0_73 = arith.constant 0 : index
    %c0_74 = arith.constant 0 : index
    %88 = vector.load %arg10[%c0_72, %c0_73, %c0_74] : memref<1x8x128xf32, #tpu.memory_space<vmem>>, vector<1x1x128xf32>
    %89 = vector.shape_cast %88 : vector<1x1x128xf32> to vector<1x128xf32>
    %90 = vector.shape_cast %87 : vector<1x128xf32> to vector<1x1x128xf32>
    tpu.vector_store %arg10[%c0_72, %c0_73, %c0_74], %90 {strides = array<i32>} : memref<1x8x128xf32, #tpu.memory_space<vmem>>, vector<1x1x128xf32>,
    %c0_75 = arith.constant 0 : index
    %c1_76 = arith.constant 1 : index
    %c0_77 = arith.constant 0 : index
    %91 = vector.load %arg10[%c0_75, %c1_76, %c0_77] : memref<1x8x128xf32, #tpu.memory_space<vmem>>, vector<1x1x128xf32>
    %92 = vector.shape_cast %91 : vector<1x1x128xf32> to vector<1x128xf32>
    %93 = arith.mulf %57, %57 : vector<64x128xf32>
    %cst_78 = arith.constant dense<0.000000e+00> : vector<128xf32>
    %94 = vector.multi_reduction <add>, %93, %cst_78 [0] : vector<64x128xf32> to vector<128xf32>
    %95 = vector.shape_cast %94 : vector<128xf32> to vector<1x128xf32>
    %96 = arith.addf %92, %95 : vector<1x128xf32>
    %c0_79 = arith.constant 0 : index
    %c1_80 = arith.constant 1 : index
    %c0_81 = arith.constant 0 : index
    %97 = vector.load %arg10[%c0_79, %c1_80, %c0_81] : memref<1x8x128xf32, #tpu.memory_space<vmem>>, vector<1x1x128xf32>
    %98 = vector.shape_cast %97 : vector<1x1x128xf32> to vector<1x128xf32>
    %99 = vector.shape_cast %96 : vector<1x128xf32> to vector<1x1x128xf32>
    tpu.vector_store %arg10[%c0_79, %c1_80, %c0_81], %99 {strides = array<i32>} : memref<1x8x128xf32, #tpu.memory_space<vmem>>, vector<1x1x128xf32>,
    return
  }
  func.func @transform_0(%arg0: i32, %arg1: i32) -> (i32, i32, i32, i32) {
    %c0_i32 = arith.constant 0 : i32
    %c0_i32_0 = arith.constant 0 : i32
    %c0_i32_1 = arith.constant 0 : i32
    return %arg0, %arg1, %c0_i32, %c0_i32_0 : i32, i32, i32, i32
  }
  func.func @transform_1(%arg0: i32, %arg1: i32) -> (i32, i32, i32, i32) {
    %c8_i32 = arith.constant 8 : i32
    %0 = arith.muli %arg1, %c8_i32 : i32
    %c1_i32 = arith.constant 1 : i32
    %1 = arith.subi %0, %c1_i32 : i32
    %c0_i32 = arith.constant 0 : i32
    %2 = arith.maxsi %1, %c0_i32 : i32
    %c0_i32_0 = arith.constant 0 : i32
    %c0_i32_1 = arith.constant 0 : i32
    %c0_i32_2 = arith.constant 0 : i32
    return %arg0, %2, %c0_i32_0, %c0_i32_1 : i32, i32, i32, i32
  }
  func.func @transform_2(%arg0: i32, %arg1: i32) -> (i32, i32, i32) {
    %c0_i32 = arith.constant 0 : i32
    %c0_i32_0 = arith.constant 0 : i32
    %c0_i32_1 = arith.constant 0 : i32
    %c0_i32_2 = arith.constant 0 : i32
    return %c0_i32, %c0_i32_0, %c0_i32_1 : i32, i32, i32
  }
  func.func @transform_3(%arg0: i32, %arg1: i32) -> (i32, i32) {
    %c0_i32 = arith.constant 0 : i32
    %c0_i32_0 = arith.constant 0 : i32
    %c0_i32_1 = arith.constant 0 : i32
    return %c0_i32, %c0_i32_0 : i32, i32
  }
  func.func @transform_4(%arg0: i32, %arg1: i32) -> (i32, i32) {
    %c0_i32 = arith.constant 0 : i32
    %c0_i32_0 = arith.constant 0 : i32
    %c0_i32_1 = arith.constant 0 : i32
    return %c0_i32, %c0_i32_0 : i32, i32
  }
  func.func @transform_5(%arg0: i32, %arg1: i32) -> (i32, i32, i32, i32) {
    %c0_i32 = arith.constant 0 : i32
    %c0_i32_0 = arith.constant 0 : i32
    %c0_i32_1 = arith.constant 0 : i32
    return %arg0, %arg1, %c0_i32, %c0_i32_0 : i32, i32, i32, i32
  }
  func.func @transform_6(%arg0: i32, %arg1: i32) -> (i32, i32, i32, i32) {
    %c0_i32 = arith.constant 0 : i32
    %c0_i32_0 = arith.constant 0 : i32
    %c0_i32_1 = arith.constant 0 : i32
    return %arg0, %arg1, %c0_i32, %c0_i32_0 : i32, i32, i32, i32
  }
  func.func @transform_7(%arg0: i32, %arg1: i32) -> (i32, i32, i32) {
    %c0_i32 = arith.constant 0 : i32
    %c0_i32_0 = arith.constant 0 : i32
    %c0_i32_1 = arith.constant 0 : i32
    return %arg0, %c0_i32, %c0_i32_0 : i32, i32, i32
  }
  func.func @transform_8(%arg0: i32, %arg1: i32) -> (i32, i32, i32) {
    %c0_i32 = arith.constant 0 : i32
    %c0_i32_0 = arith.constant 0 : i32
    %c0_i32_1 = arith.constant 0 : i32
    return %arg0, %c0_i32, %c0_i32_0 : i32, i32, i32
  }
}

</mosaic_0001>

<llo_original>
// kernel: tpu_custom_call.1
$region0: #{tpu_custom_call.1}
  #allocation0 [shape = 'u32[]', space=smem, size = 0x4, offset = 0x4, fixed_abs, tag = 'smem constant byte address 0x4 - core index']
  #allocation1 [shape = 'u32[144,128]{1,0:T(1,128)}', space=vmem, size = 0x12000, scoped, tag = 'internal scratch']
  #allocation2 [shape = 'bf16[9,9,512]{2,1,0:T(8,128)(2,1)}', space=vmem, size = 0x24000, scoped, tag = 'scratch operand']
  %s0 = inlined_call_operand.hbm [shape: bf16[2,8,8,512], index: 0, kind: input, shape index: {}]
  %s1 = inlined_call_operand.hbm [shape: bf16[2,8,8,512], index: 1, kind: input, shape index: {}]
  %s2 = inlined_call_operand.hbm [shape: bf16[2,1024,128], index: 2, kind: input, shape index: {}]
  %s3 = inlined_call_operand.hbm [shape: bf16[128,128], index: 3, kind: input, shape index: {}]
  %s4 = inlined_call_operand.vmem [shape: f32[8,128], index: 4, kind: input, shape index: {}]
  %s5 = inlined_call_operand.hbm [shape: bf16[2,8,8,128], index: 5, kind: output, shape index: {0}]
  %s6 = inlined_call_operand.hbm [shape: bf16[2,8,8,128], index: 6, kind: output, shape index: {1}]
  %s7 = inlined_call_operand.hbm [shape: f32[2,8,128], index: 7, kind: output, shape index: {2}]
  %s8 = inlined_call_operand.hbm [shape: f32[2,8,128], index: 8, kind: output, shape index: {3}]
  %9 = xla_tuple %s5, %s6, %s7, %s8
  %s10 = sld [smem:[#allocation0]]
  $region105: #{tpu_custom_call.1} parent=0
    _
  %s12 = ssub.s32 1, %s10
  %s13 = scalar_select 0, %s12, %s10
  $region1: #{tpu_custom_call.1} parent=0
    #allocation3 [shape = 'u8[131072]{0}', space=vmem, size = 0x20000, scoped, tag = 'input window, operand 0']
    #allocation4 [shape = 's32[2]{0}', space=sflag, size = 0x8, scoped, tag = 'scoped memory for tpu_custom_call.1']
    #allocation5 [shape = 's32[2]{0}', space=sflag, size = 0x8, scoped, tag = 'scoped memory for tpu_custom_call.1']
    #allocation6 [shape = 'u8[16384]{0}', space=vmem, size = 0x4000, scoped, tag = 'input window, operand 1']
    #allocation7 [shape = 's32[2]{0}', space=sflag, size = 0x8, scoped, tag = 'scoped memory for tpu_custom_call.1']
    #allocation8 [shape = 'u8[524288]{0}', space=vmem, size = 0x80000, scoped, tag = 'input window, operand 2, single buffered']
    #allocation9 [shape = 'u8[32768]{0}', space=vmem, size = 0x8000, scoped, tag = 'input window, operand 3, single buffered']
    #allocation10 [shape = 's32[1]{0}', space=sflag, size = 0x4, scoped, tag = 'scoped memory for tpu_custom_call.1']
    #allocation11 [shape = 'u8[32768]{0}', space=vmem, size = 0x8000, scoped, tag = 'output window, operand 0']
    #allocation12 [shape = 'u8[32768]{0}', space=vmem, size = 0x8000, scoped, tag = 'output window, operand 1']
    #allocation13 [shape = 's32[2]{0}', space=sflag, size = 0x8, scoped, tag = 'scoped memory for tpu_custom_call.1']
    #allocation14 [shape = 'u8[8192]{0}', space=vmem, size = 0x2000, scoped, tag = 'output window, operand 2']
    #allocation15 [shape = 'u8[8192]{0}', space=vmem, size = 0x2000, scoped, tag = 'output window, operand 3']
    #allocation16 [shape = 's32[2]{0}', space=sflag, size = 0x8, scoped, tag = 'scoped memory for tpu_custom_call.1']
    %14 = vsyncpa [#allocation4], 0
    %s15 = scalar_lea.sflag [#allocation4], 1
    %16 = vsyncpa %s15, 0
    %17 = vsyncpa [#allocation7], 0
    %s18 = scalar_lea.sflag [#allocation7], 1
    %19 = vsyncpa %s18, 0
    %20 = vsyncpa [#allocation10], 0
    %21 = vsyncpa [#allocation5], 0
    %s22 = scalar_lea.sflag [#allocation5], 1
    %23 = vsyncpa %s22, 0
    %24 = vsyncpa [#allocation13], 0
    %s25 = scalar_lea.sflag [#allocation13], 1
    %26 = vsyncpa %s25, 0
    %27 = vsyncpa [#allocation16], 0
    %s28 = scalar_lea.sflag [#allocation16], 1
    %29 = vsyncpa %s28, 0
    loop: start=0, step=1, limit=4
    $region2: #{tpu_custom_call.1} parent=1 // loop_pre_header
      _
    $region3: #{tpu_custom_call.1} parent=1 // loop_header
      %s31 = sphi 0, %s35
      %p32 = scmp.ge.s32.totalorder %s31, 4
      %s38 = sphi 0, %s50
      %s39 = sphi 0, %s46
      %s40 = sphi 0, %s38
      %s41 = sphi 0, %s39
      %s42 = sphi 0, %s40
      %s43 = sphi 0, %s41
      %s55 = sphi 0, %s57
      %s58 = sphi 0, %s55
      %s59 = sphi 0, %s58
      %s75 = sphi 0, %s59
      %s91 = sphi 0, %s93
      %s94 = sphi 0, %s91
      %s95 = sphi 0, %s94
      %s111 = sphi 0, %s95
      %s115 = sphi 0, %s115
      %s117 = sphi 0, %s115
      %s118 = sphi 0, %s117
      %s132 = sphi 0, %s118
      %s136 = sphi 0, %s136
      %s138 = sphi 0, %s136
      %s139 = sphi 0, %s138
      %s153 = sphi 0, %s139
      %s157 = sphi 0, %s157
      %s159 = sphi 0, %s157
      %s160 = sphi 0, %s159
      %s174 = sphi 0, %s160
      %s182 = sphi 0, %s184
      %s185 = sphi 0, %s182
      %s186 = sphi 0, %s185
      %s202 = sphi 0, %s186
      %s210 = sphi 0, %s212
      %s213 = sphi 0, %s210
      %s214 = sphi 0, %s213
      %s230 = sphi 0, %s214
      %s236 = sphi 0, %s238
      %s239 = sphi 0, %s236
      %s240 = sphi 0, %s239
      %s256 = sphi 0, %s240
      %s262 = sphi 0, %s264
      %s265 = sphi 0, %s262
      %s266 = sphi 0, %s265
      %s282 = sphi 0, %s266
    $region4: #{tpu_custom_call.1} parent=1 // loop_header_branch
      %34 = sbr.rel (%p32) target = $region8
    $region5: #{tpu_custom_call.1} parent=1 // loop_body
      %s36 = ssub.s32 %s31, 1
      %s37 = ssub.s32 %s31, 2
      %s44 = sadd.s32 1, %s39
      %p45 = scmp.ge.s32.totalorder %s44, 1
      %s46 = scalar_select %p45, 0, %s44
      %s47 = sadd.s32 1, %s38
      %s48 = scalar_select %p45, %s47, %s38
      %p49 = scmp.ge.s32.totalorder %s48, 2
      %s50 = scalar_select %p49, 0, %s48
      %s51 = ssub.s32 %s38, %s50
      %s52 = ssub.s32 %s39, %s46
      %s53 = sor.u32 %s51, %s52
      %p54 = scmp.eq.s32.totalorder %s53, 0
      %s56 = sadd.s32 %s55, 1
      %s57 = scalar_select %p54, %s55, %s56
      %p60 = pneg %p54
      %p61 = scmp.eq.s32.totalorder %s31, 1
      %p62 = por %p60, %p61
      %p63 = scmp.ne.s32.totalorder %s55, %s58
      %p64 = scmp.eq.s32.totalorder %s31, 0
      %p65 = por %p63, %p64
      %p66 = scmp.ne.s32.totalorder %s55, %s58
      %p67 = scmp.eq.s32.totalorder %s36, 1
      %p68 = por %p66, %p67
      %p69 = scmp.ne.s32.totalorder %s58, %s59
      %p70 = scmp.eq.s32.totalorder %s36, 0
      %p71 = por %p69, %p70
      %p72 = scmp.ne.s32.totalorder %s58, %s59
      %p73 = scmp.eq.s32.totalorder %s37, 1
      %p74 = por %p72, %p73
      %p76 = scmp.ne.s32.totalorder %s59, %s75
      %p77 = scmp.eq.s32.totalorder %s37, 0
      %p78 = por %p76, %p77
      %s79 = smul.u32 %s39, 8
      %s80 = ssub.s32 %s79, 1
      %p81 = scmp.gt.s32.totalorder %s80, 0
      %s82 = scalar_select %p81, %s80, 0
      %s83 = smul.u32 %s46, 8
      %s84 = ssub.s32 %s83, 1
      %p85 = scmp.gt.s32.totalorder %s84, 0
      %s86 = scalar_select %p85, %s84, 0
      %s87 = ssub.s32 %s38, %s50
      %s88 = ssub.s32 %s82, %s86
      %s89 = sor.u32 %s87, %s88
      %p90 = scmp.eq.s32.totalorder %s89, 0
      %s92 = sadd.s32 %s91, 1
      %s93 = scalar_select %p90, %s91, %s92
      %p96 = pneg %p90
      %p97 = scmp.eq.s32.totalorder %s31, 1
      %p98 = por %p96, %p97
      %p99 = scmp.ne.s32.totalorder %s91, %s94
      %p100 = scmp.eq.s32.totalorder %s31, 0
      %p101 = por %p99, %p100
      %p102 = scmp.ne.s32.totalorder %s91, %s94
      %p103 = scmp.eq.s32.totalorder %s36, 1
      %p104 = por %p102, %p103
      %p105 = scmp.ne.s32.totalorder %s94, %s95
      %p106 = scmp.eq.s32.totalorder %s36, 0
      %p107 = por %p105, %p106
      %p108 = scmp.ne.s32.totalorder %s94, %s95
      %p109 = scmp.eq.s32.totalorder %s37, 1
      %p110 = por %p108, %p109
      %p112 = scmp.ne.s32.totalorder %s95, %s111
      %p113 = scmp.eq.s32.totalorder %s37, 0
      %p114 = por %p112, %p113
      %s116 = sadd.s32 %s115, 1
      %p119 = scmp.eq.s32.totalorder %s31, 1
      %p120 = scmp.ne.s32.totalorder %s115, %s117
      %p121 = scmp.eq.s32.totalorder %s31, 0
      %p122 = por %p120, %p121
      %p123 = scmp.ne.s32.totalorder %s115, %s117
      %p124 = scmp.eq.s32.totalorder %s36, 1
      %p125 = por %p123, %p124
      %p126 = scmp.ne.s32.totalorder %s117, %s118
      %p127 = scmp.eq.s32.totalorder %s36, 0
      %p128 = por %p126, %p127
      %p129 = scmp.ne.s32.totalorder %s117, %s118
      %p130 = scmp.eq.s32.totalorder %s37, 1
      %p131 = por %p129, %p130
      %p133 = scmp.ne.s32.totalorder %s118, %s132
      %p134 = scmp.eq.s32.totalorder %s37, 0
      %p135 = por %p133, %p134
      %s137 = sadd.s32 %s136, 1
      %p140 = scmp.eq.s32.totalorder %s31, 1
      %p141 = scmp.ne.s32.totalorder %s136, %s138
      %p142 = scmp.eq.s32.totalorder %s31, 0
      %p143 = por %p141, %p142
      %p144 = scmp.ne.s32.totalorder %s136, %s138
      %p145 = scmp.eq.s32.totalorder %s36, 1
      %p146 = por %p144, %p145
      %p147 = scmp.ne.s32.totalorder %s138, %s139
      %p148 = scmp.eq.s32.totalorder %s36, 0
      %p149 = por %p147, %p148
      %p150 = scmp.ne.s32.totalorder %s138, %s139
      %p151 = scmp.eq.s32.totalorder %s37, 1
      %p152 = por %p150, %p151
      %p154 = scmp.ne.s32.totalorder %s139, %s153
      %p155 = scmp.eq.s32.totalorder %s37, 0
      %p156 = por %p154, %p155
      %s158 = sadd.s32 %s157, 1
      %p161 = scmp.eq.s32.totalorder %s31, 1
      %p162 = scmp.ne.s32.totalorder %s157, %s159
      %p163 = scmp.eq.s32.totalorder %s31, 0
      %p164 = por %p162, %p163
      %p165 = scmp.ne.s32.totalorder %s157, %s159
      %p166 = scmp.eq.s32.totalorder %s36, 1
      %p167 = por %p165, %p166
      %p168 = scmp.ne.s32.totalorder %s159, %s160
      %p169 = scmp.eq.s32.totalorder %s36, 0
      %p170 = por %p168, %p169
      %p171 = scmp.ne.s32.totalorder %s159, %s160
      %p172 = scmp.eq.s32.totalorder %s37, 1
      %p173 = por %p171, %p172
      %p175 = scmp.ne.s32.totalorder %s160, %s174
      %p176 = scmp.eq.s32.totalorder %s37, 0
      %p177 = por %p175, %p176
      %s178 = ssub.s32 %s38, %s50
      %s179 = ssub.s32 %s39, %s46
      %s180 = sor.u32 %s178, %s179
      %p181 = scmp.eq.s32.totalorder %s180, 0
      %s183 = sadd.s32 %s182, 1
      %s184 = scalar_select %p181, %s182, %s183
      %p187 = pneg %p181
      %p188 = scmp.eq.s32.totalorder %s31, 1
      %p189 = por %p187, %p188
      %p190 = scmp.ne.s32.totalorder %s182, %s185
      %p191 = scmp.eq.s32.totalorder %s31, 0
      %p192 = por %p190, %p191
      %p193 = scmp.ne.s32.totalorder %s182, %s185
      %p194 = scmp.eq.s32.totalorder %s36, 1
      %p195 = por %p193, %p194
      %p196 = scmp.ne.s32.totalorder %s185, %s186
      %p197 = scmp.eq.s32.totalorder %s36, 0
      %p198 = por %p196, %p197
      %p199 = scmp.ne.s32.totalorder %s185, %s186
      %p200 = scmp.eq.s32.totalorder %s37, 1
      %p201 = por %p199, %p200
      %p203 = scmp.ne.s32.totalorder %s186, %s202
      %p204 = scmp.eq.s32.totalorder %s37, 0
      %p205 = por %p203, %p204
      %s206 = ssub.s32 %s38, %s50
      %s207 = ssub.s32 %s39, %s46
      %s208 = sor.u32 %s206, %s207
      %p209 = scmp.eq.s32.totalorder %s208, 0
      %s211 = sadd.s32 %s210, 1
      %s212 = scalar_select %p209, %s210, %s211
      %p215 = pneg %p209
      %p216 = scmp.eq.s32.totalorder %s31, 1
      %p217 = por %p215, %p216
      %p218 = scmp.ne.s32.totalorder %s210, %s213
      %p219 = scmp.eq.s32.totalorder %s31, 0
      %p220 = por %p218, %p219
      %p221 = scmp.ne.s32.totalorder %s210, %s213
      %p222 = scmp.eq.s32.totalorder %s36, 1
      %p223 = por %p221, %p222
      %p224 = scmp.ne.s32.totalorder %s213, %s214
      %p225 = scmp.eq.s32.totalorder %s36, 0
      %p226 = por %p224, %p225
      %p227 = scmp.ne.s32.totalorder %s213, %s214
      %p228 = scmp.eq.s32.totalorder %s37, 1
      %p229 = por %p227, %p228
      %p231 = scmp.ne.s32.totalorder %s214, %s230
      %p232 = scmp.eq.s32.totalorder %s37, 0
      %p233 = por %p231, %p232
      %s234 = ssub.s32 %s38, %s50
      %p235 = scmp.eq.s32.totalorder %s234, 0
      %s237 = sadd.s32 %s236, 1
      %s238 = scalar_select %p235, %s236, %s237
      %p241 = pneg %p235
      %p242 = scmp.eq.s32.totalorder %s31, 1
      %p243 = por %p241, %p242
      %p244 = scmp.ne.s32.totalorder %s236, %s239
      %p245 = scmp.eq.s32.totalorder %s31, 0
      %p246 = por %p244, %p245
      %p247 = scmp.ne.s32.totalorder %s236, %s239
      %p248 = scmp.eq.s32.totalorder %s36, 1
      %p249 = por %p247, %p248
      %p250 = scmp.ne.s32.totalorder %s239, %s240
      %p251 = scmp.eq.s32.totalorder %s36, 0
      %p252 = por %p250, %p251
      %p253 = scmp.ne.s32.totalorder %s239, %s240
      %p254 = scmp.eq.s32.totalorder %s37, 1
      %p255 = por %p253, %p254
      %p257 = scmp.ne.s32.totalorder %s240, %s256
      %p258 = scmp.eq.s32.totalorder %s37, 0
      %p259 = por %p257, %p258
      %s260 = ssub.s32 %s38, %s50
      %p261 = scmp.eq.s32.totalorder %s260, 0
      %s263 = sadd.s32 %s262, 1
      %s264 = scalar_select %p261, %s262, %s263
      %p267 = pneg %p261
      %p268 = scmp.eq.s32.totalorder %s31, 1
      %p269 = por %p267, %p268
      %p270 = scmp.ne.s32.totalorder %s262, %s265
      %p271 = scmp.eq.s32.totalorder %s31, 0
      %p272 = por %p270, %p271
      %p273 = scmp.ne.s32.totalorder %s262, %s265
      %p274 = scmp.eq.s32.totalorder %s36, 1
      %p275 = por %p273, %p274
      %p276 = scmp.ne.s32.totalorder %s265, %s266
      %p277 = scmp.eq.s32.totalorder %s36, 0
      %p278 = por %p276, %p277
      %p279 = scmp.ne.s32.totalorder %s265, %s266
      %p280 = scmp.eq.s32.totalorder %s37, 1
      %p281 = por %p279, %p280
      %p283 = scmp.ne.s32.totalorder %s266, %s282
      %p284 = scmp.eq.s32.totalorder %s37, 0
      %p285 = por %p283, %p284
      %p286 = scmp.le.s32.totalorder 1, %s31
      %p287 = scmp.lt.s32.totalorder %s31, 3
      %p288 = pnand %p286, %p287
      %p289 = pneg %p288
      // Predicated region
      $region9: #{tpu_custom_call.1} parent=5 // pred_check
        _
      $region10: #{tpu_custom_call.1} parent=5 // pred_check_branch
        %291 = sbr.rel (%p288) target = $region12
      $region11: #{tpu_custom_call.1} parent=5 // pred_region
        %s292 = ssub.s32 %s31, 1
        // Predicated region
        $region13: #{tpu_custom_call.1} parent=11 // pred_check
          %p293 = pneg %p128
        $region14: #{tpu_custom_call.1} parent=11 // pred_check_branch
          %295 = sbr.rel (%p293) target = $region16
        $region15: #{tpu_custom_call.1} parent=11 // pred_region
          %s297 = ssub.s32 16384, 16384
          %298 = vsyncadd [#allocation7], %s297
          %s299 = sshll.u32 [#allocation8], 4
          %s300 = int_to_ptr.vmem [resolvable:$true] %s299
          %305 = dma.hbm_to_vmem [thread:$0]  %s2, 16384, %s300, [#allocation7], 64, 64, 4
        $region16: #{tpu_custom_call.1} parent=11 // pred_fallthru
          _
        // Predicated region
        $region17: #{tpu_custom_call.1} parent=11 // pred_check
          %p306 = pneg %p149
        $region18: #{tpu_custom_call.1} parent=11 // pred_check_branch
          %308 = sbr.rel (%p306) target = $region20
        $region19: #{tpu_custom_call.1} parent=11 // pred_region
          %s310 = ssub.s32 1024, 1024
          %311 = vsyncadd [#allocation10], %s310
          %s312 = sshll.u32 [#allocation9], 4
          %s313 = int_to_ptr.vmem [resolvable:$true] %s312
          %318 = dma.hbm_to_vmem [thread:$0]  %s3, 1024, %s313, [#allocation10], 64, 64, 4
        $region20: #{tpu_custom_call.1} parent=11 // pred_fallthru
          _
        // Predicated region
        $region21: #{tpu_custom_call.1} parent=11 // pred_check
          %p319 = pneg %p170
        $region22: #{tpu_custom_call.1} parent=11 // pred_check_branch
          %321 = sbr.rel (%p319) target = $region24
        $region23: #{tpu_custom_call.1} parent=11 // pred_region
          _
        $region24: #{tpu_custom_call.1} parent=11 // pred_fallthru
          _
      $region12: #{tpu_custom_call.1} parent=5 // pred_fallthru
        _
      %p322 = scmp.lt.s32.totalorder %s31, 2
      // Predicated region
      $region25: #{tpu_custom_call.1} parent=5 // pred_check
        %p323 = pneg %p322
      $region26: #{tpu_custom_call.1} parent=5 // pred_check_branch
        %325 = sbr.rel (%p323) target = $region28
      $region27: #{tpu_custom_call.1} parent=5 // pred_region
        // Predicated region
        $region29: #{tpu_custom_call.1} parent=27 // pred_check
          %p326 = pneg %p65
        $region30: #{tpu_custom_call.1} parent=27 // pred_check_branch
          %328 = sbr.rel (%p326) target = $region32
        $region31: #{tpu_custom_call.1} parent=27 // pred_region
          %s329 = sand.u32 %s55, 1
          %s330 = scalar_lea.sflag [#allocation4], %s329
          %s331 = sand.u32 %s55, 1
          %s332 = smul.addr %s331, 128
          %s333 = scalar_lea.vmem [#allocation3], %s332
          %s334 = smul.u32 8, %s39
          %s336 = ssub.s32 2048, 2048
          %337 = vsyncadd %s330, %s336
          %s338 = smul.addr %s334, 4
          %s339 = smul.addr %s38, 32
          %s340 = sadd.s32 %s338, %s339
          %s341 = smul.addr %s340, 64
          %s342 = scalar_lea.hbm %s0, %s341
          %s343 = sshll.u32 %s333, 4
          %s344 = int_to_ptr.vmem [resolvable:$true] %s343
          %349 = dma.hbm_to_vmem [thread:$0]  %s342, 2048, %s344, %s330, 256, 256, 16
        $region32: #{tpu_custom_call.1} parent=27 // pred_fallthru
          _
        // Predicated region
        $region33: #{tpu_custom_call.1} parent=27 // pred_check
          %p350 = pneg %p101
        $region34: #{tpu_custom_call.1} parent=27 // pred_check_branch
          %352 = sbr.rel (%p350) target = $region36
        $region35: #{tpu_custom_call.1} parent=27 // pred_region
          %s353 = sand.u32 %s31, 1
          %s354 = scalar_lea.sflag [#allocation7], %s353
          %s355 = sand.u32 %s91, 1
          %s356 = smul.addr %s355, 16
          %s357 = scalar_lea.vmem [#allocation6], %s356
          %s358 = smul.u32 %s39, 8
          %s359 = ssub.s32 %s358, 1
          %p360 = scmp.gt.s32.totalorder %s359, 0
          %s361 = scalar_select %p360, %s359, 0
          %s363 = ssub.s32 256, 256
          %364 = vsyncadd %s354, %s363
          %s365 = smul.addr %s361, 4
          %s366 = smul.addr %s38, 32
          %s367 = sadd.s32 %s365, %s366
          %s368 = smul.addr %s367, 64
          %s369 = scalar_lea.hbm %s1, %s368
          %s371 = sshll.u32 %s357, 4
          %s372 = int_to_ptr.vmem [resolvable:$true] %s371
          %374 = dma.hbm_to_vmem [thread:$0]  %s369, 256, %s372, %s354
        $region36: #{tpu_custom_call.1} parent=27 // pred_fallthru
          _
      $region28: #{tpu_custom_call.1} parent=5 // pred_fallthru
        _
      %p375 = scmp.le.s32.totalorder 1, %s31
      %p376 = scmp.lt.s32.totalorder %s31, 3
      %p377 = pnand %p375, %p376
      %p378 = pneg %p377
      // Predicated region
      $region37: #{tpu_custom_call.1} parent=5 // pred_check
        _
      $region38: #{tpu_custom_call.1} parent=5 // pred_check_branch
        %380 = sbr.rel (%p377) target = $region40
      $region39: #{tpu_custom_call.1} parent=5 // pred_region
        %s381 = ssub.s32 %s31, 1
        %s382 = sand.u32 %s58, 1
        %s383 = scalar_lea.sflag [#allocation4], %s382
        %s384 = sand.u32 %s58, 1
        %s385 = smul.addr %s384, 128
        %s386 = scalar_lea.vmem [#allocation3], %s385
        // Predicated region
        $region41: #{tpu_custom_call.1} parent=39 // pred_check
          %p387 = pneg %p71
        $region42: #{tpu_custom_call.1} parent=39 // pred_check_branch
          %389 = sbr.rel (%p387) target = $region44
        $region43: #{tpu_custom_call.1} parent=39 // pred_region
          %390 = dma.done %s383, 2048
        $region44: #{tpu_custom_call.1} parent=39 // pred_fallthru
          _
        %s391 = sand.u32 %s36, 1
        %s392 = scalar_lea.sflag [#allocation7], %s391
        %s393 = sand.u32 %s94, 1
        %s394 = smul.addr %s393, 16
        %s395 = scalar_lea.vmem [#allocation6], %s394
        // Predicated region
        $region45: #{tpu_custom_call.1} parent=39 // pred_check
          %p396 = pneg %p107
        $region46: #{tpu_custom_call.1} parent=39 // pred_check_branch
          %398 = sbr.rel (%p396) target = $region48
        $region47: #{tpu_custom_call.1} parent=39 // pred_region
          %399 = dma.done %s392, 256
        $region48: #{tpu_custom_call.1} parent=39 // pred_fallthru
          _
        // Predicated region
        $region49: #{tpu_custom_call.1} parent=39 // pred_check
          %p400 = pneg %p128
        $region50: #{tpu_custom_call.1} parent=39 // pred_check_branch
          %402 = sbr.rel (%p400) target = $region52
        $region51: #{tpu_custom_call.1} parent=39 // pred_region
          %403 = dma.done [#allocation7], 16384
        $region52: #{tpu_custom_call.1} parent=39 // pred_fallthru
          _
        // Predicated region
        $region53: #{tpu_custom_call.1} parent=39 // pred_check
          %p404 = pneg %p149
        $region54: #{tpu_custom_call.1} parent=39 // pred_check_branch
          %406 = sbr.rel (%p404) target = $region56
        $region55: #{tpu_custom_call.1} parent=39 // pred_region
          %407 = dma.done [#allocation10], 1024
        $region56: #{tpu_custom_call.1} parent=39 // pred_fallthru
          _
        %s408 = sand.u32 %s58, 1
        %s409 = scalar_lea.sflag [#allocation4], %s408
        %s410 = sand.u32 %s58, 1
        %s411 = smul.addr %s410, 128
        %s412 = scalar_lea.vmem [#allocation3], %s411
        %p413 = pneg %p71
        %p414 = pneg %p68
        %s415 = sand.u32 %s36, 1
        %s416 = scalar_lea.sflag [#allocation7], %s415
        %s417 = sand.u32 %s94, 1
        %s418 = smul.addr %s417, 16
        %s419 = scalar_lea.vmem [#allocation6], %s418
        %p420 = pneg %p107
        %p421 = pneg %p104
        %p422 = pneg %p128
        %p423 = pneg %p125
        %p424 = pneg %p149
        %p425 = pneg %p146
        %p426 = pneg %p170
        %p427 = pneg %p167
        %p428 = pneg %p198
        %p429 = pneg %p195
        %s430 = sand.u32 %s185, 1
        %s431 = scalar_lea.sflag [#allocation5], %s430
        %s432 = sand.u32 %s185, 1
        %s433 = smul.addr %s432, 32
        %s434 = scalar_lea.vmem [#allocation11], %s433
        %p435 = pneg %p226
        %p436 = pneg %p223
        %s437 = sand.u32 %s36, 1
        %s438 = scalar_lea.sflag [#allocation13], %s437
        %s439 = sand.u32 %s213, 1
        %s440 = smul.addr %s439, 32
        %s441 = scalar_lea.vmem [#allocation12], %s440
        %p442 = pneg %p252
        %p443 = pneg %p249
        %s444 = sand.u32 %s36, 1
        %s445 = scalar_lea.sflag [#allocation13], %s444
        %s446 = sand.u32 %s239, 1
        %s447 = smul.addr %s446, 8
        %s448 = scalar_lea.vmem [#allocation14], %s447
        %p449 = pneg %p278
        %p450 = pneg %p275
        %s451 = sand.u32 %s265, 1
        %s452 = scalar_lea.sflag [#allocation16], %s451
        %s453 = sand.u32 %s265, 1
        %s454 = smul.addr %s453, 8
        %s455 = scalar_lea.vmem [#allocation15], %s454
        %s456 = smul.u32 8, %s41
        %s457 = smul.u32 %s41, 8
        %s458 = ssub.s32 %s457, 1
        %p459 = scmp.gt.s32.totalorder %s458, 0
        %s460 = scalar_select %p459, %s458, 0
        %s461 = smul.u32 8, %s41
        %s462 = smul.u32 8, %s41
        %vm464 = vcmask 1040384
        %vm465 = vsmask.f32 256
        %vm466 = vmand %vm464, %vm465
        %vm467 = vcmask 1044484
        %vm468 = vsmask.f32 4352
        %vm469 = vmand %vm467, %vm468
        %vm470 = vmor %vm469, %vm466
        %v471 = vld [vmem:[#allocation2] sm:$0x11]
        %v472 = vsel %vm470, 0, %v471
        %473 = vst [vmem:[#allocation2] sm:$0x11] %v472
        %v474 = vld [vmem:[#allocation2 + $0x8] sm:$0x11]
        %v475 = vsel %vm470, 0, %v474
        %476 = vst [vmem:[#allocation2 + $0x8] sm:$0x11] %v475
        %v477 = vld [vmem:[#allocation2 + $0x20] sm:$0x11]
        %v478 = vsel %vm470, 0, %v477
        %479 = vst [vmem:[#allocation2 + $0x20] sm:$0x11] %v478
        %v480 = vld [vmem:[#allocation2 + $0x28] sm:$0x11]
        %v481 = vsel %vm470, 0, %v480
        %482 = vst [vmem:[#allocation2 + $0x28] sm:$0x11] %v481
        %v483 = vld [vmem:[#allocation2 + $0x40] sm:$0x11]
        %v484 = vsel %vm470, 0, %v483
        %485 = vst [vmem:[#allocation2 + $0x40] sm:$0x11] %v484
        %v486 = vld [vmem:[#allocation2 + $0x48] sm:$0x11]
        %v487 = vsel %vm470, 0, %v486
        %488 = vst [vmem:[#allocation2 + $0x48] sm:$0x11] %v487
        %v489 = vld [vmem:[#allocation2 + $0x60] sm:$0x11]
        %v490 = vsel %vm470, 0, %v489
        %491 = vst [vmem:[#allocation2 + $0x60] sm:$0x11] %v490
        %v492 = vld [vmem:[#allocation2 + $0x68] sm:$0x11]
        %v493 = vsel %vm470, 0, %v492
        %494 = vst [vmem:[#allocation2 + $0x68] sm:$0x11] %v493
        %v495 = vld [vmem:[#allocation2 + $0x80] sm:$0x11]
        %v496 = vsel %vm470, 0, %v495
        %497 = vst [vmem:[#allocation2 + $0x80] sm:$0x11] %v496
        %v498 = vld [vmem:[#allocation2 + $0x88] sm:$0x11]
        %v499 = vsel %vm470, 0, %v498
        %500 = vst [vmem:[#allocation2 + $0x88] sm:$0x11] %v499
        %v501 = vld [vmem:[#allocation2 + $0xa0] sm:$0x11]
        %v502 = vsel %vm470, 0, %v501
        %503 = vst [vmem:[#allocation2 + $0xa0] sm:$0x11] %v502
        %v504 = vld [vmem:[#allocation2 + $0xa8] sm:$0x11]
        %v505 = vsel %vm470, 0, %v504
        %506 = vst [vmem:[#allocation2 + $0xa8] sm:$0x11] %v505
        %v507 = vld [vmem:[#allocation2 + $0xc0] sm:$0x11]
        %v508 = vsel %vm470, 0, %v507
        %509 = vst [vmem:[#allocation2 + $0xc0] sm:$0x11] %v508
        %v510 = vld [vmem:[#allocation2 + $0xc8] sm:$0x11]
        %v511 = vsel %vm470, 0, %v510
        %512 = vst [vmem:[#allocation2 + $0xc8] sm:$0x11] %v511
        %v513 = vld [vmem:[#allocation2 + $0xe0] sm:$0x11]
        %v514 = vsel %vm470, 0, %v513
        %515 = vst [vmem:[#allocation2 + $0xe0] sm:$0x11] %v514
        %v516 = vld [vmem:[#allocation2 + $0xe8] sm:$0x11]
        %v517 = vsel %vm470, 0, %v516
        %518 = vst [vmem:[#allocation2 + $0xe8] sm:$0x11] %v517
        %v519 = vld [vmem:[#allocation2 + $0x100] sm:$0x11]
        %v520 = vsel %vm470, 0, %v519
        %521 = vst [vmem:[#allocation2 + $0x100] sm:$0x11] %v520
        %v522 = vld [vmem:[#allocation2 + $0x108] sm:$0x11]
        %v523 = vsel %vm470, 0, %v522
        %524 = vst [vmem:[#allocation2 + $0x108] sm:$0x11] %v523
        %v525 = vld [vmem:[%s386] sm:$0xff]
        %v526 = vld [vmem:[%s386 + $0x8] sm:$0xff]
        %v527 = vld [vmem:[%s386 + $0x10] sm:$0xff]
        %v528 = vld [vmem:[%s386 + $0x18] sm:$0xff]
        %v529 = vld [vmem:[%s386 + $0x20] sm:$0xff]
        %v530 = vld [vmem:[%s386 + $0x28] sm:$0xff]
        %v531 = vld [vmem:[%s386 + $0x30] sm:$0xff]
        %v532 = vld [vmem:[%s386 + $0x38] sm:$0xff]
        %v533 = vld [vmem:[%s386 + $0x40] sm:$0xff]
        %v534 = vld [vmem:[%s386 + $0x48] sm:$0xff]
        %v535 = vld [vmem:[%s386 + $0x50] sm:$0xff]
        %v536 = vld [vmem:[%s386 + $0x58] sm:$0xff]
        %v537 = vld [vmem:[%s386 + $0x60] sm:$0xff]
        %v538 = vld [vmem:[%s386 + $0x68] sm:$0xff]
        %v539 = vld [vmem:[%s386 + $0x70] sm:$0xff]
        %v540 = vld [vmem:[%s386 + $0x78] sm:$0xff]
        %v542 = vshrl.u32 %v525, 16
        %v544 = vrot.slane %v542, 7
        %v545 = vshll.u32 %v525, 16
        %v547 = vor.u32 %v544, %v545
        %v549 = vshrl.u32 %v526, 16
        %v551 = vrot.slane %v549, 7
        %v552 = vshll.u32 %v526, 16
        %v554 = vor.u32 %v551, %v552
        %v555 = vrot.slane %v544, 4
        %v556 = vrot.slane %v551, 4
        %v558 = vshrl.u32 %v527, 16
        %v560 = vrot.slane %v558, 7
        %v561 = vshll.u32 %v527, 16
        %v563 = vor.u32 %v560, %v561
        %v565 = vshrl.u32 %v528, 16
        %v567 = vrot.slane %v565, 7
        %v568 = vshll.u32 %v528, 16
        %v570 = vor.u32 %v567, %v568
        %v571 = vrot.slane %v560, 4
        %v572 = vrot.slane %v567, 4
        %v574 = vshrl.u32 %v529, 16
        %v576 = vrot.slane %v574, 7
        %v577 = vshll.u32 %v529, 16
        %v579 = vor.u32 %v576, %v577
        %v581 = vshrl.u32 %v530, 16
        %v583 = vrot.slane %v581, 7
        %v584 = vshll.u32 %v530, 16
        %v586 = vor.u32 %v583, %v584
        %v587 = vrot.slane %v576, 4
        %v588 = vrot.slane %v583, 4
        %v590 = vshrl.u32 %v531, 16
        %v592 = vrot.slane %v590, 7
        %v593 = vshll.u32 %v531, 16
        %v595 = vor.u32 %v592, %v593
        %v597 = vshrl.u32 %v532, 16
        %v599 = vrot.slane %v597, 7
        %v600 = vshll.u32 %v532, 16
        %v602 = vor.u32 %v599, %v600
        %v603 = vrot.slane %v592, 4
        %v604 = vrot.slane %v599, 4
        %v606 = vshrl.u32 %v533, 16
        %v608 = vrot.slane %v606, 7
        %v609 = vshll.u32 %v533, 16
        %v611 = vor.u32 %v608, %v609
        %v613 = vshrl.u32 %v534, 16
        %v615 = vrot.slane %v613, 7
        %v616 = vshll.u32 %v534, 16
        %v618 = vor.u32 %v615, %v616
        %v619 = vrot.slane %v608, 4
        %v620 = vrot.slane %v615, 4
        %v622 = vshrl.u32 %v535, 16
        %v624 = vrot.slane %v622, 7
        %v625 = vshll.u32 %v535, 16
        %v627 = vor.u32 %v624, %v625
        %v629 = vshrl.u32 %v536, 16
        %v631 = vrot.slane %v629, 7
        %v632 = vshll.u32 %v536, 16
        %v634 = vor.u32 %v631, %v632
        %v635 = vrot.slane %v624, 4
        %v636 = vrot.slane %v631, 4
        %v638 = vshrl.u32 %v537, 16
        %v640 = vrot.slane %v638, 7
        %v641 = vshll.u32 %v537, 16
        %v643 = vor.u32 %v640, %v641
        %v645 = vshrl.u32 %v538, 16
        %v647 = vrot.slane %v645, 7
        %v648 = vshll.u32 %v538, 16
        %v650 = vor.u32 %v647, %v648
        %v651 = vrot.slane %v640, 4
        %v652 = vrot.slane %v647, 4
        %v654 = vshrl.u32 %v539, 16
        %v656 = vrot.slane %v654, 7
        %v657 = vshll.u32 %v539, 16
        %v659 = vor.u32 %v656, %v657
        %v661 = vshrl.u32 %v540, 16
        %v663 = vrot.slane %v661, 7
        %v664 = vshll.u32 %v540, 16
        %v666 = vor.u32 %v663, %v664
        %v667 = vrot.slane %v656, 4
        %v668 = vrot.slane %v663, 4
        %s701 = scalar_lea.vmem [#allocation2], 32
        %vm702 = vcmask 1043456
        %vm703 = vsmask.f32 7938
        %vm704 = vmand %vm702, %vm703
        %vm705 = vcmask 1047556
        %vm706 = vsmask.f32 7954
        %vm707 = vmand %vm705, %vm706
        %vm708 = vmor %vm707, %vm704
        %v709 = vld [vmem:[%s701] sm:$0xff]
        %v710 = vsel %vm708, %v547, %v709
        %711 = vst [vmem:[%s701] sm:$0xff] %v710
        %v712 = vld [vmem:[%s701 + $0x8] sm:$0xff]
        %v713 = vsel %vm708, %v554, %v712
        %714 = vst [vmem:[%s701 + $0x8] sm:$0xff] %v713
        %v715 = vld [vmem:[%s701 + $0x10] sm:$0x11]
        %v716 = vsel %vm470, %v555, %v715
        %717 = vst [vmem:[%s701 + $0x10] sm:$0x11] %v716
        %v718 = vld [vmem:[%s701 + $0x18] sm:$0x11]
        %v719 = vsel %vm470, %v556, %v718
        %720 = vst [vmem:[%s701 + $0x18] sm:$0x11] %v719
        %v721 = vld [vmem:[%s701 + $0x20] sm:$0xff]
        %v722 = vsel %vm708, %v563, %v721
        %723 = vst [vmem:[%s701 + $0x20] sm:$0xff] %v722
        %v724 = vld [vmem:[%s701 + $0x28] sm:$0xff]
        %v725 = vsel %vm708, %v570, %v724
        %726 = vst [vmem:[%s701 + $0x28] sm:$0xff] %v725
        %v727 = vld [vmem:[%s701 + $0x30] sm:$0x11]
        %v728 = vsel %vm470, %v571, %v727
        %729 = vst [vmem:[%s701 + $0x30] sm:$0x11] %v728
        %v730 = vld [vmem:[%s701 + $0x38] sm:$0x11]
        %v731 = vsel %vm470, %v572, %v730
        %732 = vst [vmem:[%s701 + $0x38] sm:$0x11] %v731
        %v733 = vld [vmem:[%s701 + $0x40] sm:$0xff]
        %v734 = vsel %vm708, %v579, %v733
        %735 = vst [vmem:[%s701 + $0x40] sm:$0xff] %v734
        %v736 = vld [vmem:[%s701 + $0x48] sm:$0xff]
        %v737 = vsel %vm708, %v586, %v736
        %738 = vst [vmem:[%s701 + $0x48] sm:$0xff] %v737
        %v739 = vld [vmem:[%s701 + $0x50] sm:$0x11]
        %v740 = vsel %vm470, %v587, %v739
        %741 = vst [vmem:[%s701 + $0x50] sm:$0x11] %v740
        %v742 = vld [vmem:[%s701 + $0x58] sm:$0x11]
        %v743 = vsel %vm470, %v588, %v742
        %744 = vst [vmem:[%s701 + $0x58] sm:$0x11] %v743
        %v745 = vld [vmem:[%s701 + $0x60] sm:$0xff]
        %v746 = vsel %vm708, %v595, %v745
        %747 = vst [vmem:[%s701 + $0x60] sm:$0xff] %v746
        %v748 = vld [vmem:[%s701 + $0x68] sm:$0xff]
        %v749 = vsel %vm708, %v602, %v748
        %750 = vst [vmem:[%s701 + $0x68] sm:$0xff] %v749
        %v751 = vld [vmem:[%s701 + $0x70] sm:$0x11]
        %v752 = vsel %vm470, %v603, %v751
        %753 = vst [vmem:[%s701 + $0x70] sm:$0x11] %v752
        %v754 = vld [vmem:[%s701 + $0x78] sm:$0x11]
        %v755 = vsel %vm470, %v604, %v754
        %756 = vst [vmem:[%s701 + $0x78] sm:$0x11] %v755
        %v757 = vld [vmem:[%s701 + $0x80] sm:$0xff]
        %v758 = vsel %vm708, %v611, %v757
        %759 = vst [vmem:[%s701 + $0x80] sm:$0xff] %v758
        %v760 = vld [vmem:[%s701 + $0x88] sm:$0xff]
        %v761 = vsel %vm708, %v618, %v760
        %762 = vst [vmem:[%s701 + $0x88] sm:$0xff] %v761
        %v763 = vld [vmem:[%s701 + $0x90] sm:$0x11]
        %v764 = vsel %vm470, %v619, %v763
        %765 = vst [vmem:[%s701 + $0x90] sm:$0x11] %v764
        %v766 = vld [vmem:[%s701 + $0x98] sm:$0x11]
        %v767 = vsel %vm470, %v620, %v766
        %768 = vst [vmem:[%s701 + $0x98] sm:$0x11] %v767
        %v769 = vld [vmem:[%s701 + $0xa0] sm:$0xff]
        %v770 = vsel %vm708, %v627, %v769
        %771 = vst [vmem:[%s701 + $0xa0] sm:$0xff] %v770
        %v772 = vld [vmem:[%s701 + $0xa8] sm:$0xff]
        %v773 = vsel %vm708, %v634, %v772
        %774 = vst [vmem:[%s701 + $0xa8] sm:$0xff] %v773
        %v775 = vld [vmem:[%s701 + $0xb0] sm:$0x11]
        %v776 = vsel %vm470, %v635, %v775
        %777 = vst [vmem:[%s701 + $0xb0] sm:$0x11] %v776
        %v778 = vld [vmem:[%s701 + $0xb8] sm:$0x11]
        %v779 = vsel %vm470, %v636, %v778
        %780 = vst [vmem:[%s701 + $0xb8] sm:$0x11] %v779
        %v781 = vld [vmem:[%s701 + $0xc0] sm:$0xff]
        %v782 = vsel %vm708, %v643, %v781
        %783 = vst [vmem:[%s701 + $0xc0] sm:$0xff] %v782
        %v784 = vld [vmem:[%s701 + $0xc8] sm:$0xff]
        %v785 = vsel %vm708, %v650, %v784
        %786 = vst [vmem:[%s701 + $0xc8] sm:$0xff] %v785
        %v787 = vld [vmem:[%s701 + $0xd0] sm:$0x11]
        %v788 = vsel %vm470, %v651, %v787
        %789 = vst [vmem:[%s701 + $0xd0] sm:$0x11] %v788
        %v790 = vld [vmem:[%s701 + $0xd8] sm:$0x11]
        %v791 = vsel %vm470, %v652, %v790
        %792 = vst [vmem:[%s701 + $0xd8] sm:$0x11] %v791
        %v793 = vld [vmem:[%s701 + $0xe0] sm:$0xff]
        %v794 = vsel %vm708, %v659, %v793
        %795 = vst [vmem:[%s701 + $0xe0] sm:$0xff] %v794
        %v796 = vld [vmem:[%s701 + $0xe8] sm:$0xff]
        %v797 = vsel %vm708, %v666, %v796
        %798 = vst [vmem:[%s701 + $0xe8] sm:$0xff] %v797
        %v799 = vld [vmem:[%s701 + $0xf0] sm:$0x11]
        %v800 = vsel %vm470, %v667, %v799
        %801 = vst [vmem:[%s701 + $0xf0] sm:$0x11] %v800
        %v802 = vld [vmem:[%s701 + $0xf8] sm:$0x11]
        %v803 = vsel %vm470, %v668, %v802
        %804 = vst [vmem:[%s701 + $0xf8] sm:$0x11] %v803
        %p805 = scmp.gt.s32.totalorder %s41, 0
        // Predicated region
        $region57: #{tpu_custom_call.1} parent=39 // pred_check
          %p806 = pneg %p805
        $region58: #{tpu_custom_call.1} parent=39 // pred_check_branch
          %808 = sbr.rel (%p806) target = $region60
        $region59: #{tpu_custom_call.1} parent=39 // pred_region
          %v809 = vld [vmem:[%s395] sm:$0xff]
          %v810 = vld [vmem:[%s395 + $0x8] sm:$0xff]
          %v812 = vshrl.u32 %v809, 16
          %v814 = vrot.slane %v812, 7
          %v815 = vshll.u32 %v809, 16
          %v817 = vor.u32 %v814, %v815
          %v819 = vshrl.u32 %v810, 16
          %v821 = vrot.slane %v819, 7
          %v822 = vshll.u32 %v810, 16
          %v824 = vor.u32 %v821, %v822
          %v825 = vrot.slane %v814, 4
          %v826 = vrot.slane %v821, 4
          %v831 = vld [vmem:[#allocation2] sm:$0xff]
          %v832 = vsel %vm708, %v817, %v831
          %833 = vst [vmem:[#allocation2] sm:$0xff] %v832
          %v834 = vld [vmem:[#allocation2 + $0x8] sm:$0xff]
          %v835 = vsel %vm708, %v824, %v834
          %836 = vst [vmem:[#allocation2 + $0x8] sm:$0xff] %v835
          %v837 = vld [vmem:[#allocation2 + $0x10] sm:$0x11]
          %v838 = vsel %vm470, %v825, %v837
          %839 = vst [vmem:[#allocation2 + $0x10] sm:$0x11] %v838
          %v840 = vld [vmem:[#allocation2 + $0x18] sm:$0x11]
          %v841 = vsel %vm470, %v826, %v840
          %842 = vst [vmem:[#allocation2 + $0x18] sm:$0x11] %v841
        $region60: #{tpu_custom_call.1} parent=39 // pred_fallthru
          _
        %p843 = scmp.eq.s32.totalorder %s41, 0
        // Predicated region
        $region61: #{tpu_custom_call.1} parent=39 // pred_check
          %p844 = pneg %p843
        $region62: #{tpu_custom_call.1} parent=39 // pred_check_branch
          %846 = sbr.rel (%p844) target = $region64
        $region63: #{tpu_custom_call.1} parent=39 // pred_region
          %v847 = vld [vmem:[#allocation2] sm:$0xff]
          %v848 = vsel %vm708, 0, %v847
          %849 = vst [vmem:[#allocation2] sm:$0xff] %v848
          %v850 = vld [vmem:[#allocation2 + $0x8] sm:$0xff]
          %v851 = vsel %vm708, 0, %v850
          %852 = vst [vmem:[#allocation2 + $0x8] sm:$0xff] %v851
          %v853 = vld [vmem:[#allocation2 + $0x10] sm:$0x11]
          %v854 = vsel %vm470, 0, %v853
          %855 = vst [vmem:[#allocation2 + $0x10] sm:$0x11] %v854
          %v856 = vld [vmem:[#allocation2 + $0x18] sm:$0x11]
          %v857 = vsel %vm470, 0, %v856
          %858 = vst [vmem:[#allocation2 + $0x18] sm:$0x11] %v857
        $region64: #{tpu_custom_call.1} parent=39 // pred_fallthru
          _
        %v859 = vld [vmem:[#allocation2] sm:$0xff]
        %v860 = vld [vmem:[#allocation2 + $0x8] sm:$0xff]
        %v861 = vld [vmem:[#allocation2 + $0x20] sm:$0xff]
        %v862 = vld [vmem:[#allocation2 + $0x28] sm:$0xff]
        %v863 = vld [vmem:[#allocation2 + $0x40] sm:$0xff]
        %v864 = vld [vmem:[#allocation2 + $0x48] sm:$0xff]
        %v865 = vld [vmem:[#allocation2 + $0x60] sm:$0xff]
        %v866 = vld [vmem:[#allocation2 + $0x68] sm:$0xff]
        %v867 = vld [vmem:[#allocation2 + $0x80] sm:$0xff]
        %v868 = vld [vmem:[#allocation2 + $0x88] sm:$0xff]
        %v869 = vld [vmem:[#allocation2 + $0xa0] sm:$0xff]
        %v870 = vld [vmem:[#allocation2 + $0xa8] sm:$0xff]
        %v871 = vld [vmem:[#allocation2 + $0xc0] sm:$0xff]
        %v872 = vld [vmem:[#allocation2 + $0xc8] sm:$0xff]
        %v873 = vld [vmem:[#allocation2 + $0xe0] sm:$0xff]
        %v874 = vld [vmem:[#allocation2 + $0xe8] sm:$0xff]
        %v875 = vld [vmem:[#allocation2 + $0x10] sm:$0x11]
        %v876 = vld [vmem:[#allocation2 + $0x18] sm:$0x11]
        %v877 = vld [vmem:[#allocation2 + $0x30] sm:$0x11]
        %v878 = vld [vmem:[#allocation2 + $0x38] sm:$0x11]
        %v879 = vld [vmem:[#allocation2 + $0x50] sm:$0x11]
        %v880 = vld [vmem:[#allocation2 + $0x58] sm:$0x11]
        %v881 = vld [vmem:[#allocation2 + $0x70] sm:$0x11]
        %v882 = vld [vmem:[#allocation2 + $0x78] sm:$0x11]
        %v883 = vld [vmem:[#allocation2 + $0x90] sm:$0x11]
        %v884 = vld [vmem:[#allocation2 + $0x98] sm:$0x11]
        %v885 = vld [vmem:[#allocation2 + $0xb0] sm:$0x11]
        %v886 = vld [vmem:[#allocation2 + $0xb8] sm:$0x11]
        %v887 = vld [vmem:[#allocation2 + $0xd0] sm:$0x11]
        %v888 = vld [vmem:[#allocation2 + $0xd8] sm:$0x11]
        %v889 = vld [vmem:[#allocation2 + $0xf0] sm:$0x11]
        %v890 = vld [vmem:[#allocation2 + $0xf8] sm:$0x11]
        %v907 = vunpack.c.l.b16 %v859
        %v908 = vunpack.c.h.b16 %v859
        %v909 = vunpack.c.l.b16 %v860
        %v910 = vunpack.c.h.b16 %v860
        %v911 = vunpack.c.l.b16 %v861
        %v912 = vunpack.c.h.b16 %v861
        %v913 = vunpack.c.l.b16 %v862
        %v914 = vunpack.c.h.b16 %v862
        %v915 = vunpack.c.l.b16 %v863
        %v916 = vunpack.c.h.b16 %v863
        %v917 = vunpack.c.l.b16 %v864
        %v918 = vunpack.c.h.b16 %v864
        %v919 = vunpack.c.l.b16 %v865
        %v920 = vunpack.c.h.b16 %v865
        %v921 = vunpack.c.l.b16 %v866
        %v922 = vunpack.c.h.b16 %v866
        %v923 = vunpack.c.l.b16 %v867
        %v924 = vunpack.c.h.b16 %v867
        %v925 = vunpack.c.l.b16 %v868
        %v926 = vunpack.c.h.b16 %v868
        %v927 = vunpack.c.l.b16 %v869
        %v928 = vunpack.c.h.b16 %v869
        %v929 = vunpack.c.l.b16 %v870
        %v930 = vunpack.c.h.b16 %v870
        %v931 = vunpack.c.l.b16 %v871
        %v932 = vunpack.c.h.b16 %v871
        %v933 = vunpack.c.l.b16 %v872
        %v934 = vunpack.c.h.b16 %v872
        %v935 = vunpack.c.l.b16 %v873
        %v936 = vunpack.c.h.b16 %v873
        %v937 = vunpack.c.l.b16 %v874
        %v938 = vunpack.c.h.b16 %v874
        %v955 = vunpack.c.l.b16 %v875
        %v956 = vunpack.c.h.b16 %v875
        %v957 = vunpack.c.l.b16 %v876
        %v958 = vunpack.c.h.b16 %v876
        %v959 = vunpack.c.l.b16 %v877
        %v960 = vunpack.c.h.b16 %v877
        %v961 = vunpack.c.l.b16 %v878
        %v962 = vunpack.c.h.b16 %v878
        %v963 = vunpack.c.l.b16 %v879
        %v964 = vunpack.c.h.b16 %v879
        %v965 = vunpack.c.l.b16 %v880
        %v966 = vunpack.c.h.b16 %v880
        %v967 = vunpack.c.l.b16 %v881
        %v968 = vunpack.c.h.b16 %v881
        %v969 = vunpack.c.l.b16 %v882
        %v970 = vunpack.c.h.b16 %v882
        %v971 = vunpack.c.l.b16 %v883
        %v972 = vunpack.c.h.b16 %v883
        %v973 = vunpack.c.l.b16 %v884
        %v974 = vunpack.c.h.b16 %v884
        %v975 = vunpack.c.l.b16 %v885
        %v976 = vunpack.c.h.b16 %v885
        %v977 = vunpack.c.l.b16 %v886
        %v978 = vunpack.c.h.b16 %v886
        %v979 = vunpack.c.l.b16 %v887
        %v980 = vunpack.c.h.b16 %v887
        %v981 = vunpack.c.l.b16 %v888
        %v982 = vunpack.c.h.b16 %v888
        %v983 = vunpack.c.l.b16 %v889
        %v984 = vunpack.c.h.b16 %v889
        %v985 = vunpack.c.l.b16 %v890
        %v986 = vunpack.c.h.b16 %v890
        %v987 = vpack.c.b16 %v955, %v907
        %v988 = vpack.c.b16 %v956, %v908
        %v989 = vpack.c.b16 %v957, %v909
        %v990 = vpack.c.b16 %v958, %v910
        %v991 = vpack.c.b16 %v959, %v911
        %v992 = vpack.c.b16 %v960, %v912
        %v993 = vpack.c.b16 %v961, %v913
        %v994 = vpack.c.b16 %v962, %v914
        %v995 = vpack.c.b16 %v963, %v915
        %v996 = vpack.c.b16 %v964, %v916
        %v997 = vpack.c.b16 %v965, %v917
        %v998 = vpack.c.b16 %v966, %v918
        %v999 = vpack.c.b16 %v967, %v919
        %v1000 = vpack.c.b16 %v968, %v920
        %v1001 = vpack.c.b16 %v969, %v921
        %v1002 = vpack.c.b16 %v970, %v922
        %v1003 = vpack.c.b16 %v971, %v923
        %v1004 = vpack.c.b16 %v972, %v924
        %v1005 = vpack.c.b16 %v973, %v925
        %v1006 = vpack.c.b16 %v974, %v926
        %v1007 = vpack.c.b16 %v975, %v927
        %v1008 = vpack.c.b16 %v976, %v928
        %v1009 = vpack.c.b16 %v977, %v929
        %v1010 = vpack.c.b16 %v978, %v930
        %v1011 = vpack.c.b16 %v979, %v931
        %v1012 = vpack.c.b16 %v980, %v932
        %v1013 = vpack.c.b16 %v981, %v933
        %v1014 = vpack.c.b16 %v982, %v934
        %v1015 = vpack.c.b16 %v983, %v935
        %v1016 = vpack.c.b16 %v984, %v936
        %v1017 = vpack.c.b16 %v985, %v937
        %v1018 = vpack.c.b16 %v986, %v938
        %v1020 = vshrl.u32 %v987, 16
        %v1022 = vshll.u32 %v987, 16
        %v1024 = vrot.slane %v1022, 1
        %v1025 = vor.u32 %v1020, %v1024
        %v1027 = vshrl.u32 %v988, 16
        %v1029 = vshll.u32 %v988, 16
        %v1031 = vrot.slane %v1029, 1
        %v1032 = vor.u32 %v1027, %v1031
        %v1034 = vshrl.u32 %v989, 16
        %v1036 = vshll.u32 %v989, 16
        %v1038 = vrot.slane %v1036, 1
        %v1039 = vor.u32 %v1034, %v1038
        %v1041 = vshrl.u32 %v990, 16
        %v1043 = vshll.u32 %v990, 16
        %v1045 = vrot.slane %v1043, 1
        %v1046 = vor.u32 %v1041, %v1045
        %v1048 = vshrl.u32 %v991, 16
        %v1050 = vshll.u32 %v991, 16
        %v1052 = vrot.slane %v1050, 1
        %v1053 = vor.u32 %v1048, %v1052
        %v1055 = vshrl.u32 %v992, 16
        %v1057 = vshll.u32 %v992, 16
        %v1059 = vrot.slane %v1057, 1
        %v1060 = vor.u32 %v1055, %v1059
        %v1062 = vshrl.u32 %v993, 16
        %v1064 = vshll.u32 %v993, 16
        %v1066 = vrot.slane %v1064, 1
        %v1067 = vor.u32 %v1062, %v1066
        %v1069 = vshrl.u32 %v994, 16
        %v1071 = vshll.u32 %v994, 16
        %v1073 = vrot.slane %v1071, 1
        %v1074 = vor.u32 %v1069, %v1073
        %v1076 = vshrl.u32 %v995, 16
        %v1078 = vshll.u32 %v995, 16
        %v1080 = vrot.slane %v1078, 1
        %v1081 = vor.u32 %v1076, %v1080
        %v1083 = vshrl.u32 %v996, 16
        %v1085 = vshll.u32 %v996, 16
        %v1087 = vrot.slane %v1085, 1
        %v1088 = vor.u32 %v1083, %v1087
        %v1090 = vshrl.u32 %v997, 16
        %v1092 = vshll.u32 %v997, 16
        %v1094 = vrot.slane %v1092, 1
        %v1095 = vor.u32 %v1090, %v1094
        %v1097 = vshrl.u32 %v998, 16
        %v1099 = vshll.u32 %v998, 16
        %v1101 = vrot.slane %v1099, 1
        %v1102 = vor.u32 %v1097, %v1101
        %v1104 = vshrl.u32 %v999, 16
        %v1106 = vshll.u32 %v999, 16
        %v1108 = vrot.slane %v1106, 1
        %v1109 = vor.u32 %v1104, %v1108
        %v1111 = vshrl.u32 %v1000, 16
        %v1113 = vshll.u32 %v1000, 16
        %v1115 = vrot.slane %v1113, 1
        %v1116 = vor.u32 %v1111, %v1115
        %v1118 = vshrl.u32 %v1001, 16
        %v1120 = vshll.u32 %v1001, 16
        %v1122 = vrot.slane %v1120, 1
        %v1123 = vor.u32 %v1118, %v1122
        %v1125 = vshrl.u32 %v1002, 16
        %v1127 = vshll.u32 %v1002, 16
        %v1129 = vrot.slane %v1127, 1
        %v1130 = vor.u32 %v1125, %v1129
        %v1132 = vshrl.u32 %v1003, 16
        %v1134 = vshll.u32 %v1003, 16
        %v1136 = vrot.slane %v1134, 1
        %v1137 = vor.u32 %v1132, %v1136
        %v1139 = vshrl.u32 %v1004, 16
        %v1141 = vshll.u32 %v1004, 16
        %v1143 = vrot.slane %v1141, 1
        %v1144 = vor.u32 %v1139, %v1143
        %v1146 = vshrl.u32 %v1005, 16
        %v1148 = vshll.u32 %v1005, 16
        %v1150 = vrot.slane %v1148, 1
        %v1151 = vor.u32 %v1146, %v1150
        %v1153 = vshrl.u32 %v1006, 16
        %v1155 = vshll.u32 %v1006, 16
        %v1157 = vrot.slane %v1155, 1
        %v1158 = vor.u32 %v1153, %v1157
        %v1160 = vshrl.u32 %v1007, 16
        %v1162 = vshll.u32 %v1007, 16
        %v1164 = vrot.slane %v1162, 1
        %v1165 = vor.u32 %v1160, %v1164
        %v1167 = vshrl.u32 %v1008, 16
        %v1169 = vshll.u32 %v1008, 16
        %v1171 = vrot.slane %v1169, 1
        %v1172 = vor.u32 %v1167, %v1171
        %v1174 = vshrl.u32 %v1009, 16
        %v1176 = vshll.u32 %v1009, 16
        %v1178 = vrot.slane %v1176, 1
        %v1179 = vor.u32 %v1174, %v1178
        %v1181 = vshrl.u32 %v1010, 16
        %v1183 = vshll.u32 %v1010, 16
        %v1185 = vrot.slane %v1183, 1
        %v1186 = vor.u32 %v1181, %v1185
        %v1188 = vshrl.u32 %v1011, 16
        %v1190 = vshll.u32 %v1011, 16
        %v1192 = vrot.slane %v1190, 1
        %v1193 = vor.u32 %v1188, %v1192
        %v1195 = vshrl.u32 %v1012, 16
        %v1197 = vshll.u32 %v1012, 16
        %v1199 = vrot.slane %v1197, 1
        %v1200 = vor.u32 %v1195, %v1199
        %v1202 = vshrl.u32 %v1013, 16
        %v1204 = vshll.u32 %v1013, 16
        %v1206 = vrot.slane %v1204, 1
        %v1207 = vor.u32 %v1202, %v1206
        %v1209 = vshrl.u32 %v1014, 16
        %v1211 = vshll.u32 %v1014, 16
        %v1213 = vrot.slane %v1211, 1
        %v1214 = vor.u32 %v1209, %v1213
        %v1216 = vshrl.u32 %v1015, 16
        %v1218 = vshll.u32 %v1015, 16
        %v1220 = vrot.slane %v1218, 1
        %v1221 = vor.u32 %v1216, %v1220
        %v1223 = vshrl.u32 %v1016, 16
        %v1225 = vshll.u32 %v1016, 16
        %v1227 = vrot.slane %v1225, 1
        %v1228 = vor.u32 %v1223, %v1227
        %v1230 = vshrl.u32 %v1017, 16
        %v1232 = vshll.u32 %v1017, 16
        %v1234 = vrot.slane %v1232, 1
        %v1235 = vor.u32 %v1230, %v1234
        %v1237 = vshrl.u32 %v1018, 16
        %v1239 = vshll.u32 %v1018, 16
        %v1241 = vrot.slane %v1239, 1
        %v1242 = vor.u32 %v1237, %v1241
        %v1243 = vunpack.c.l.b16 %v1025
        %v1244 = vunpack.c.l.b16 %v1032
        %v1245 = vunpack.c.l.b16 %v1039
        %v1246 = vunpack.c.l.b16 %v1046
        %v1247 = vunpack.c.l.b16 %v1053
        %v1248 = vunpack.c.l.b16 %v1060
        %v1249 = vunpack.c.l.b16 %v1067
        %v1250 = vunpack.c.l.b16 %v1074
        %v1251 = vunpack.c.l.b16 %v1081
        %v1252 = vunpack.c.l.b16 %v1088
        %v1253 = vunpack.c.l.b16 %v1095
        %v1254 = vunpack.c.l.b16 %v1102
        %v1255 = vunpack.c.l.b16 %v1109
        %v1256 = vunpack.c.l.b16 %v1116
        %v1257 = vunpack.c.l.b16 %v1123
        %v1258 = vunpack.c.l.b16 %v1130
        %v1259 = vunpack.c.l.b16 %v1137
        %v1260 = vunpack.c.l.b16 %v1144
        %v1261 = vunpack.c.l.b16 %v1151
        %v1262 = vunpack.c.l.b16 %v1158
        %v1263 = vunpack.c.l.b16 %v1165
        %v1264 = vunpack.c.l.b16 %v1172
        %v1265 = vunpack.c.l.b16 %v1179
        %v1266 = vunpack.c.l.b16 %v1186
        %v1267 = vunpack.c.l.b16 %v1193
        %v1268 = vunpack.c.l.b16 %v1200
        %v1269 = vunpack.c.l.b16 %v1207
        %v1270 = vunpack.c.l.b16 %v1214
        %v1271 = vunpack.c.l.b16 %v1221
        %v1272 = vunpack.c.l.b16 %v1228
        %v1273 = vunpack.c.l.b16 %v1235
        %v1274 = vunpack.c.l.b16 %v1242
        %v1275 = vld [vmem:[#allocation8] sm:$0xf]
        %v1276 = vld [vmem:[#allocation8 + $0x4] sm:$0xf]
        %v1277 = vld [vmem:[#allocation8 + $0x8] sm:$0xf]
        %v1278 = vld [vmem:[#allocation8 + $0xc] sm:$0xf]
        %v1279 = vld [vmem:[#allocation8 + $0x10] sm:$0xf]
        %v1280 = vld [vmem:[#allocation8 + $0x14] sm:$0xf]
        %v1281 = vld [vmem:[#allocation8 + $0x18] sm:$0xf]
        %v1282 = vld [vmem:[#allocation8 + $0x1c] sm:$0xf]
        %v1283 = vld [vmem:[#allocation8 + $0x20] sm:$0xf]
        %v1284 = vld [vmem:[#allocation8 + $0x24] sm:$0xf]
        %v1285 = vld [vmem:[#allocation8 + $0x28] sm:$0xf]
        %v1286 = vld [vmem:[#allocation8 + $0x2c] sm:$0xf]
        %v1287 = vld [vmem:[#allocation8 + $0x30] sm:$0xf]
        %v1288 = vld [vmem:[#allocation8 + $0x34] sm:$0xf]
        %v1289 = vld [vmem:[#allocation8 + $0x38] sm:$0xf]
        %v1290 = vld [vmem:[#allocation8 + $0x3c] sm:$0xf]
        %v1291 = vld [vmem:[#allocation8 + $0x40] sm:$0xf]
        %v1292 = vld [vmem:[#allocation8 + $0x44] sm:$0xf]
        %v1293 = vld [vmem:[#allocation8 + $0x48] sm:$0xf]
        %v1294 = vld [vmem:[#allocation8 + $0x4c] sm:$0xf]
        %v1295 = vld [vmem:[#allocation8 + $0x50] sm:$0xf]
        %v1296 = vld [vmem:[#allocation8 + $0x54] sm:$0xf]
        %v1297 = vld [vmem:[#allocation8 + $0x58] sm:$0xf]
        %v1298 = vld [vmem:[#allocation8 + $0x5c] sm:$0xf]
        %v1299 = vld [vmem:[#allocation8 + $0x60] sm:$0xf]
        %v1300 = vld [vmem:[#allocation8 + $0x64] sm:$0xf]
        %v1301 = vld [vmem:[#allocation8 + $0x68] sm:$0xf]
        %v1302 = vld [vmem:[#allocation8 + $0x6c] sm:$0xf]
        %v1303 = vld [vmem:[#allocation8 + $0x70] sm:$0xf]
        %v1304 = vld [vmem:[#allocation8 + $0x74] sm:$0xf]
        %v1305 = vld [vmem:[#allocation8 + $0x78] sm:$0xf]
        %v1306 = vld [vmem:[#allocation8 + $0x7c] sm:$0xf]
        %v1307 = vld [vmem:[#allocation8 + $0x80] sm:$0xf]
        %v1308 = vld [vmem:[#allocation8 + $0x84] sm:$0xf]
        %v1309 = vld [vmem:[#allocation8 + $0x88] sm:$0xf]
        %v1310 = vld [vmem:[#allocation8 + $0x8c] sm:$0xf]
        %v1311 = vld [vmem:[#allocation8 + $0x90] sm:$0xf]
        %v1312 = vld [vmem:[#allocation8 + $0x94] sm:$0xf]
        %v1313 = vld [vmem:[#allocation8 + $0x98] sm:$0xf]
        %v1314 = vld [vmem:[#allocation8 + $0x9c] sm:$0xf]
        %v1315 = vld [vmem:[#allocation8 + $0xa0] sm:$0xf]
        %v1316 = vld [vmem:[#allocation8 + $0xa4] sm:$0xf]
        %v1317 = vld [vmem:[#allocation8 + $0xa8] sm:$0xf]
        %v1318 = vld [vmem:[#allocation8 + $0xac] sm:$0xf]
        %v1319 = vld [vmem:[#allocation8 + $0xb0] sm:$0xf]
        %v1320 = vld [vmem:[#allocation8 + $0xb4] sm:$0xf]
        %v1321 = vld [vmem:[#allocation8 + $0xb8] sm:$0xf]
        %v1322 = vld [vmem:[#allocation8 + $0xbc] sm:$0xf]
        %v1323 = vld [vmem:[#allocation8 + $0xc0] sm:$0xf]
        %v1324 = vld [vmem:[#allocation8 + $0xc4] sm:$0xf]
        %v1325 = vld [vmem:[#allocation8 + $0xc8] sm:$0xf]
        %v1326 = vld [vmem:[#allocation8 + $0xcc] sm:$0xf]
        %v1327 = vld [vmem:[#allocation8 + $0xd0] sm:$0xf]
        %v1328 = vld [vmem:[#allocation8 + $0xd4] sm:$0xf]
        %v1329 = vld [vmem:[#allocation8 + $0xd8] sm:$0xf]
        %v1330 = vld [vmem:[#allocation8 + $0xdc] sm:$0xf]
        %v1331 = vld [vmem:[#allocation8 + $0xe0] sm:$0xf]
        %v1332 = vld [vmem:[#allocation8 + $0xe4] sm:$0xf]
        %v1333 = vld [vmem:[#allocation8 + $0xe8] sm:$0xf]
        %v1334 = vld [vmem:[#allocation8 + $0xec] sm:$0xf]
        %v1335 = vld [vmem:[#allocation8 + $0xf0] sm:$0xf]
        %v1336 = vld [vmem:[#allocation8 + $0xf4] sm:$0xf]
        %v1337 = vld [vmem:[#allocation8 + $0xf8] sm:$0xf]
        %v1338 = vld [vmem:[#allocation8 + $0xfc] sm:$0xf]
        %v1339 = vld [vmem:[#allocation8 + $0x100] sm:$0xf]
        %v1340 = vld [vmem:[#allocation8 + $0x104] sm:$0xf]
        %v1341 = vld [vmem:[#allocation8 + $0x108] sm:$0xf]
        %v1342 = vld [vmem:[#allocation8 + $0x10c] sm:$0xf]
        %v1343 = vld [vmem:[#allocation8 + $0x110] sm:$0xf]
        %v1344 = vld [vmem:[#allocation8 + $0x114] sm:$0xf]
        %v1345 = vld [vmem:[#allocation8 + $0x118] sm:$0xf]
        %v1346 = vld [vmem:[#allocation8 + $0x11c] sm:$0xf]
        %v1347 = vld [vmem:[#allocation8 + $0x120] sm:$0xf]
        %v1348 = vld [vmem:[#allocation8 + $0x124] sm:$0xf]
        %v1349 = vld [vmem:[#allocation8 + $0x128] sm:$0xf]
        %v1350 = vld [vmem:[#allocation8 + $0x12c] sm:$0xf]
        %v1351 = vld [vmem:[#allocation8 + $0x130] sm:$0xf]
        %v1352 = vld [vmem:[#allocation8 + $0x134] sm:$0xf]
        %v1353 = vld [vmem:[#allocation8 + $0x138] sm:$0xf]
        %v1354 = vld [vmem:[#allocation8 + $0x13c] sm:$0xf]
        %v1355 = vld [vmem:[#allocation8 + $0x140] sm:$0xf]
        %v1356 = vld [vmem:[#allocation8 + $0x144] sm:$0xf]
        %v1357 = vld [vmem:[#allocation8 + $0x148] sm:$0xf]
        %v1358 = vld [vmem:[#allocation8 + $0x14c] sm:$0xf]
        %v1359 = vld [vmem:[#allocation8 + $0x150] sm:$0xf]
        %v1360 = vld [vmem:[#allocation8 + $0x154] sm:$0xf]
        %v1361 = vld [vmem:[#allocation8 + $0x158] sm:$0xf]
        %v1362 = vld [vmem:[#allocation8 + $0x15c] sm:$0xf]
        %v1363 = vld [vmem:[#allocation8 + $0x160] sm:$0xf]
        %v1364 = vld [vmem:[#allocation8 + $0x164] sm:$0xf]
        %v1365 = vld [vmem:[#allocation8 + $0x168] sm:$0xf]
        %v1366 = vld [vmem:[#allocation8 + $0x16c] sm:$0xf]
        %v1367 = vld [vmem:[#allocation8 + $0x170] sm:$0xf]
        %v1368 = vld [vmem:[#allocation8 + $0x174] sm:$0xf]
        %v1369 = vld [vmem:[#allocation8 + $0x178] sm:$0xf]
        %v1370 = vld [vmem:[#allocation8 + $0x17c] sm:$0xf]
        %v1371 = vld [vmem:[#allocation8 + $0x180] sm:$0xf]
        %v1372 = vld [vmem:[#allocation8 + $0x184] sm:$0xf]
        %v1373 = vld [vmem:[#allocation8 + $0x188] sm:$0xf]
        %v1374 = vld [vmem:[#allocation8 + $0x18c] sm:$0xf]
        %v1375 = vld [vmem:[#allocation8 + $0x190] sm:$0xf]
        %v1376 = vld [vmem:[#allocation8 + $0x194] sm:$0xf]
        %v1377 = vld [vmem:[#allocation8 + $0x198] sm:$0xf]
        %v1378 = vld [vmem:[#allocation8 + $0x19c] sm:$0xf]
        %v1379 = vld [vmem:[#allocation8 + $0x1a0] sm:$0xf]
        %v1380 = vld [vmem:[#allocation8 + $0x1a4] sm:$0xf]
        %v1381 = vld [vmem:[#allocation8 + $0x1a8] sm:$0xf]
        %v1382 = vld [vmem:[#allocation8 + $0x1ac] sm:$0xf]
        %v1383 = vld [vmem:[#allocation8 + $0x1b0] sm:$0xf]
        %v1384 = vld [vmem:[#allocation8 + $0x1b4] sm:$0xf]
        %v1385 = vld [vmem:[#allocation8 + $0x1b8] sm:$0xf]
        %v1386 = vld [vmem:[#allocation8 + $0x1bc] sm:$0xf]
        %v1387 = vld [vmem:[#allocation8 + $0x1c0] sm:$0xf]
        %v1388 = vld [vmem:[#allocation8 + $0x1c4] sm:$0xf]
        %v1389 = vld [vmem:[#allocation8 + $0x1c8] sm:$0xf]
        %v1390 = vld [vmem:[#allocation8 + $0x1cc] sm:$0xf]
        %v1391 = vld [vmem:[#allocation8 + $0x1d0] sm:$0xf]
        %v1392 = vld [vmem:[#allocation8 + $0x1d4] sm:$0xf]
        %v1393 = vld [vmem:[#allocation8 + $0x1d8] sm:$0xf]
        %v1394 = vld [vmem:[#allocation8 + $0x1dc] sm:$0xf]
        %v1395 = vld [vmem:[#allocation8 + $0x1e0] sm:$0xf]
        %v1396 = vld [vmem:[#allocation8 + $0x1e4] sm:$0xf]
        %v1397 = vld [vmem:[#allocation8 + $0x1e8] sm:$0xf]
        %v1398 = vld [vmem:[#allocation8 + $0x1ec] sm:$0xf]
        %v1399 = vld [vmem:[#allocation8 + $0x1f0] sm:$0xf]
        %v1400 = vld [vmem:[#allocation8 + $0x1f4] sm:$0xf]
        %v1401 = vld [vmem:[#allocation8 + $0x1f8] sm:$0xf]
        %v1402 = vld [vmem:[#allocation8 + $0x1fc] sm:$0xf]
        %v1403 = vld [vmem:[%s701] sm:$0xff]
        %v1404 = vld [vmem:[%s701 + $0x8] sm:$0xff]
        %v1405 = vld [vmem:[%s701 + $0x20] sm:$0xff]
        %v1406 = vld [vmem:[%s701 + $0x28] sm:$0xff]
        %v1407 = vld [vmem:[%s701 + $0x40] sm:$0xff]
        %v1408 = vld [vmem:[%s701 + $0x48] sm:$0xff]
        %v1409 = vld [vmem:[%s701 + $0x60] sm:$0xff]
        %v1410 = vld [vmem:[%s701 + $0x68] sm:$0xff]
        %v1411 = vld [vmem:[%s701 + $0x80] sm:$0xff]
        %v1412 = vld [vmem:[%s701 + $0x88] sm:$0xff]
        %v1413 = vld [vmem:[%s701 + $0xa0] sm:$0xff]
        %v1414 = vld [vmem:[%s701 + $0xa8] sm:$0xff]
        %v1415 = vld [vmem:[%s701 + $0xc0] sm:$0xff]
        %v1416 = vld [vmem:[%s701 + $0xc8] sm:$0xff]
        %v1417 = vld [vmem:[%s701 + $0xe0] sm:$0xff]
        %v1418 = vld [vmem:[%s701 + $0xe8] sm:$0xff]
        %v1419 = vld [vmem:[%s701 + $0x10] sm:$0x11]
        %v1420 = vld [vmem:[%s701 + $0x18] sm:$0x11]
        %v1421 = vld [vmem:[%s701 + $0x30] sm:$0x11]
        %v1422 = vld [vmem:[%s701 + $0x38] sm:$0x11]
        %v1423 = vld [vmem:[%s701 + $0x50] sm:$0x11]
        %v1424 = vld [vmem:[%s701 + $0x58] sm:$0x11]
        %v1425 = vld [vmem:[%s701 + $0x70] sm:$0x11]
        %v1426 = vld [vmem:[%s701 + $0x78] sm:$0x11]
        %v1427 = vld [vmem:[%s701 + $0x90] sm:$0x11]
        %v1428 = vld [vmem:[%s701 + $0x98] sm:$0x11]
        %v1429 = vld [vmem:[%s701 + $0xb0] sm:$0x11]
        %v1430 = vld [vmem:[%s701 + $0xb8] sm:$0x11]
        %v1431 = vld [vmem:[%s701 + $0xd0] sm:$0x11]
        %v1432 = vld [vmem:[%s701 + $0xd8] sm:$0x11]
        %v1433 = vld [vmem:[%s701 + $0xf0] sm:$0x11]
        %v1434 = vld [vmem:[%s701 + $0xf8] sm:$0x11]
        %v1451 = vunpack.c.l.b16 %v1403
        %v1452 = vunpack.c.h.b16 %v1403
        %v1453 = vunpack.c.l.b16 %v1404
        %v1454 = vunpack.c.h.b16 %v1404
        %v1455 = vunpack.c.l.b16 %v1405
        %v1456 = vunpack.c.h.b16 %v1405
        %v1457 = vunpack.c.l.b16 %v1406
        %v1458 = vunpack.c.h.b16 %v1406
        %v1459 = vunpack.c.l.b16 %v1407
        %v1460 = vunpack.c.h.b16 %v1407
        %v1461 = vunpack.c.l.b16 %v1408
        %v1462 = vunpack.c.h.b16 %v1408
        %v1463 = vunpack.c.l.b16 %v1409
        %v1464 = vunpack.c.h.b16 %v1409
        %v1465 = vunpack.c.l.b16 %v1410
        %v1466 = vunpack.c.h.b16 %v1410
        %v1467 = vunpack.c.l.b16 %v1411
        %v1468 = vunpack.c.h.b16 %v1411
        %v1469 = vunpack.c.l.b16 %v1412
        %v1470 = vunpack.c.h.b16 %v1412
        %v1471 = vunpack.c.l.b16 %v1413
        %v1472 = vunpack.c.h.b16 %v1413
        %v1473 = vunpack.c.l.b16 %v1414
        %v1474 = vunpack.c.h.b16 %v1414
        %v1475 = vunpack.c.l.b16 %v1415
        %v1476 = vunpack.c.h.b16 %v1415
        %v1477 = vunpack.c.l.b16 %v1416
        %v1478 = vunpack.c.h.b16 %v1416
        %v1479 = vunpack.c.l.b16 %v1417
        %v1480 = vunpack.c.h.b16 %v1417
        %v1481 = vunpack.c.l.b16 %v1418
        %v1482 = vunpack.c.h.b16 %v1418
        %v1499 = vunpack.c.l.b16 %v1419
        %v1500 = vunpack.c.h.b16 %v1419
        %v1501 = vunpack.c.l.b16 %v1420
        %v1502 = vunpack.c.h.b16 %v1420
        %v1503 = vunpack.c.l.b16 %v1421
        %v1504 = vunpack.c.h.b16 %v1421
        %v1505 = vunpack.c.l.b16 %v1422
        %v1506 = vunpack.c.h.b16 %v1422
        %v1507 = vunpack.c.l.b16 %v1423
        %v1508 = vunpack.c.h.b16 %v1423
        %v1509 = vunpack.c.l.b16 %v1424
        %v1510 = vunpack.c.h.b16 %v1424
        %v1511 = vunpack.c.l.b16 %v1425
        %v1512 = vunpack.c.h.b16 %v1425
        %v1513 = vunpack.c.l.b16 %v1426
        %v1514 = vunpack.c.h.b16 %v1426
        %v1515 = vunpack.c.l.b16 %v1427
        %v1516 = vunpack.c.h.b16 %v1427
        %v1517 = vunpack.c.l.b16 %v1428
        %v1518 = vunpack.c.h.b16 %v1428
        %v1519 = vunpack.c.l.b16 %v1429
        %v1520 = vunpack.c.h.b16 %v1429
        %v1521 = vunpack.c.l.b16 %v1430
        %v1522 = vunpack.c.h.b16 %v1430
        %v1523 = vunpack.c.l.b16 %v1431
        %v1524 = vunpack.c.h.b16 %v1431
        %v1525 = vunpack.c.l.b16 %v1432
        %v1526 = vunpack.c.h.b16 %v1432
        %v1527 = vunpack.c.l.b16 %v1433
        %v1528 = vunpack.c.h.b16 %v1433
        %v1529 = vunpack.c.l.b16 %v1434
        %v1530 = vunpack.c.h.b16 %v1434
        %v1531 = vpack.c.b16 %v1499, %v1451
        %v1532 = vpack.c.b16 %v1500, %v1452
        %v1533 = vpack.c.b16 %v1501, %v1453
        %v1534 = vpack.c.b16 %v1502, %v1454
        %v1535 = vpack.c.b16 %v1503, %v1455
        %v1536 = vpack.c.b16 %v1504, %v1456
        %v1537 = vpack.c.b16 %v1505, %v1457
        %v1538 = vpack.c.b16 %v1506, %v1458
        %v1539 = vpack.c.b16 %v1507, %v1459
        %v1540 = vpack.c.b16 %v1508, %v1460
        %v1541 = vpack.c.b16 %v1509, %v1461
        %v1542 = vpack.c.b16 %v1510, %v1462
        %v1543 = vpack.c.b16 %v1511, %v1463
        %v1544 = vpack.c.b16 %v1512, %v1464
        %v1545 = vpack.c.b16 %v1513, %v1465
        %v1546 = vpack.c.b16 %v1514, %v1466
        %v1547 = vpack.c.b16 %v1515, %v1467
        %v1548 = vpack.c.b16 %v1516, %v1468
        %v1549 = vpack.c.b16 %v1517, %v1469
        %v1550 = vpack.c.b16 %v1518, %v1470
        %v1551 = vpack.c.b16 %v1519, %v1471
        %v1552 = vpack.c.b16 %v1520, %v1472
        %v1553 = vpack.c.b16 %v1521, %v1473
        %v1554 = vpack.c.b16 %v1522, %v1474
        %v1555 = vpack.c.b16 %v1523, %v1475
        %v1556 = vpack.c.b16 %v1524, %v1476
        %v1557 = vpack.c.b16 %v1525, %v1477
        %v1558 = vpack.c.b16 %v1526, %v1478
        %v1559 = vpack.c.b16 %v1527, %v1479
        %v1560 = vpack.c.b16 %v1528, %v1480
        %v1561 = vpack.c.b16 %v1529, %v1481
        %v1562 = vpack.c.b16 %v1530, %v1482
        %v1564 = vshrl.u32 %v1531, 16
        %v1566 = vshll.u32 %v1531, 16
        %v1568 = vrot.slane %v1566, 1
        %v1569 = vor.u32 %v1564, %v1568
        %v1571 = vshrl.u32 %v1532, 16
        %v1573 = vshll.u32 %v1532, 16
        %v1575 = vrot.slane %v1573, 1
        %v1576 = vor.u32 %v1571, %v1575
        %v1578 = vshrl.u32 %v1533, 16
        %v1580 = vshll.u32 %v1533, 16
        %v1582 = vrot.slane %v1580, 1
        %v1583 = vor.u32 %v1578, %v1582
        %v1585 = vshrl.u32 %v1534, 16
        %v1587 = vshll.u32 %v1534, 16
        %v1589 = vrot.slane %v1587, 1
        %v1590 = vor.u32 %v1585, %v1589
        %v1592 = vshrl.u32 %v1535, 16
        %v1594 = vshll.u32 %v1535, 16
        %v1596 = vrot.slane %v1594, 1
        %v1597 = vor.u32 %v1592, %v1596
        %v1599 = vshrl.u32 %v1536, 16
        %v1601 = vshll.u32 %v1536, 16
        %v1603 = vrot.slane %v1601, 1
        %v1604 = vor.u32 %v1599, %v1603
        %v1606 = vshrl.u32 %v1537, 16
        %v1608 = vshll.u32 %v1537, 16
        %v1610 = vrot.slane %v1608, 1
        %v1611 = vor.u32 %v1606, %v1610
        %v1613 = vshrl.u32 %v1538, 16
        %v1615 = vshll.u32 %v1538, 16
        %v1617 = vrot.slane %v1615, 1
        %v1618 = vor.u32 %v1613, %v1617
        %v1620 = vshrl.u32 %v1539, 16
        %v1622 = vshll.u32 %v1539, 16
        %v1624 = vrot.slane %v1622, 1
        %v1625 = vor.u32 %v1620, %v1624
        %v1627 = vshrl.u32 %v1540, 16
        %v1629 = vshll.u32 %v1540, 16
        %v1631 = vrot.slane %v1629, 1
        %v1632 = vor.u32 %v1627, %v1631
        %v1634 = vshrl.u32 %v1541, 16
        %v1636 = vshll.u32 %v1541, 16
        %v1638 = vrot.slane %v1636, 1
        %v1639 = vor.u32 %v1634, %v1638
        %v1641 = vshrl.u32 %v1542, 16
        %v1643 = vshll.u32 %v1542, 16
        %v1645 = vrot.slane %v1643, 1
        %v1646 = vor.u32 %v1641, %v1645
        %v1648 = vshrl.u32 %v1543, 16
        %v1650 = vshll.u32 %v1543, 16
        %v1652 = vrot.slane %v1650, 1
        %v1653 = vor.u32 %v1648, %v1652
        %v1655 = vshrl.u32 %v1544, 16
        %v1657 = vshll.u32 %v1544, 16
        %v1659 = vrot.slane %v1657, 1
        %v1660 = vor.u32 %v1655, %v1659
        %v1662 = vshrl.u32 %v1545, 16
        %v1664 = vshll.u32 %v1545, 16
        %v1666 = vrot.slane %v1664, 1
        %v1667 = vor.u32 %v1662, %v1666
        %v1669 = vshrl.u32 %v1546, 16
        %v1671 = vshll.u32 %v1546, 16
        %v1673 = vrot.slane %v1671, 1
        %v1674 = vor.u32 %v1669, %v1673
        %v1676 = vshrl.u32 %v1547, 16
        %v1678 = vshll.u32 %v1547, 16
        %v1680 = vrot.slane %v1678, 1
        %v1681 = vor.u32 %v1676, %v1680
        %v1683 = vshrl.u32 %v1548, 16
        %v1685 = vshll.u32 %v1548, 16
        %v1687 = vrot.slane %v1685, 1
        %v1688 = vor.u32 %v1683, %v1687
        %v1690 = vshrl.u32 %v1549, 16
        %v1692 = vshll.u32 %v1549, 16
        %v1694 = vrot.slane %v1692, 1
        %v1695 = vor.u32 %v1690, %v1694
        %v1697 = vshrl.u32 %v1550, 16
        %v1699 = vshll.u32 %v1550, 16
        %v1701 = vrot.slane %v1699, 1
        %v1702 = vor.u32 %v1697, %v1701
        %v1704 = vshrl.u32 %v1551, 16
        %v1706 = vshll.u32 %v1551, 16
        %v1708 = vrot.slane %v1706, 1
        %v1709 = vor.u32 %v1704, %v1708
        %v1711 = vshrl.u32 %v1552, 16
        %v1713 = vshll.u32 %v1552, 16
        %v1715 = vrot.slane %v1713, 1
        %v1716 = vor.u32 %v1711, %v1715
        %v1718 = vshrl.u32 %v1553, 16
        %v1720 = vshll.u32 %v1553, 16
        %v1722 = vrot.slane %v1720, 1
        %v1723 = vor.u32 %v1718, %v1722
        %v1725 = vshrl.u32 %v1554, 16
        %v1727 = vshll.u32 %v1554, 16
        %v1729 = vrot.slane %v1727, 1
        %v1730 = vor.u32 %v1725, %v1729
        %v1732 = vshrl.u32 %v1555, 16
        %v1734 = vshll.u32 %v1555, 16
        %v1736 = vrot.slane %v1734, 1
        %v1737 = vor.u32 %v1732, %v1736
        %v1739 = vshrl.u32 %v1556, 16
        %v1741 = vshll.u32 %v1556, 16
        %v1743 = vrot.slane %v1741, 1
        %v1744 = vor.u32 %v1739, %v1743
        %v1746 = vshrl.u32 %v1557, 16
        %v1748 = vshll.u32 %v1557, 16
        %v1750 = vrot.slane %v1748, 1
        %v1751 = vor.u32 %v1746, %v1750
        %v1753 = vshrl.u32 %v1558, 16
        %v1755 = vshll.u32 %v1558, 16
        %v1757 = vrot.slane %v1755, 1
        %v1758 = vor.u32 %v1753, %v1757
        %v1760 = vshrl.u32 %v1559, 16
        %v1762 = vshll.u32 %v1559, 16
        %v1764 = vrot.slane %v1762, 1
        %v1765 = vor.u32 %v1760, %v1764
        %v1767 = vshrl.u32 %v1560, 16
        %v1769 = vshll.u32 %v1560, 16
        %v1771 = vrot.slane %v1769, 1
        %v1772 = vor.u32 %v1767, %v1771
        %v1774 = vshrl.u32 %v1561, 16
        %v1776 = vshll.u32 %v1561, 16
        %v1778 = vrot.slane %v1776, 1
        %v1779 = vor.u32 %v1774, %v1778
        %v1781 = vshrl.u32 %v1562, 16
        %v1783 = vshll.u32 %v1562, 16
        %v1785 = vrot.slane %v1783, 1
        %v1786 = vor.u32 %v1781, %v1785
        %v1787 = vunpack.c.l.b16 %v1569
        %v1788 = vunpack.c.l.b16 %v1576
        %v1789 = vunpack.c.l.b16 %v1583
        %v1790 = vunpack.c.l.b16 %v1590
        %v1791 = vunpack.c.l.b16 %v1597
        %v1792 = vunpack.c.l.b16 %v1604
        %v1793 = vunpack.c.l.b16 %v1611
        %v1794 = vunpack.c.l.b16 %v1618
        %v1795 = vunpack.c.l.b16 %v1625
        %v1796 = vunpack.c.l.b16 %v1632
        %v1797 = vunpack.c.l.b16 %v1639
        %v1798 = vunpack.c.l.b16 %v1646
        %v1799 = vunpack.c.l.b16 %v1653
        %v1800 = vunpack.c.l.b16 %v1660
        %v1801 = vunpack.c.l.b16 %v1667
        %v1802 = vunpack.c.l.b16 %v1674
        %v1803 = vunpack.c.l.b16 %v1681
        %v1804 = vunpack.c.l.b16 %v1688
        %v1805 = vunpack.c.l.b16 %v1695
        %v1806 = vunpack.c.l.b16 %v1702
        %v1807 = vunpack.c.l.b16 %v1709
        %v1808 = vunpack.c.l.b16 %v1716
        %v1809 = vunpack.c.l.b16 %v1723
        %v1810 = vunpack.c.l.b16 %v1730
        %v1811 = vunpack.c.l.b16 %v1737
        %v1812 = vunpack.c.l.b16 %v1744
        %v1813 = vunpack.c.l.b16 %v1751
        %v1814 = vunpack.c.l.b16 %v1758
        %v1815 = vunpack.c.l.b16 %v1765
        %v1816 = vunpack.c.l.b16 %v1772
        %v1817 = vunpack.c.l.b16 %v1779
        %v1818 = vunpack.c.l.b16 %v1786
        %s1819 = scalar_lea.vmem [#allocation8], 512
        %v1820 = vld [vmem:[%s1819] sm:$0xf]
        %v1821 = vld [vmem:[%s1819 + $0x4] sm:$0xf]
        %v1822 = vld [vmem:[%s1819 + $0x8] sm:$0xf]
        %v1823 = vld [vmem:[%s1819 + $0xc] sm:$0xf]
        %v1824 = vld [vmem:[%s1819 + $0x10] sm:$0xf]
        %v1825 = vld [vmem:[%s1819 + $0x14] sm:$0xf]
        %v1826 = vld [vmem:[%s1819 + $0x18] sm:$0xf]
        %v1827 = vld [vmem:[%s1819 + $0x1c] sm:$0xf]
        %v1828 = vld [vmem:[%s1819 + $0x20] sm:$0xf]
        %v1829 = vld [vmem:[%s1819 + $0x24] sm:$0xf]
        %v1830 = vld [vmem:[%s1819 + $0x28] sm:$0xf]
        %v1831 = vld [vmem:[%s1819 + $0x2c] sm:$0xf]
        %v1832 = vld [vmem:[%s1819 + $0x30] sm:$0xf]
        %v1833 = vld [vmem:[%s1819 + $0x34] sm:$0xf]
        %v1834 = vld [vmem:[%s1819 + $0x38] sm:$0xf]
        %v1835 = vld [vmem:[%s1819 + $0x3c] sm:$0xf]
        %v1836 = vld [vmem:[%s1819 + $0x40] sm:$0xf]
        %v1837 = vld [vmem:[%s1819 + $0x44] sm:$0xf]
        %v1838 = vld [vmem:[%s1819 + $0x48] sm:$0xf]
        %v1839 = vld [vmem:[%s1819 + $0x4c] sm:$0xf]
        %v1840 = vld [vmem:[%s1819 + $0x50] sm:$0xf]
        %v1841 = vld [vmem:[%s1819 + $0x54] sm:$0xf]
        %v1842 = vld [vmem:[%s1819 + $0x58] sm:$0xf]
        %v1843 = vld [vmem:[%s1819 + $0x5c] sm:$0xf]
        %v1844 = vld [vmem:[%s1819 + $0x60] sm:$0xf]
        %v1845 = vld [vmem:[%s1819 + $0x64] sm:$0xf]
        %v1846 = vld [vmem:[%s1819 + $0x68] sm:$0xf]
        %v1847 = vld [vmem:[%s1819 + $0x6c] sm:$0xf]
        %v1848 = vld [vmem:[%s1819 + $0x70] sm:$0xf]
        %v1849 = vld [vmem:[%s1819 + $0x74] sm:$0xf]
        %v1850 = vld [vmem:[%s1819 + $0x78] sm:$0xf]
        %v1851 = vld [vmem:[%s1819 + $0x7c] sm:$0xf]
        %v1852 = vld [vmem:[%s1819 + $0x80] sm:$0xf]
        %v1853 = vld [vmem:[%s1819 + $0x84] sm:$0xf]
        %v1854 = vld [vmem:[%s1819 + $0x88] sm:$0xf]
        %v1855 = vld [vmem:[%s1819 + $0x8c] sm:$0xf]
        %v1856 = vld [vmem:[%s1819 + $0x90] sm:$0xf]
        %v1857 = vld [vmem:[%s1819 + $0x94] sm:$0xf]
        %v1858 = vld [vmem:[%s1819 + $0x98] sm:$0xf]
        %v1859 = vld [vmem:[%s1819 + $0x9c] sm:$0xf]
        %v1860 = vld [vmem:[%s1819 + $0xa0] sm:$0xf]
        %v1861 = vld [vmem:[%s1819 + $0xa4] sm:$0xf]
        %v1862 = vld [vmem:[%s1819 + $0xa8] sm:$0xf]
        %v1863 = vld [vmem:[%s1819 + $0xac] sm:$0xf]
        %v1864 = vld [vmem:[%s1819 + $0xb0] sm:$0xf]
        %v1865 = vld [vmem:[%s1819 + $0xb4] sm:$0xf]
        %v1866 = vld [vmem:[%s1819 + $0xb8] sm:$0xf]
        %v1867 = vld [vmem:[%s1819 + $0xbc] sm:$0xf]
        %v1868 = vld [vmem:[%s1819 + $0xc0] sm:$0xf]
        %v1869 = vld [vmem:[%s1819 + $0xc4] sm:$0xf]
        %v1870 = vld [vmem:[%s1819 + $0xc8] sm:$0xf]
        %v1871 = vld [vmem:[%s1819 + $0xcc] sm:$0xf]
        %v1872 = vld [vmem:[%s1819 + $0xd0] sm:$0xf]
        %v1873 = vld [vmem:[%s1819 + $0xd4] sm:$0xf]
        %v1874 = vld [vmem:[%s1819 + $0xd8] sm:$0xf]
        %v1875 = vld [vmem:[%s1819 + $0xdc] sm:$0xf]
        %v1876 = vld [vmem:[%s1819 + $0xe0] sm:$0xf]
        %v1877 = vld [vmem:[%s1819 + $0xe4] sm:$0xf]
        %v1878 = vld [vmem:[%s1819 + $0xe8] sm:$0xf]
        %v1879 = vld [vmem:[%s1819 + $0xec] sm:$0xf]
        %v1880 = vld [vmem:[%s1819 + $0xf0] sm:$0xf]
        %v1881 = vld [vmem:[%s1819 + $0xf4] sm:$0xf]
        %v1882 = vld [vmem:[%s1819 + $0xf8] sm:$0xf]
        %v1883 = vld [vmem:[%s1819 + $0xfc] sm:$0xf]
        %v1884 = vld [vmem:[%s1819 + $0x100] sm:$0xf]
        %v1885 = vld [vmem:[%s1819 + $0x104] sm:$0xf]
        %v1886 = vld [vmem:[%s1819 + $0x108] sm:$0xf]
        %v1887 = vld [vmem:[%s1819 + $0x10c] sm:$0xf]
        %v1888 = vld [vmem:[%s1819 + $0x110] sm:$0xf]
        %v1889 = vld [vmem:[%s1819 + $0x114] sm:$0xf]
        %v1890 = vld [vmem:[%s1819 + $0x118] sm:$0xf]
        %v1891 = vld [vmem:[%s1819 + $0x11c] sm:$0xf]
        %v1892 = vld [vmem:[%s1819 + $0x120] sm:$0xf]
        %v1893 = vld [vmem:[%s1819 + $0x124] sm:$0xf]
        %v1894 = vld [vmem:[%s1819 + $0x128] sm:$0xf]
        %v1895 = vld [vmem:[%s1819 + $0x12c] sm:$0xf]
        %v1896 = vld [vmem:[%s1819 + $0x130] sm:$0xf]
        %v1897 = vld [vmem:[%s1819 + $0x134] sm:$0xf]
        %v1898 = vld [vmem:[%s1819 + $0x138] sm:$0xf]
        %v1899 = vld [vmem:[%s1819 + $0x13c] sm:$0xf]
        %v1900 = vld [vmem:[%s1819 + $0x140] sm:$0xf]
        %v1901 = vld [vmem:[%s1819 + $0x144] sm:$0xf]
        %v1902 = vld [vmem:[%s1819 + $0x148] sm:$0xf]
        %v1903 = vld [vmem:[%s1819 + $0x14c] sm:$0xf]
        %v1904 = vld [vmem:[%s1819 + $0x150] sm:$0xf]
        %v1905 = vld [vmem:[%s1819 + $0x154] sm:$0xf]
        %v1906 = vld [vmem:[%s1819 + $0x158] sm:$0xf]
        %v1907 = vld [vmem:[%s1819 + $0x15c] sm:$0xf]
        %v1908 = vld [vmem:[%s1819 + $0x160] sm:$0xf]
        %v1909 = vld [vmem:[%s1819 + $0x164] sm:$0xf]
        %v1910 = vld [vmem:[%s1819 + $0x168] sm:$0xf]
        %v1911 = vld [vmem:[%s1819 + $0x16c] sm:$0xf]
        %v1912 = vld [vmem:[%s1819 + $0x170] sm:$0xf]
        %v1913 = vld [vmem:[%s1819 + $0x174] sm:$0xf]
        %v1914 = vld [vmem:[%s1819 + $0x178] sm:$0xf]
        %v1915 = vld [vmem:[%s1819 + $0x17c] sm:$0xf]
        %v1916 = vld [vmem:[%s1819 + $0x180] sm:$0xf]
        %v1917 = vld [vmem:[%s1819 + $0x184] sm:$0xf]
        %v1918 = vld [vmem:[%s1819 + $0x188] sm:$0xf]
        %v1919 = vld [vmem:[%s1819 + $0x18c] sm:$0xf]
        %v1920 = vld [vmem:[%s1819 + $0x190] sm:$0xf]
        %v1921 = vld [vmem:[%s1819 + $0x194] sm:$0xf]
        %v1922 = vld [vmem:[%s1819 + $0x198] sm:$0xf]
        %v1923 = vld [vmem:[%s1819 + $0x19c] sm:$0xf]
        %v1924 = vld [vmem:[%s1819 + $0x1a0] sm:$0xf]
        %v1925 = vld [vmem:[%s1819 + $0x1a4] sm:$0xf]
        %v1926 = vld [vmem:[%s1819 + $0x1a8] sm:$0xf]
        %v1927 = vld [vmem:[%s1819 + $0x1ac] sm:$0xf]
        %v1928 = vld [vmem:[%s1819 + $0x1b0] sm:$0xf]
        %v1929 = vld [vmem:[%s1819 + $0x1b4] sm:$0xf]
        %v1930 = vld [vmem:[%s1819 + $0x1b8] sm:$0xf]
        %v1931 = vld [vmem:[%s1819 + $0x1bc] sm:$0xf]
        %v1932 = vld [vmem:[%s1819 + $0x1c0] sm:$0xf]
        %v1933 = vld [vmem:[%s1819 + $0x1c4] sm:$0xf]
        %v1934 = vld [vmem:[%s1819 + $0x1c8] sm:$0xf]
        %v1935 = vld [vmem:[%s1819 + $0x1cc] sm:$0xf]
        %v1936 = vld [vmem:[%s1819 + $0x1d0] sm:$0xf]
        %v1937 = vld [vmem:[%s1819 + $0x1d4] sm:$0xf]
        %v1938 = vld [vmem:[%s1819 + $0x1d8] sm:$0xf]
        %v1939 = vld [vmem:[%s1819 + $0x1dc] sm:$0xf]
        %v1940 = vld [vmem:[%s1819 + $0x1e0] sm:$0xf]
        %v1941 = vld [vmem:[%s1819 + $0x1e4] sm:$0xf]
        %v1942 = vld [vmem:[%s1819 + $0x1e8] sm:$0xf]
        %v1943 = vld [vmem:[%s1819 + $0x1ec] sm:$0xf]
        %v1944 = vld [vmem:[%s1819 + $0x1f0] sm:$0xf]
        %v1945 = vld [vmem:[%s1819 + $0x1f4] sm:$0xf]
        %v1946 = vld [vmem:[%s1819 + $0x1f8] sm:$0xf]
        %v1947 = vld [vmem:[%s1819 + $0x1fc] sm:$0xf]
        %v1948 = vpack.c.b16 %v1455, %v1451
        %v1949 = vpack.c.b16 %v1456, %v1452
        %v1950 = vpack.c.b16 %v1457, %v1453
        %v1951 = vpack.c.b16 %v1458, %v1454
        %v1952 = vpack.c.b16 %v1791, %v1787
        %v1953 = vpack.c.b16 %v1792, %v1788
        %v1954 = vpack.c.b16 %v1793, %v1789
        %v1955 = vpack.c.b16 %v1794, %v1790
        %v1956 = vpack.c.b16 %v1463, %v1459
        %v1957 = vpack.c.b16 %v1464, %v1460
        %v1958 = vpack.c.b16 %v1465, %v1461
        %v1959 = vpack.c.b16 %v1466, %v1462
        %v1960 = vpack.c.b16 %v1799, %v1795
        %v1961 = vpack.c.b16 %v1800, %v1796
        %v1962 = vpack.c.b16 %v1801, %v1797
        %v1963 = vpack.c.b16 %v1802, %v1798
        %v1964 = vpack.c.b16 %v1471, %v1467
        %v1965 = vpack.c.b16 %v1472, %v1468
        %v1966 = vpack.c.b16 %v1473, %v1469
        %v1967 = vpack.c.b16 %v1474, %v1470
        %v1968 = vpack.c.b16 %v1807, %v1803
        %v1969 = vpack.c.b16 %v1808, %v1804
        %v1970 = vpack.c.b16 %v1809, %v1805
        %v1971 = vpack.c.b16 %v1810, %v1806
        %v1972 = vpack.c.b16 %v1479, %v1475
        %v1973 = vpack.c.b16 %v1480, %v1476
        %v1974 = vpack.c.b16 %v1481, %v1477
        %v1975 = vpack.c.b16 %v1482, %v1478
        %v1976 = vpack.c.b16 %v1815, %v1811
        %v1977 = vpack.c.b16 %v1816, %v1812
        %v1978 = vpack.c.b16 %v1817, %v1813
        %v1979 = vpack.c.b16 %v1818, %v1814
        %v2140 = vunpack.c.l.b16 %v1820
        %v2141 = vunpack.c.l.b16 %v1821
        %v2142 = vunpack.c.l.b16 %v1822
        %v2143 = vunpack.c.l.b16 %v1823
        %v2144 = vunpack.c.l.b16 %v1824
        %v2145 = vunpack.c.l.b16 %v1825
        %v2146 = vunpack.c.l.b16 %v1826
        %v2147 = vunpack.c.l.b16 %v1827
        %v2148 = vunpack.c.l.b16 %v1828
        %v2149 = vunpack.c.l.b16 %v1829
        %v2150 = vunpack.c.l.b16 %v1830
        %v2151 = vunpack.c.l.b16 %v1831
        %v2152 = vunpack.c.l.b16 %v1832
        %v2153 = vunpack.c.l.b16 %v1833
        %v2154 = vunpack.c.l.b16 %v1834
        %v2155 = vunpack.c.l.b16 %v1835
        %v2156 = vunpack.c.l.b16 %v1836
        %v2157 = vunpack.c.l.b16 %v1837
        %v2158 = vunpack.c.l.b16 %v1838
        %v2159 = vunpack.c.l.b16 %v1839
        %v2160 = vunpack.c.l.b16 %v1840
        %v2161 = vunpack.c.l.b16 %v1841
        %v2162 = vunpack.c.l.b16 %v1842
        %v2163 = vunpack.c.l.b16 %v1843
        %v2164 = vunpack.c.l.b16 %v1844
        %v2165 = vunpack.c.l.b16 %v1845
        %v2166 = vunpack.c.l.b16 %v1846
        %v2167 = vunpack.c.l.b16 %v1847
        %v2168 = vunpack.c.l.b16 %v1848
        %v2169 = vunpack.c.l.b16 %v1849
        %v2170 = vunpack.c.l.b16 %v1850
        %v2171 = vunpack.c.l.b16 %v1851
        %v2172 = vunpack.c.l.b16 %v1852
        %v2173 = vunpack.c.l.b16 %v1853
        %v2174 = vunpack.c.l.b16 %v1854
        %v2175 = vunpack.c.l.b16 %v1855
        %v2176 = vunpack.c.l.b16 %v1856
        %v2177 = vunpack.c.l.b16 %v1857
        %v2178 = vunpack.c.l.b16 %v1858
        %v2179 = vunpack.c.l.b16 %v1859
        %v2180 = vunpack.c.l.b16 %v1860
        %v2181 = vunpack.c.l.b16 %v1861
        %v2182 = vunpack.c.l.b16 %v1862
        %v2183 = vunpack.c.l.b16 %v1863
        %v2184 = vunpack.c.l.b16 %v1864
        %v2185 = vunpack.c.l.b16 %v1865
        %v2186 = vunpack.c.l.b16 %v1866
        %v2187 = vunpack.c.l.b16 %v1867
        %v2188 = vunpack.c.l.b16 %v1868
        %v2189 = vunpack.c.l.b16 %v1869
        %v2190 = vunpack.c.l.b16 %v1870
        %v2191 = vunpack.c.l.b16 %v1871
        %v2192 = vunpack.c.l.b16 %v1872
        %v2193 = vunpack.c.l.b16 %v1873
        %v2194 = vunpack.c.l.b16 %v1874
        %v2195 = vunpack.c.l.b16 %v1875
        %v2196 = vunpack.c.l.b16 %v1876
        %v2197 = vunpack.c.l.b16 %v1877
        %v2198 = vunpack.c.l.b16 %v1878
        %v2199 = vunpack.c.l.b16 %v1879
        %v2200 = vunpack.c.l.b16 %v1880
        %v2201 = vunpack.c.l.b16 %v1881
        %v2202 = vunpack.c.l.b16 %v1882
        %v2203 = vunpack.c.l.b16 %v1883
        %v2204 = vunpack.c.l.b16 %v1884
        %v2205 = vunpack.c.l.b16 %v1885
        %v2206 = vunpack.c.l.b16 %v1886
        %v2207 = vunpack.c.l.b16 %v1887
        %v2208 = vunpack.c.l.b16 %v1888
        %v2209 = vunpack.c.l.b16 %v1889
        %v2210 = vunpack.c.l.b16 %v1890
        %v2211 = vunpack.c.l.b16 %v1891
        %v2212 = vunpack.c.l.b16 %v1892
        %v2213 = vunpack.c.l.b16 %v1893
        %v2214 = vunpack.c.l.b16 %v1894
        %v2215 = vunpack.c.l.b16 %v1895
        %v2216 = vunpack.c.l.b16 %v1896
        %v2217 = vunpack.c.l.b16 %v1897
        %v2218 = vunpack.c.l.b16 %v1898
        %v2219 = vunpack.c.l.b16 %v1899
        %v2220 = vunpack.c.l.b16 %v1900
        %v2221 = vunpack.c.l.b16 %v1901
        %v2222 = vunpack.c.l.b16 %v1902
        %v2223 = vunpack.c.l.b16 %v1903
        %v2224 = vunpack.c.l.b16 %v1904
        %v2225 = vunpack.c.l.b16 %v1905
        %v2226 = vunpack.c.l.b16 %v1906
        %v2227 = vunpack.c.l.b16 %v1907
        %v2228 = vunpack.c.l.b16 %v1908
        %v2229 = vunpack.c.l.b16 %v1909
        %v2230 = vunpack.c.l.b16 %v1910
        %v2231 = vunpack.c.l.b16 %v1911
        %v2232 = vunpack.c.l.b16 %v1912
        %v2233 = vunpack.c.l.b16 %v1913
        %v2234 = vunpack.c.l.b16 %v1914
        %v2235 = vunpack.c.l.b16 %v1915
        %v2236 = vunpack.c.l.b16 %v1916
        %v2237 = vunpack.c.l.b16 %v1917
        %v2238 = vunpack.c.l.b16 %v1918
        %v2239 = vunpack.c.l.b16 %v1919
        %v2240 = vunpack.c.l.b16 %v1920
        %v2241 = vunpack.c.l.b16 %v1921
        %v2242 = vunpack.c.l.b16 %v1922
        %v2243 = vunpack.c.l.b16 %v1923
        %v2244 = vunpack.c.l.b16 %v1924
        %v2245 = vunpack.c.l.b16 %v1925
        %v2246 = vunpack.c.l.b16 %v1926
        %v2247 = vunpack.c.l.b16 %v1927
        %v2248 = vunpack.c.l.b16 %v1928
        %v2249 = vunpack.c.l.b16 %v1929
        %v2250 = vunpack.c.l.b16 %v1930
        %v2251 = vunpack.c.l.b16 %v1931
        %v2252 = vunpack.c.l.b16 %v1932
        %v2253 = vunpack.c.l.b16 %v1933
        %v2254 = vunpack.c.l.b16 %v1934
        %v2255 = vunpack.c.l.b16 %v1935
        %v2256 = vunpack.c.l.b16 %v1936
        %v2257 = vunpack.c.l.b16 %v1937
        %v2258 = vunpack.c.l.b16 %v1938
        %v2259 = vunpack.c.l.b16 %v1939
        %v2260 = vunpack.c.l.b16 %v1940
        %v2261 = vunpack.c.l.b16 %v1941
        %v2262 = vunpack.c.l.b16 %v1942
        %v2263 = vunpack.c.l.b16 %v1943
        %v2264 = vunpack.c.l.b16 %v1944
        %v2265 = vunpack.c.l.b16 %v1945
        %v2266 = vunpack.c.l.b16 %v1946
        %v2267 = vunpack.c.l.b16 %v1947
        %v2268 = vpack.c.b16 %v2141, %v2140
        %v2269 = vpack.c.b16 %v2143, %v2142
        %v2270 = vpack.c.b16 %v2145, %v2144
        %v2271 = vpack.c.b16 %v2147, %v2146
        %v2272 = vpack.c.b16 %v2149, %v2148
        %v2273 = vpack.c.b16 %v2151, %v2150
        %v2274 = vpack.c.b16 %v2153, %v2152
        %v2275 = vpack.c.b16 %v2155, %v2154
        %v2276 = vpack.c.b16 %v2157, %v2156
        %v2277 = vpack.c.b16 %v2159, %v2158
        %v2278 = vpack.c.b16 %v2161, %v2160
        %v2279 = vpack.c.b16 %v2163, %v2162
        %v2280 = vpack.c.b16 %v2165, %v2164
        %v2281 = vpack.c.b16 %v2167, %v2166
        %v2282 = vpack.c.b16 %v2169, %v2168
        %v2283 = vpack.c.b16 %v2171, %v2170
        %v2284 = vpack.c.b16 %v2173, %v2172
        %v2285 = vpack.c.b16 %v2175, %v2174
        %v2286 = vpack.c.b16 %v2177, %v2176
        %v2287 = vpack.c.b16 %v2179, %v2178
        %v2288 = vpack.c.b16 %v2181, %v2180
        %v2289 = vpack.c.b16 %v2183, %v2182
        %v2290 = vpack.c.b16 %v2185, %v2184
        %v2291 = vpack.c.b16 %v2187, %v2186
        %v2292 = vpack.c.b16 %v2189, %v2188
        %v2293 = vpack.c.b16 %v2191, %v2190
        %v2294 = vpack.c.b16 %v2193, %v2192
        %v2295 = vpack.c.b16 %v2195, %v2194
        %v2296 = vpack.c.b16 %v2197, %v2196
        %v2297 = vpack.c.b16 %v2199, %v2198
        %v2298 = vpack.c.b16 %v2201, %v2200
        %v2299 = vpack.c.b16 %v2203, %v2202
        %v2300 = vpack.c.b16 %v2205, %v2204
        %v2301 = vpack.c.b16 %v2207, %v2206
        %v2302 = vpack.c.b16 %v2209, %v2208
        %v2303 = vpack.c.b16 %v2211, %v2210
        %v2304 = vpack.c.b16 %v2213, %v2212
        %v2305 = vpack.c.b16 %v2215, %v2214
        %v2306 = vpack.c.b16 %v2217, %v2216
        %v2307 = vpack.c.b16 %v2219, %v2218
        %v2308 = vpack.c.b16 %v2221, %v2220
        %v2309 = vpack.c.b16 %v2223, %v2222
        %v2310 = vpack.c.b16 %v2225, %v2224
        %v2311 = vpack.c.b16 %v2227, %v2226
        %v2312 = vpack.c.b16 %v2229, %v2228
        %v2313 = vpack.c.b16 %v2231, %v2230
        %v2314 = vpack.c.b16 %v2233, %v2232
        %v2315 = vpack.c.b16 %v2235, %v2234
        %v2316 = vpack.c.b16 %v2237, %v2236
        %v2317 = vpack.c.b16 %v2239, %v2238
        %v2318 = vpack.c.b16 %v2241, %v2240
        %v2319 = vpack.c.b16 %v2243, %v2242
        %v2320 = vpack.c.b16 %v2245, %v2244
        %v2321 = vpack.c.b16 %v2247, %v2246
        %v2322 = vpack.c.b16 %v2249, %v2248
        %v2323 = vpack.c.b16 %v2251, %v2250
        %v2324 = vpack.c.b16 %v2253, %v2252
        %v2325 = vpack.c.b16 %v2255, %v2254
        %v2326 = vpack.c.b16 %v2257, %v2256
        %v2327 = vpack.c.b16 %v2259, %v2258
        %v2328 = vpack.c.b16 %v2261, %v2260
        %v2329 = vpack.c.b16 %v2263, %v2262
        %v2330 = vpack.c.b16 %v2265, %v2264
        %v2331 = vpack.c.b16 %v2267, %v2266
        %2396 = vmatprep.subr.bf16.mxu0 0
        %2397 = vmatpush1.bf16.msra.mxu0 %v2268
        %2398 = vmatprep.subr.bf16.mxu0 0
        %2399 = vmatpush1.bf16.msra.mxu0 %v2269
        %2400 = vmatprep.subr.bf16.mxu0 0
        %2401 = vmatpush1.bf16.msra.mxu0 %v2270
        %2402 = vmatprep.subr.bf16.mxu0 0
        %2403 = vmatpush1.bf16.msra.mxu0 %v2271
        %2404 = vmatprep.subr.bf16.mxu0 0
        %2405 = vmatpush1.bf16.msra.mxu0 %v2272
        %2406 = vmatprep.subr.bf16.mxu0 0
        %2407 = vmatpush1.bf16.msra.mxu0 %v2273
        %2408 = vmatprep.subr.bf16.mxu0 0
        %2409 = vmatpush1.bf16.msra.mxu0 %v2274
        %2410 = vmatprep.subr.bf16.mxu0 0
        %2411 = vmatpush1.bf16.msra.mxu0 %v2275
        %2412 = vmatprep.subr.bf16.mxu0 0
        %2413 = vmatpush1.bf16.msra.mxu0 %v2276
        %2414 = vmatprep.subr.bf16.mxu0 0
        %2415 = vmatpush1.bf16.msra.mxu0 %v2277
        %2416 = vmatprep.subr.bf16.mxu0 0
        %2417 = vmatpush1.bf16.msra.mxu0 %v2278
        %2418 = vmatprep.subr.bf16.mxu0 0
        %2419 = vmatpush1.bf16.msra.mxu0 %v2279
        %2420 = vmatprep.subr.bf16.mxu0 0
        %2421 = vmatpush1.bf16.msra.mxu0 %v2280
        %2422 = vmatprep.subr.bf16.mxu0 0
        %2423 = vmatpush1.bf16.msra.mxu0 %v2281
        %2424 = vmatprep.subr.bf16.mxu0 0
        %2425 = vmatpush1.bf16.msra.mxu0 %v2282
        %2426 = vmatprep.subr.bf16.mxu0 0
        %2427 = vmatpush1.bf16.msra.mxu0 %v2283
        %2428 = vmatprep.mubr.bf16.mxu0 %v1949
        %2429 = vmatmul.mubr.bf16.gmra.mrb[0].mxu0 %v1948
        %v2430 = vpop.f32.mrb[0].mxu0
        %v2431 = vadd.f32 0.0, %v2430
        %v2432 = vpop.f32.mrb[0].mxu0
        %v2433 = vpop.f32.mrb[0].mxu0
        %v2434 = vadd.f32 0.0, %v2433
        %v2435 = vpop.f32.mrb[0].mxu0
        %2436 = vmatprep.mubr.bf16.mxu0 %v1957
        %2437 = vmatmul.mubr.bf16.gmra.mrb[0].mxu0 %v1956
        %v2438 = vpop.f32.mrb[0].mxu0
        %v2439 = vadd.f32 0.0, %v2438
        %v2440 = vpop.f32.mrb[0].mxu0
        %v2441 = vpop.f32.mrb[0].mxu0
        %v2442 = vadd.f32 0.0, %v2441
        %v2443 = vpop.f32.mrb[0].mxu0
        %2444 = vmatprep.mubr.bf16.mxu0 %v1965
        %2445 = vmatmul.mubr.bf16.gmra.mrb[0].mxu0 %v1964
        %v2446 = vpop.f32.mrb[0].mxu0
        %v2447 = vadd.f32 0.0, %v2446
        %v2448 = vpop.f32.mrb[0].mxu0
        %v2449 = vpop.f32.mrb[0].mxu0
        %v2450 = vadd.f32 0.0, %v2449
        %v2451 = vpop.f32.mrb[0].mxu0
        %2452 = vmatprep.mubr.bf16.mxu0 %v1973
        %2453 = vmatmul.mubr.bf16.gmra.mrb[0].mxu0 %v1972
        %v2454 = vpop.f32.mrb[0].mxu0
        %v2455 = vadd.f32 0.0, %v2454
        %v2456 = vpop.f32.mrb[0].mxu0
        %v2457 = vpop.f32.mrb[0].mxu0
        %v2458 = vadd.f32 0.0, %v2457
        %v2459 = vpop.f32.mrb[0].mxu0
        %2460 = vdwg.mxu0
        %2461 = vmatprep.subr.bf16.mxu0 0
        %2462 = vmatpush1.bf16.msra.mxu0 %v2284
        %2463 = vmatprep.subr.bf16.mxu0 0
        %2464 = vmatpush1.bf16.msra.mxu0 %v2285
        %2465 = vmatprep.subr.bf16.mxu0 0
        %2466 = vmatpush1.bf16.msra.mxu0 %v2286
        %2467 = vmatprep.subr.bf16.mxu0 0
        %2468 = vmatpush1.bf16.msra.mxu0 %v2287
        %2469 = vmatprep.subr.bf16.mxu0 0
        %2470 = vmatpush1.bf16.msra.mxu0 %v2288
        %2471 = vmatprep.subr.bf16.mxu0 0
        %2472 = vmatpush1.bf16.msra.mxu0 %v2289
        %2473 = vmatprep.subr.bf16.mxu0 0
        %2474 = vmatpush1.bf16.msra.mxu0 %v2290
        %2475 = vmatprep.subr.bf16.mxu0 0
        %2476 = vmatpush1.bf16.msra.mxu0 %v2291
        %2477 = vmatprep.subr.bf16.mxu0 0
        %2478 = vmatpush1.bf16.msra.mxu0 %v2292
        %2479 = vmatprep.subr.bf16.mxu0 0
        %2480 = vmatpush1.bf16.msra.mxu0 %v2293
        %2481 = vmatprep.subr.bf16.mxu0 0
        %2482 = vmatpush1.bf16.msra.mxu0 %v2294
        %2483 = vmatprep.subr.bf16.mxu0 0
        %2484 = vmatpush1.bf16.msra.mxu0 %v2295
        %2485 = vmatprep.subr.bf16.mxu0 0
        %2486 = vmatpush1.bf16.msra.mxu0 %v2296
        %2487 = vmatprep.subr.bf16.mxu0 0
        %2488 = vmatpush1.bf16.msra.mxu0 %v2297
        %2489 = vmatprep.subr.bf16.mxu0 0
        %2490 = vmatpush1.bf16.msra.mxu0 %v2298
        %2491 = vmatprep.subr.bf16.mxu0 0
        %2492 = vmatpush1.bf16.msra.mxu0 %v2299
        %2493 = vmatprep.mubr.bf16.mxu0 %v1951
        %2494 = vmatmul.mubr.bf16.gmra.mrb[0].mxu0 %v1950
        %v2495 = vpop.f32.mrb[0].mxu0
        %v2496 = vadd.f32 %v2431, %v2495
        %v2497 = vpop.f32.mrb[0].mxu0
        %v2498 = vpop.f32.mrb[0].mxu0
        %v2499 = vadd.f32 %v2434, %v2498
        %v2500 = vpop.f32.mrb[0].mxu0
        %2501 = vmatprep.mubr.bf16.mxu0 %v1959
        %2502 = vmatmul.mubr.bf16.gmra.mrb[0].mxu0 %v1958
        %v2503 = vpop.f32.mrb[0].mxu0
        %v2504 = vadd.f32 %v2439, %v2503
        %v2505 = vpop.f32.mrb[0].mxu0
        %v2506 = vpop.f32.mrb[0].mxu0
        %v2507 = vadd.f32 %v2442, %v2506
        %v2508 = vpop.f32.mrb[0].mxu0
        %2509 = vmatprep.mubr.bf16.mxu0 %v1967
        %2510 = vmatmul.mubr.bf16.gmra.mrb[0].mxu0 %v1966
        %v2511 = vpop.f32.mrb[0].mxu0
        %v2512 = vadd.f32 %v2447, %v2511
        %v2513 = vpop.f32.mrb[0].mxu0
        %v2514 = vpop.f32.mrb[0].mxu0
        %v2515 = vadd.f32 %v2450, %v2514
        %v2516 = vpop.f32.mrb[0].mxu0
        %2517 = vmatprep.mubr.bf16.mxu0 %v1975
        %2518 = vmatmul.mubr.bf16.gmra.mrb[0].mxu0 %v1974
        %v2519 = vpop.f32.mrb[0].mxu0
        %v2520 = vadd.f32 %v2455, %v2519
        %v2521 = vpop.f32.mrb[0].mxu0
        %v2522 = vpop.f32.mrb[0].mxu0
        %v2523 = vadd.f32 %v2458, %v2522
        %v2524 = vpop.f32.mrb[0].mxu0
        %2525 = vdwg.mxu0
        %2526 = vmatprep.subr.bf16.mxu0 0
        %2527 = vmatpush1.bf16.msra.mxu0 %v2300
        %2528 = vmatprep.subr.bf16.mxu0 0
        %2529 = vmatpush1.bf16.msra.mxu0 %v2301
        %2530 = vmatprep.subr.bf16.mxu0 0
        %2531 = vmatpush1.bf16.msra.mxu0 %v2302
        %2532 = vmatprep.subr.bf16.mxu0 0
        %2533 = vmatpush1.bf16.msra.mxu0 %v2303
        %2534 = vmatprep.subr.bf16.mxu0 0
        %2535 = vmatpush1.bf16.msra.mxu0 %v2304
        %2536 = vmatprep.subr.bf16.mxu0 0
        %2537 = vmatpush1.bf16.msra.mxu0 %v2305
        %2538 = vmatprep.subr.bf16.mxu0 0
        %2539 = vmatpush1.bf16.msra.mxu0 %v2306
        %2540 = vmatprep.subr.bf16.mxu0 0
        %2541 = vmatpush1.bf16.msra.mxu0 %v2307
        %2542 = vmatprep.subr.bf16.mxu0 0
        %2543 = vmatpush1.bf16.msra.mxu0 %v2308
        %2544 = vmatprep.subr.bf16.mxu0 0
        %2545 = vmatpush1.bf16.msra.mxu0 %v2309
        %2546 = vmatprep.subr.bf16.mxu0 0
        %2547 = vmatpush1.bf16.msra.mxu0 %v2310
        %2548 = vmatprep.subr.bf16.mxu0 0
        %2549 = vmatpush1.bf16.msra.mxu0 %v2311
        %2550 = vmatprep.subr.bf16.mxu0 0
        %2551 = vmatpush1.bf16.msra.mxu0 %v2312
        %2552 = vmatprep.subr.bf16.mxu0 0
        %2553 = vmatpush1.bf16.msra.mxu0 %v2313
        %2554 = vmatprep.subr.bf16.mxu0 0
        %2555 = vmatpush1.bf16.msra.mxu0 %v2314
        %2556 = vmatprep.subr.bf16.mxu0 0
        %2557 = vmatpush1.bf16.msra.mxu0 %v2315
        %2558 = vmatprep.mubr.bf16.mxu0 %v1953
        %2559 = vmatmul.mubr.bf16.gmra.mrb[0].mxu0 %v1952
        %v2560 = vpop.f32.mrb[0].mxu0
        %v2561 = vadd.f32 %v2496, %v2560
        %v2562 = vpop.f32.mrb[0].mxu0
        %v2563 = vpop.f32.mrb[0].mxu0
        %v2564 = vadd.f32 %v2499, %v2563
        %v2565 = vpop.f32.mrb[0].mxu0
        %2566 = vmatprep.mubr.bf16.mxu0 %v1961
        %2567 = vmatmul.mubr.bf16.gmra.mrb[0].mxu0 %v1960
        %v2568 = vpop.f32.mrb[0].mxu0
        %v2569 = vadd.f32 %v2504, %v2568
        %v2570 = vpop.f32.mrb[0].mxu0
        %v2571 = vpop.f32.mrb[0].mxu0
        %v2572 = vadd.f32 %v2507, %v2571
        %v2573 = vpop.f32.mrb[0].mxu0
        %2574 = vmatprep.mubr.bf16.mxu0 %v1969
        %2575 = vmatmul.mubr.bf16.gmra.mrb[0].mxu0 %v1968
        %v2576 = vpop.f32.mrb[0].mxu0
        %v2577 = vadd.f32 %v2512, %v2576
        %v2578 = vpop.f32.mrb[0].mxu0
        %v2579 = vpop.f32.mrb[0].mxu0
        %v2580 = vadd.f32 %v2515, %v2579
        %v2581 = vpop.f32.mrb[0].mxu0
        %2582 = vmatprep.mubr.bf16.mxu0 %v1977
        %2583 = vmatmul.mubr.bf16.gmra.mrb[0].mxu0 %v1976
        %v2584 = vpop.f32.mrb[0].mxu0
        %v2585 = vadd.f32 %v2520, %v2584
        %v2586 = vpop.f32.mrb[0].mxu0
        %v2587 = vpop.f32.mrb[0].mxu0
        %v2588 = vadd.f32 %v2523, %v2587
        %v2589 = vpop.f32.mrb[0].mxu0
        %2590 = vdwg.mxu0
        %2591 = vmatprep.subr.bf16.mxu0 0
        %2592 = vmatpush1.bf16.msra.mxu0 %v2316
        %2593 = vmatprep.subr.bf16.mxu0 0
        %2594 = vmatpush1.bf16.msra.mxu0 %v2317
        %2595 = vmatprep.subr.bf16.mxu0 0
        %2596 = vmatpush1.bf16.msra.mxu0 %v2318
        %2597 = vmatprep.subr.bf16.mxu0 0
        %2598 = vmatpush1.bf16.msra.mxu0 %v2319
        %2599 = vmatprep.subr.bf16.mxu0 0
        %2600 = vmatpush1.bf16.msra.mxu0 %v2320
        %2601 = vmatprep.subr.bf16.mxu0 0
        %2602 = vmatpush1.bf16.msra.mxu0 %v2321
        %2603 = vmatprep.subr.bf16.mxu0 0
        %2604 = vmatpush1.bf16.msra.mxu0 %v2322
        %2605 = vmatprep.subr.bf16.mxu0 0
        %2606 = vmatpush1.bf16.msra.mxu0 %v2323
        %2607 = vmatprep.subr.bf16.mxu0 0
        %2608 = vmatpush1.bf16.msra.mxu0 %v2324
        %2609 = vmatprep.subr.bf16.mxu0 0
        %2610 = vmatpush1.bf16.msra.mxu0 %v2325
        %2611 = vmatprep.subr.bf16.mxu0 0
        %2612 = vmatpush1.bf16.msra.mxu0 %v2326
        %2613 = vmatprep.subr.bf16.mxu0 0
        %2614 = vmatpush1.bf16.msra.mxu0 %v2327
        %2615 = vmatprep.subr.bf16.mxu0 0
        %2616 = vmatpush1.bf16.msra.mxu0 %v2328
        %2617 = vmatprep.subr.bf16.mxu0 0
        %2618 = vmatpush1.bf16.msra.mxu0 %v2329
        %2619 = vmatprep.subr.bf16.mxu0 0
        %2620 = vmatpush1.bf16.msra.mxu0 %v2330
        %2621 = vmatprep.subr.bf16.mxu0 0
        %2622 = vmatpush1.bf16.msra.mxu0 %v2331
        %2623 = vmatprep.mubr.bf16.mxu0 %v1955
        %2624 = vmatmul.mubr.bf16.gmra.mrb[0].mxu0 %v1954
        %v2625 = vpop.f32.mrb[0].mxu0
        %v2626 = vadd.f32 %v2561, %v2625
        %v2627 = vpop.f32.mrb[0].mxu0
        %v2628 = vpop.f32.mrb[0].mxu0
        %v2629 = vadd.f32 %v2564, %v2628
        %v2630 = vpop.f32.mrb[0].mxu0
        %2631 = vmatprep.mubr.bf16.mxu0 %v1963
        %2632 = vmatmul.mubr.bf16.gmra.mrb[0].mxu0 %v1962
        %v2633 = vpop.f32.mrb[0].mxu0
        %v2634 = vadd.f32 %v2569, %v2633
        %v2635 = vpop.f32.mrb[0].mxu0
        %v2636 = vpop.f32.mrb[0].mxu0
        %v2637 = vadd.f32 %v2572, %v2636
        %v2638 = vpop.f32.mrb[0].mxu0
        %2639 = vmatprep.mubr.bf16.mxu0 %v1971
        %2640 = vmatmul.mubr.bf16.gmra.mrb[0].mxu0 %v1970
        %v2641 = vpop.f32.mrb[0].mxu0
        %v2642 = vadd.f32 %v2577, %v2641
        %v2643 = vpop.f32.mrb[0].mxu0
        %v2644 = vpop.f32.mrb[0].mxu0
        %v2645 = vadd.f32 %v2580, %v2644
        %v2646 = vpop.f32.mrb[0].mxu0
        %2647 = vmatprep.mubr.bf16.mxu0 %v1979
        %2648 = vmatmul.mubr.bf16.gmra.mrb[0].mxu0 %v1978
        %v2649 = vpop.f32.mrb[0].mxu0
        %v2650 = vadd.f32 %v2585, %v2649
        %v2651 = vpop.f32.mrb[0].mxu0
        %v2652 = vpop.f32.mrb[0].mxu0
        %v2653 = vadd.f32 %v2588, %v2652
        %v2654 = vpop.f32.mrb[0].mxu0
        %2655 = vdwg.mxu0
        %v2656 = vpack.c.b16 %v911, %v907
        %v2657 = vpack.c.b16 %v912, %v908
        %v2658 = vpack.c.b16 %v913, %v909
        %v2659 = vpack.c.b16 %v914, %v910
        %v2660 = vpack.c.b16 %v1247, %v1243
        %v2661 = vpack.c.b16 %v1248, %v1244
        %v2662 = vpack.c.b16 %v1249, %v1245
        %v2663 = vpack.c.b16 %v1250, %v1246
        %v2664 = vpack.c.b16 %v919, %v915
        %v2665 = vpack.c.b16 %v920, %v916
        %v2666 = vpack.c.b16 %v921, %v917
        %v2667 = vpack.c.b16 %v922, %v918
        %v2668 = vpack.c.b16 %v1255, %v1251
        %v2669 = vpack.c.b16 %v1256, %v1252
        %v2670 = vpack.c.b16 %v1257, %v1253
        %v2671 = vpack.c.b16 %v1258, %v1254
        %v2672 = vpack.c.b16 %v927, %v923
        %v2673 = vpack.c.b16 %v928, %v924
        %v2674 = vpack.c.b16 %v929, %v925
        %v2675 = vpack.c.b16 %v930, %v926
        %v2676 = vpack.c.b16 %v1263, %v1259
        %v2677 = vpack.c.b16 %v1264, %v1260
        %v2678 = vpack.c.b16 %v1265, %v1261
        %v2679 = vpack.c.b16 %v1266, %v1262
        %v2680 = vpack.c.b16 %v935, %v931
        %v2681 = vpack.c.b16 %v936, %v932
        %v2682 = vpack.c.b16 %v937, %v933
        %v2683 = vpack.c.b16 %v938, %v934
        %v2684 = vpack.c.b16 %v1271, %v1267
        %v2685 = vpack.c.b16 %v1272, %v1268
        %v2686 = vpack.c.b16 %v1273, %v1269
        %v2687 = vpack.c.b16 %v1274, %v1270
        %v2848 = vunpack.c.l.b16 %v1275
        %v2849 = vunpack.c.l.b16 %v1276
        %v2850 = vunpack.c.l.b16 %v1277
        %v2851 = vunpack.c.l.b16 %v1278
        %v2852 = vunpack.c.l.b16 %v1279
        %v2853 = vunpack.c.l.b16 %v1280
        %v2854 = vunpack.c.l.b16 %v1281
        %v2855 = vunpack.c.l.b16 %v1282
        %v2856 = vunpack.c.l.b16 %v1283
        %v2857 = vunpack.c.l.b16 %v1284
        %v2858 = vunpack.c.l.b16 %v1285
        %v2859 = vunpack.c.l.b16 %v1286
        %v2860 = vunpack.c.l.b16 %v1287
        %v2861 = vunpack.c.l.b16 %v1288
        %v2862 = vunpack.c.l.b16 %v1289
        %v2863 = vunpack.c.l.b16 %v1290
        %v2864 = vunpack.c.l.b16 %v1291
        %v2865 = vunpack.c.l.b16 %v1292
        %v2866 = vunpack.c.l.b16 %v1293
        %v2867 = vunpack.c.l.b16 %v1294
        %v2868 = vunpack.c.l.b16 %v1295
        %v2869 = vunpack.c.l.b16 %v1296
        %v2870 = vunpack.c.l.b16 %v1297
        %v2871 = vunpack.c.l.b16 %v1298
        %v2872 = vunpack.c.l.b16 %v1299
        %v2873 = vunpack.c.l.b16 %v1300
        %v2874 = vunpack.c.l.b16 %v1301
        %v2875 = vunpack.c.l.b16 %v1302
        %v2876 = vunpack.c.l.b16 %v1303
        %v2877 = vunpack.c.l.b16 %v1304
        %v2878 = vunpack.c.l.b16 %v1305
        %v2879 = vunpack.c.l.b16 %v1306
        %v2880 = vunpack.c.l.b16 %v1307
        %v2881 = vunpack.c.l.b16 %v1308
        %v2882 = vunpack.c.l.b16 %v1309
        %v2883 = vunpack.c.l.b16 %v1310
        %v2884 = vunpack.c.l.b16 %v1311
        %v2885 = vunpack.c.l.b16 %v1312
        %v2886 = vunpack.c.l.b16 %v1313
        %v2887 = vunpack.c.l.b16 %v1314
        %v2888 = vunpack.c.l.b16 %v1315
        %v2889 = vunpack.c.l.b16 %v1316
        %v2890 = vunpack.c.l.b16 %v1317
        %v2891 = vunpack.c.l.b16 %v1318
        %v2892 = vunpack.c.l.b16 %v1319
        %v2893 = vunpack.c.l.b16 %v1320
        %v2894 = vunpack.c.l.b16 %v1321
        %v2895 = vunpack.c.l.b16 %v1322
        %v2896 = vunpack.c.l.b16 %v1323
        %v2897 = vunpack.c.l.b16 %v1324
        %v2898 = vunpack.c.l.b16 %v1325
        %v2899 = vunpack.c.l.b16 %v1326
        %v2900 = vunpack.c.l.b16 %v1327
        %v2901 = vunpack.c.l.b16 %v1328
        %v2902 = vunpack.c.l.b16 %v1329
        %v2903 = vunpack.c.l.b16 %v1330
        %v2904 = vunpack.c.l.b16 %v1331
        %v2905 = vunpack.c.l.b16 %v1332
        %v2906 = vunpack.c.l.b16 %v1333
        %v2907 = vunpack.c.l.b16 %v1334
        %v2908 = vunpack.c.l.b16 %v1335
        %v2909 = vunpack.c.l.b16 %v1336
        %v2910 = vunpack.c.l.b16 %v1337
        %v2911 = vunpack.c.l.b16 %v1338
        %v2912 = vunpack.c.l.b16 %v1339
        %v2913 = vunpack.c.l.b16 %v1340
        %v2914 = vunpack.c.l.b16 %v1341
        %v2915 = vunpack.c.l.b16 %v1342
        %v2916 = vunpack.c.l.b16 %v1343
        %v2917 = vunpack.c.l.b16 %v1344
        %v2918 = vunpack.c.l.b16 %v1345
        %v2919 = vunpack.c.l.b16 %v1346
        %v2920 = vunpack.c.l.b16 %v1347
        %v2921 = vunpack.c.l.b16 %v1348
        %v2922 = vunpack.c.l.b16 %v1349
        %v2923 = vunpack.c.l.b16 %v1350
        %v2924 = vunpack.c.l.b16 %v1351
        %v2925 = vunpack.c.l.b16 %v1352
        %v2926 = vunpack.c.l.b16 %v1353
        %v2927 = vunpack.c.l.b16 %v1354
        %v2928 = vunpack.c.l.b16 %v1355
        %v2929 = vunpack.c.l.b16 %v1356
        %v2930 = vunpack.c.l.b16 %v1357
        %v2931 = vunpack.c.l.b16 %v1358
        %v2932 = vunpack.c.l.b16 %v1359
        %v2933 = vunpack.c.l.b16 %v1360
        %v2934 = vunpack.c.l.b16 %v1361
        %v2935 = vunpack.c.l.b16 %v1362
        %v2936 = vunpack.c.l.b16 %v1363
        %v2937 = vunpack.c.l.b16 %v1364
        %v2938 = vunpack.c.l.b16 %v1365
        %v2939 = vunpack.c.l.b16 %v1366
        %v2940 = vunpack.c.l.b16 %v1367
        %v2941 = vunpack.c.l.b16 %v1368
        %v2942 = vunpack.c.l.b16 %v1369
        %v2943 = vunpack.c.l.b16 %v1370
        %v2944 = vunpack.c.l.b16 %v1371
        %v2945 = vunpack.c.l.b16 %v1372
        %v2946 = vunpack.c.l.b16 %v1373
        %v2947 = vunpack.c.l.b16 %v1374
        %v2948 = vunpack.c.l.b16 %v1375
        %v2949 = vunpack.c.l.b16 %v1376
        %v2950 = vunpack.c.l.b16 %v1377
        %v2951 = vunpack.c.l.b16 %v1378
        %v2952 = vunpack.c.l.b16 %v1379
        %v2953 = vunpack.c.l.b16 %v1380
        %v2954 = vunpack.c.l.b16 %v1381
        %v2955 = vunpack.c.l.b16 %v1382
        %v2956 = vunpack.c.l.b16 %v1383
        %v2957 = vunpack.c.l.b16 %v1384
        %v2958 = vunpack.c.l.b16 %v1385
        %v2959 = vunpack.c.l.b16 %v1386
        %v2960 = vunpack.c.l.b16 %v1387
        %v2961 = vunpack.c.l.b16 %v1388
        %v2962 = vunpack.c.l.b16 %v1389
        %v2963 = vunpack.c.l.b16 %v1390
        %v2964 = vunpack.c.l.b16 %v1391
        %v2965 = vunpack.c.l.b16 %v1392
        %v2966 = vunpack.c.l.b16 %v1393
        %v2967 = vunpack.c.l.b16 %v1394
        %v2968 = vunpack.c.l.b16 %v1395
        %v2969 = vunpack.c.l.b16 %v1396
        %v2970 = vunpack.c.l.b16 %v1397
        %v2971 = vunpack.c.l.b16 %v1398
        %v2972 = vunpack.c.l.b16 %v1399
        %v2973 = vunpack.c.l.b16 %v1400
        %v2974 = vunpack.c.l.b16 %v1401
        %v2975 = vunpack.c.l.b16 %v1402
        %v2976 = vpack.c.b16 %v2849, %v2848
        %v2977 = vpack.c.b16 %v2851, %v2850
        %v2978 = vpack.c.b16 %v2853, %v2852
        %v2979 = vpack.c.b16 %v2855, %v2854
        %v2980 = vpack.c.b16 %v2857, %v2856
        %v2981 = vpack.c.b16 %v2859, %v2858
        %v2982 = vpack.c.b16 %v2861, %v2860
        %v2983 = vpack.c.b16 %v2863, %v2862
        %v2984 = vpack.c.b16 %v2865, %v2864
        %v2985 = vpack.c.b16 %v2867, %v2866
        %v2986 = vpack.c.b16 %v2869, %v2868
        %v2987 = vpack.c.b16 %v2871, %v2870
        %v2988 = vpack.c.b16 %v2873, %v2872
        %v2989 = vpack.c.b16 %v2875, %v2874
        %v2990 = vpack.c.b16 %v2877, %v2876
        %v2991 = vpack.c.b16 %v2879, %v2878
        %v2992 = vpack.c.b16 %v2881, %v2880
        %v2993 = vpack.c.b16 %v2883, %v2882
        %v2994 = vpack.c.b16 %v2885, %v2884
        %v2995 = vpack.c.b16 %v2887, %v2886
        %v2996 = vpack.c.b16 %v2889, %v2888
        %v2997 = vpack.c.b16 %v2891, %v2890
        %v2998 = vpack.c.b16 %v2893, %v2892
        %v2999 = vpack.c.b16 %v2895, %v2894
        %v3000 = vpack.c.b16 %v2897, %v2896
        %v3001 = vpack.c.b16 %v2899, %v2898
        %v3002 = vpack.c.b16 %v2901, %v2900
        %v3003 = vpack.c.b16 %v2903, %v2902
        %v3004 = vpack.c.b16 %v2905, %v2904
        %v3005 = vpack.c.b16 %v2907, %v2906
        %v3006 = vpack.c.b16 %v2909, %v2908
        %v3007 = vpack.c.b16 %v2911, %v2910
        %v3008 = vpack.c.b16 %v2913, %v2912
        %v3009 = vpack.c.b16 %v2915, %v2914
        %v3010 = vpack.c.b16 %v2917, %v2916
        %v3011 = vpack.c.b16 %v2919, %v2918
        %v3012 = vpack.c.b16 %v2921, %v2920
        %v3013 = vpack.c.b16 %v2923, %v2922
        %v3014 = vpack.c.b16 %v2925, %v2924
        %v3015 = vpack.c.b16 %v2927, %v2926
        %v3016 = vpack.c.b16 %v2929, %v2928
        %v3017 = vpack.c.b16 %v2931, %v2930
        %v3018 = vpack.c.b16 %v2933, %v2932
        %v3019 = vpack.c.b16 %v2935, %v2934
        %v3020 = vpack.c.b16 %v2937, %v2936
        %v3021 = vpack.c.b16 %v2939, %v2938
        %v3022 = vpack.c.b16 %v2941, %v2940
        %v3023 = vpack.c.b16 %v2943, %v2942
        %v3024 = vpack.c.b16 %v2945, %v2944
        %v3025 = vpack.c.b16 %v2947, %v2946
        %v3026 = vpack.c.b16 %v2949, %v2948
        %v3027 = vpack.c.b16 %v2951, %v2950
        %v3028 = vpack.c.b16 %v2953, %v2952
        %v3029 = vpack.c.b16 %v2955, %v2954
        %v3030 = vpack.c.b16 %v2957, %v2956
        %v3031 = vpack.c.b16 %v2959, %v2958
        %v3032 = vpack.c.b16 %v2961, %v2960
        %v3033 = vpack.c.b16 %v2963, %v2962
        %v3034 = vpack.c.b16 %v2965, %v2964
        %v3035 = vpack.c.b16 %v2967, %v2966
        %v3036 = vpack.c.b16 %v2969, %v2968
        %v3037 = vpack.c.b16 %v2971, %v2970
        %v3038 = vpack.c.b16 %v2973, %v2972
        %v3039 = vpack.c.b16 %v2975, %v2974
        %3104 = vmatprep.subr.bf16.mxu0 0
        %3105 = vmatpush1.bf16.msra.mxu0 %v2976
        %3106 = vmatprep.subr.bf16.mxu0 0
        %3107 = vmatpush1.bf16.msra.mxu0 %v2977
        %3108 = vmatprep.subr.bf16.mxu0 0
        %3109 = vmatpush1.bf16.msra.mxu0 %v2978
        %3110 = vmatprep.subr.bf16.mxu0 0
        %3111 = vmatpush1.bf16.msra.mxu0 %v2979
        %3112 = vmatprep.subr.bf16.mxu0 0
        %3113 = vmatpush1.bf16.msra.mxu0 %v2980
        %3114 = vmatprep.subr.bf16.mxu0 0
        %3115 = vmatpush1.bf16.msra.mxu0 %v2981
        %3116 = vmatprep.subr.bf16.mxu0 0
        %3117 = vmatpush1.bf16.msra.mxu0 %v2982
        %3118 = vmatprep.subr.bf16.mxu0 0
        %3119 = vmatpush1.bf16.msra.mxu0 %v2983
        %3120 = vmatprep.subr.bf16.mxu0 0
        %3121 = vmatpush1.bf16.msra.mxu0 %v2984
        %3122 = vmatprep.subr.bf16.mxu0 0
        %3123 = vmatpush1.bf16.msra.mxu0 %v2985
        %3124 = vmatprep.subr.bf16.mxu0 0
        %3125 = vmatpush1.bf16.msra.mxu0 %v2986
        %3126 = vmatprep.subr.bf16.mxu0 0
        %3127 = vmatpush1.bf16.msra.mxu0 %v2987
        %3128 = vmatprep.subr.bf16.mxu0 0
        %3129 = vmatpush1.bf16.msra.mxu0 %v2988
        %3130 = vmatprep.subr.bf16.mxu0 0
        %3131 = vmatpush1.bf16.msra.mxu0 %v2989
        %3132 = vmatprep.subr.bf16.mxu0 0
        %3133 = vmatpush1.bf16.msra.mxu0 %v2990
        %3134 = vmatprep.subr.bf16.mxu0 0
        %3135 = vmatpush1.bf16.msra.mxu0 %v2991
        %3136 = vmatprep.mubr.bf16.mxu0 %v2657
        %3137 = vmatmul.mubr.bf16.gmra.mrb[0].mxu0 %v2656
        %v3138 = vpop.f32.mrb[0].mxu0
        %v3139 = vadd.f32 %v2626, %v3138
        %v3140 = vpop.f32.mrb[0].mxu0
        %v3141 = vpop.f32.mrb[0].mxu0
        %v3142 = vadd.f32 %v2629, %v3141
        %v3143 = vpop.f32.mrb[0].mxu0
        %3144 = vmatprep.mubr.bf16.mxu0 %v2665
        %3145 = vmatmul.mubr.bf16.gmra.mrb[0].mxu0 %v2664
        %v3146 = vpop.f32.mrb[0].mxu0
        %v3147 = vadd.f32 %v2634, %v3146
        %v3148 = vpop.f32.mrb[0].mxu0
        %v3149 = vpop.f32.mrb[0].mxu0
        %v3150 = vadd.f32 %v2637, %v3149
        %v3151 = vpop.f32.mrb[0].mxu0
        %3152 = vmatprep.mubr.bf16.mxu0 %v2673
        %3153 = vmatmul.mubr.bf16.gmra.mrb[0].mxu0 %v2672
        %v3154 = vpop.f32.mrb[0].mxu0
        %v3155 = vadd.f32 %v2642, %v3154
        %v3156 = vpop.f32.mrb[0].mxu0
        %v3157 = vpop.f32.mrb[0].mxu0
        %v3158 = vadd.f32 %v2645, %v3157
        %v3159 = vpop.f32.mrb[0].mxu0
        %3160 = vmatprep.mubr.bf16.mxu0 %v2681
        %3161 = vmatmul.mubr.bf16.gmra.mrb[0].mxu0 %v2680
        %v3162 = vpop.f32.mrb[0].mxu0
        %v3163 = vadd.f32 %v2650, %v3162
        %v3164 = vpop.f32.mrb[0].mxu0
        %v3165 = vpop.f32.mrb[0].mxu0
        %v3166 = vadd.f32 %v2653, %v3165
        %v3167 = vpop.f32.mrb[0].mxu0
        %3168 = vdwg.mxu0
        %3169 = vmatprep.subr.bf16.mxu0 0
        %3170 = vmatpush1.bf16.msra.mxu0 %v2992
        %3171 = vmatprep.subr.bf16.mxu0 0
        %3172 = vmatpush1.bf16.msra.mxu0 %v2993
        %3173 = vmatprep.subr.bf16.mxu0 0
        %3174 = vmatpush1.bf16.msra.mxu0 %v2994
        %3175 = vmatprep.subr.bf16.mxu0 0
        %3176 = vmatpush1.bf16.msra.mxu0 %v2995
        %3177 = vmatprep.subr.bf16.mxu0 0
        %3178 = vmatpush1.bf16.msra.mxu0 %v2996
        %3179 = vmatprep.subr.bf16.mxu0 0
        %3180 = vmatpush1.bf16.msra.mxu0 %v2997
        %3181 = vmatprep.subr.bf16.mxu0 0
        %3182 = vmatpush1.bf16.msra.mxu0 %v2998
        %3183 = vmatprep.subr.bf16.mxu0 0
        %3184 = vmatpush1.bf16.msra.mxu0 %v2999
        %3185 = vmatprep.subr.bf16.mxu0 0
        %3186 = vmatpush1.bf16.msra.mxu0 %v3000
        %3187 = vmatprep.subr.bf16.mxu0 0
        %3188 = vmatpush1.bf16.msra.mxu0 %v3001
        %3189 = vmatprep.subr.bf16.mxu0 0
        %3190 = vmatpush1.bf16.msra.mxu0 %v3002
        %3191 = vmatprep.subr.bf16.mxu0 0
        %3192 = vmatpush1.bf16.msra.mxu0 %v3003
        %3193 = vmatprep.subr.bf16.mxu0 0
        %3194 = vmatpush1.bf16.msra.mxu0 %v3004
        %3195 = vmatprep.subr.bf16.mxu0 0
        %3196 = vmatpush1.bf16.msra.mxu0 %v3005
        %3197 = vmatprep.subr.bf16.mxu0 0
        %3198 = vmatpush1.bf16.msra.mxu0 %v3006
        %3199 = vmatprep.subr.bf16.mxu0 0
        %3200 = vmatpush1.bf16.msra.mxu0 %v3007
        %3201 = vmatprep.mubr.bf16.mxu0 %v2659
        %3202 = vmatmul.mubr.bf16.gmra.mrb[0].mxu0 %v2658
        %v3203 = vpop.f32.mrb[0].mxu0
        %v3204 = vadd.f32 %v3139, %v3203
        %v3205 = vpop.f32.mrb[0].mxu0
        %v3206 = vpop.f32.mrb[0].mxu0
        %v3207 = vadd.f32 %v3142, %v3206
        %v3208 = vpop.f32.mrb[0].mxu0
        %3209 = vmatprep.mubr.bf16.mxu0 %v2667
        %3210 = vmatmul.mubr.bf16.gmra.mrb[0].mxu0 %v2666
        %v3211 = vpop.f32.mrb[0].mxu0
        %v3212 = vadd.f32 %v3147, %v3211
        %v3213 = vpop.f32.mrb[0].mxu0
        %v3214 = vpop.f32.mrb[0].mxu0
        %v3215 = vadd.f32 %v3150, %v3214
        %v3216 = vpop.f32.mrb[0].mxu0
        %3217 = vmatprep.mubr.bf16.mxu0 %v2675
        %3218 = vmatmul.mubr.bf16.gmra.mrb[0].mxu0 %v2674
        %v3219 = vpop.f32.mrb[0].mxu0
        %v3220 = vadd.f32 %v3155, %v3219
        %v3221 = vpop.f32.mrb[0].mxu0
        %v3222 = vpop.f32.mrb[0].mxu0
        %v3223 = vadd.f32 %v3158, %v3222
        %v3224 = vpop.f32.mrb[0].mxu0
        %3225 = vmatprep.mubr.bf16.mxu0 %v2683
        %3226 = vmatmul.mubr.bf16.gmra.mrb[0].mxu0 %v2682
        %v3227 = vpop.f32.mrb[0].mxu0
        %v3228 = vadd.f32 %v3163, %v3227
        %v3229 = vpop.f32.mrb[0].mxu0
        %v3230 = vpop.f32.mrb[0].mxu0
        %v3231 = vadd.f32 %v3166, %v3230
        %v3232 = vpop.f32.mrb[0].mxu0
        %3233 = vdwg.mxu0
        %3234 = vmatprep.subr.bf16.mxu0 0
        %3235 = vmatpush1.bf16.msra.mxu0 %v3008
        %3236 = vmatprep.subr.bf16.mxu0 0
        %3237 = vmatpush1.bf16.msra.mxu0 %v3009
        %3238 = vmatprep.subr.bf16.mxu0 0
        %3239 = vmatpush1.bf16.msra.mxu0 %v3010
        %3240 = vmatprep.subr.bf16.mxu0 0
        %3241 = vmatpush1.bf16.msra.mxu0 %v3011
        %3242 = vmatprep.subr.bf16.mxu0 0
        %3243 = vmatpush1.bf16.msra.mxu0 %v3012
        %3244 = vmatprep.subr.bf16.mxu0 0
        %3245 = vmatpush1.bf16.msra.mxu0 %v3013
        %3246 = vmatprep.subr.bf16.mxu0 0
        %3247 = vmatpush1.bf16.msra.mxu0 %v3014
        %3248 = vmatprep.subr.bf16.mxu0 0
        %3249 = vmatpush1.bf16.msra.mxu0 %v3015
        %3250 = vmatprep.subr.bf16.mxu0 0
        %3251 = vmatpush1.bf16.msra.mxu0 %v3016
        %3252 = vmatprep.subr.bf16.mxu0 0
        %3253 = vmatpush1.bf16.msra.mxu0 %v3017
        %3254 = vmatprep.subr.bf16.mxu0 0
        %3255 = vmatpush1.bf16.msra.mxu0 %v3018
        %3256 = vmatprep.subr.bf16.mxu0 0
        %3257 = vmatpush1.bf16.msra.mxu0 %v3019
        %3258 = vmatprep.subr.bf16.mxu0 0
        %3259 = vmatpush1.bf16.msra.mxu0 %v3020
        %3260 = vmatprep.subr.bf16.mxu0 0
        %3261 = vmatpush1.bf16.msra.mxu0 %v3021
        %3262 = vmatprep.subr.bf16.mxu0 0
        %3263 = vmatpush1.bf16.msra.mxu0 %v3022
        %3264 = vmatprep.subr.bf16.mxu0 0
        %3265 = vmatpush1.bf16.msra.mxu0 %v3023
        %3266 = vmatprep.mubr.bf16.mxu0 %v2661
        %3267 = vmatmul.mubr.bf16.gmra.mrb[0].mxu0 %v2660
        %v3268 = vpop.f32.mrb[0].mxu0
        %v3269 = vadd.f32 %v3204, %v3268
        %v3270 = vpop.f32.mrb[0].mxu0
        %v3271 = vpop.f32.mrb[0].mxu0
        %v3272 = vadd.f32 %v3207, %v3271
        %v3273 = vpop.f32.mrb[0].mxu0
        %3274 = vmatprep.mubr.bf16.mxu0 %v2669
        %3275 = vmatmul.mubr.bf16.gmra.mrb[0].mxu0 %v2668
        %v3276 = vpop.f32.mrb[0].mxu0
        %v3277 = vadd.f32 %v3212, %v3276
        %v3278 = vpop.f32.mrb[0].mxu0
        %v3279 = vpop.f32.mrb[0].mxu0
        %v3280 = vadd.f32 %v3215, %v3279
        %v3281 = vpop.f32.mrb[0].mxu0
        %3282 = vmatprep.mubr.bf16.mxu0 %v2677
        %3283 = vmatmul.mubr.bf16.gmra.mrb[0].mxu0 %v2676
        %v3284 = vpop.f32.mrb[0].mxu0
        %v3285 = vadd.f32 %v3220, %v3284
        %v3286 = vpop.f32.mrb[0].mxu0
        %v3287 = vpop.f32.mrb[0].mxu0
        %v3288 = vadd.f32 %v3223, %v3287
        %v3289 = vpop.f32.mrb[0].mxu0
        %3290 = vmatprep.mubr.bf16.mxu0 %v2685
        %3291 = vmatmul.mubr.bf16.gmra.mrb[0].mxu0 %v2684
        %v3292 = vpop.f32.mrb[0].mxu0
        %v3293 = vadd.f32 %v3228, %v3292
        %v3294 = vpop.f32.mrb[0].mxu0
        %v3295 = vpop.f32.mrb[0].mxu0
        %v3296 = vadd.f32 %v3231, %v3295
        %v3297 = vpop.f32.mrb[0].mxu0
        %3298 = vdwg.mxu0
        %3299 = vmatprep.subr.bf16.mxu0 0
        %3300 = vmatpush1.bf16.msra.mxu0 %v3024
        %3301 = vmatprep.subr.bf16.mxu0 0
        %3302 = vmatpush1.bf16.msra.mxu0 %v3025
        %3303 = vmatprep.subr.bf16.mxu0 0
        %3304 = vmatpush1.bf16.msra.mxu0 %v3026
        %3305 = vmatprep.subr.bf16.mxu0 0
        %3306 = vmatpush1.bf16.msra.mxu0 %v3027
        %3307 = vmatprep.subr.bf16.mxu0 0
        %3308 = vmatpush1.bf16.msra.mxu0 %v3028
        %3309 = vmatprep.subr.bf16.mxu0 0
        %3310 = vmatpush1.bf16.msra.mxu0 %v3029
        %3311 = vmatprep.subr.bf16.mxu0 0
        %3312 = vmatpush1.bf16.msra.mxu0 %v3030
        %3313 = vmatprep.subr.bf16.mxu0 0
        %3314 = vmatpush1.bf16.msra.mxu0 %v3031
        %3315 = vmatprep.subr.bf16.mxu0 0
        %3316 = vmatpush1.bf16.msra.mxu0 %v3032
        %3317 = vmatprep.subr.bf16.mxu0 0
        %3318 = vmatpush1.bf16.msra.mxu0 %v3033
        %3319 = vmatprep.subr.bf16.mxu0 0
        %3320 = vmatpush1.bf16.msra.mxu0 %v3034
        %3321 = vmatprep.subr.bf16.mxu0 0
        %3322 = vmatpush1.bf16.msra.mxu0 %v3035
        %3323 = vmatprep.subr.bf16.mxu0 0
        %3324 = vmatpush1.bf16.msra.mxu0 %v3036
        %3325 = vmatprep.subr.bf16.mxu0 0
        %3326 = vmatpush1.bf16.msra.mxu0 %v3037
        %3327 = vmatprep.subr.bf16.mxu0 0
        %3328 = vmatpush1.bf16.msra.mxu0 %v3038
        %3329 = vmatprep.subr.bf16.mxu0 0
        %3330 = vmatpush1.bf16.msra.mxu0 %v3039
        %3331 = vmatprep.mubr.bf16.mxu0 %v2663
        %3332 = vmatmul.mubr.bf16.gmra.mrb[0].mxu0 %v2662
        %v3333 = vpop.f32.mrb[0].mxu0
        %v3334 = vadd.f32 %v3269, %v3333
        %v3335 = vpop.f32.mrb[0].mxu0
        %v3336 = vpop.f32.mrb[0].mxu0
        %v3337 = vadd.f32 %v3272, %v3336
        %v3338 = vpop.f32.mrb[0].mxu0
        %3339 = vmatprep.mubr.bf16.mxu0 %v2671
        %3340 = vmatmul.mubr.bf16.gmra.mrb[0].mxu0 %v2670
        %v3341 = vpop.f32.mrb[0].mxu0
        %v3342 = vadd.f32 %v3277, %v3341
        %v3343 = vpop.f32.mrb[0].mxu0
        %v3344 = vpop.f32.mrb[0].mxu0
        %v3345 = vadd.f32 %v3280, %v3344
        %v3346 = vpop.f32.mrb[0].mxu0
        %3347 = vmatprep.mubr.bf16.mxu0 %v2679
        %3348 = vmatmul.mubr.bf16.gmra.mrb[0].mxu0 %v2678
        %v3349 = vpop.f32.mrb[0].mxu0
        %v3350 = vadd.f32 %v3285, %v3349
        %v3351 = vpop.f32.mrb[0].mxu0
        %v3352 = vpop.f32.mrb[0].mxu0
        %v3353 = vadd.f32 %v3288, %v3352
        %v3354 = vpop.f32.mrb[0].mxu0
        %3355 = vmatprep.mubr.bf16.mxu0 %v2687
        %3356 = vmatmul.mubr.bf16.gmra.mrb[0].mxu0 %v2686
        %v3357 = vpop.f32.mrb[0].mxu0
        %v3358 = vadd.f32 %v3293, %v3357
        %v3359 = vpop.f32.mrb[0].mxu0
        %v3360 = vpop.f32.mrb[0].mxu0
        %v3361 = vadd.f32 %v3296, %v3360
        %v3362 = vpop.f32.mrb[0].mxu0
        %3363 = vdwg.mxu0
        %v3364 = vld [vmem:[%s4] sm:$0x1]
        %v3365 = vlaneseq
        %v3366 = vshrl.u32 %v3365, 7
        %v3367 = vsub.s32 0, %v3366
        %v3368 = vrot.slane %v3364, %v3367
        %v3369 = vadd.f32 %v3334, %v3368
        %v3370 = vadd.f32 %v3337, %v3368
        %v3371 = vadd.f32 %v3342, %v3368
        %v3372 = vadd.f32 %v3345, %v3368
        %v3373 = vadd.f32 %v3350, %v3368
        %v3374 = vadd.f32 %v3353, %v3368
        %v3375 = vadd.f32 %v3358, %v3368
        %v3376 = vadd.f32 %v3361, %v3368
        %v3377 = vpack.c.bf16 %v3369, %v3369
        %v3378 = vpack.c.bf16 %v3370, %v3370
        %v3379 = vpack.c.bf16 %v3371, %v3371
        %v3380 = vpack.c.bf16 %v3372, %v3372
        %v3381 = vpack.c.bf16 %v3373, %v3373
        %v3382 = vpack.c.bf16 %v3374, %v3374
        %v3383 = vpack.c.bf16 %v3375, %v3375
        %v3384 = vpack.c.bf16 %v3376, %v3376
        %3385 = vst [vmem:[%s434] sm:$0xf] %v3377
        %3386 = vst [vmem:[%s434 + $0x4] sm:$0xf] %v3378
        %3387 = vst [vmem:[%s434 + $0x8] sm:$0xf] %v3379
        %3388 = vst [vmem:[%s434 + $0xc] sm:$0xf] %v3380
        %3389 = vst [vmem:[%s434 + $0x10] sm:$0xf] %v3381
        %3390 = vst [vmem:[%s434 + $0x14] sm:$0xf] %v3382
        %3391 = vst [vmem:[%s434 + $0x18] sm:$0xf] %v3383
        %3392 = vst [vmem:[%s434 + $0x1c] sm:$0xf] %v3384
        %v3393 = vld [vmem:[%s386] sm:$0xff]
        %v3394 = vld [vmem:[%s386 + $0x8] sm:$0xff]
        %v3395 = vld [vmem:[%s386 + $0x10] sm:$0xff]
        %v3396 = vld [vmem:[%s386 + $0x18] sm:$0xff]
        %v3397 = vld [vmem:[%s386 + $0x20] sm:$0xff]
        %v3398 = vld [vmem:[%s386 + $0x28] sm:$0xff]
        %v3399 = vld [vmem:[%s386 + $0x30] sm:$0xff]
        %v3400 = vld [vmem:[%s386 + $0x38] sm:$0xff]
        %v3401 = vld [vmem:[%s386 + $0x40] sm:$0xff]
        %v3402 = vld [vmem:[%s386 + $0x48] sm:$0xff]
        %v3403 = vld [vmem:[%s386 + $0x50] sm:$0xff]
        %v3404 = vld [vmem:[%s386 + $0x58] sm:$0xff]
        %v3405 = vld [vmem:[%s386 + $0x60] sm:$0xff]
        %v3406 = vld [vmem:[%s386 + $0x68] sm:$0xff]
        %v3407 = vld [vmem:[%s386 + $0x70] sm:$0xff]
        %v3408 = vld [vmem:[%s386 + $0x78] sm:$0xff]
        %v3409 = vunpack.c.l.bf16 %v3393
        %v3410 = vunpack.c.l.bf16 %v3395
        %v3411 = vunpack.c.l.bf16 %v3397
        %v3412 = vunpack.c.l.bf16 %v3399
        %v3413 = vunpack.c.l.bf16 %v3401
        %v3414 = vunpack.c.l.bf16 %v3403
        %v3415 = vunpack.c.l.bf16 %v3405
        %v3416 = vunpack.c.l.bf16 %v3407
        %v3425 = vrot.slane %v3393, 4
        %v3426 = vrot.slane %v3395, 4
        %v3427 = vrot.slane %v3397, 4
        %v3428 = vrot.slane %v3399, 4
        %v3429 = vrot.slane %v3401, 4
        %v3430 = vrot.slane %v3403, 4
        %v3431 = vrot.slane %v3405, 4
        %v3432 = vrot.slane %v3407, 4
        %v3441 = vunpack.c.l.bf16 %v3425
        %v3442 = vunpack.c.l.bf16 %v3426
        %v3443 = vunpack.c.l.bf16 %v3427
        %v3444 = vunpack.c.l.bf16 %v3428
        %v3445 = vunpack.c.l.bf16 %v3429
        %v3446 = vunpack.c.l.bf16 %v3430
        %v3447 = vunpack.c.l.bf16 %v3431
        %v3448 = vunpack.c.l.bf16 %v3432
        %v3449 = vadd.f32 %v3409, %v3441
        %v3450 = vadd.f32 %v3410, %v3442
        %v3451 = vadd.f32 %v3411, %v3443
        %v3452 = vadd.f32 %v3412, %v3444
        %v3453 = vadd.f32 %v3413, %v3445
        %v3454 = vadd.f32 %v3414, %v3446
        %v3455 = vadd.f32 %v3415, %v3447
        %v3456 = vadd.f32 %v3416, %v3448
        %v3457 = vunpack.c.l.bf16 %v3394
        %v3458 = vunpack.c.l.bf16 %v3396
        %v3459 = vunpack.c.l.bf16 %v3398
        %v3460 = vunpack.c.l.bf16 %v3400
        %v3461 = vunpack.c.l.bf16 %v3402
        %v3462 = vunpack.c.l.bf16 %v3404
        %v3463 = vunpack.c.l.bf16 %v3406
        %v3464 = vunpack.c.l.bf16 %v3408
        %v3465 = vadd.f32 %v3449, %v3457
        %v3466 = vadd.f32 %v3450, %v3458
        %v3467 = vadd.f32 %v3451, %v3459
        %v3468 = vadd.f32 %v3452, %v3460
        %v3469 = vadd.f32 %v3453, %v3461
        %v3470 = vadd.f32 %v3454, %v3462
        %v3471 = vadd.f32 %v3455, %v3463
        %v3472 = vadd.f32 %v3456, %v3464
        %v3481 = vrot.slane %v3394, 4
        %v3482 = vrot.slane %v3396, 4
        %v3483 = vrot.slane %v3398, 4
        %v3484 = vrot.slane %v3400, 4
        %v3485 = vrot.slane %v3402, 4
        %v3486 = vrot.slane %v3404, 4
        %v3487 = vrot.slane %v3406, 4
        %v3488 = vrot.slane %v3408, 4
        %v3497 = vunpack.c.l.bf16 %v3481
        %v3498 = vunpack.c.l.bf16 %v3482
        %v3499 = vunpack.c.l.bf16 %v3483
        %v3500 = vunpack.c.l.bf16 %v3484
        %v3501 = vunpack.c.l.bf16 %v3485
        %v3502 = vunpack.c.l.bf16 %v3486
        %v3503 = vunpack.c.l.bf16 %v3487
        %v3504 = vunpack.c.l.bf16 %v3488
        %v3505 = vadd.f32 %v3465, %v3497
        %v3506 = vadd.f32 %v3466, %v3498
        %v3507 = vadd.f32 %v3467, %v3499
        %v3508 = vadd.f32 %v3468, %v3500
        %v3509 = vadd.f32 %v3469, %v3501
        %v3510 = vadd.f32 %v3470, %v3502
        %v3511 = vadd.f32 %v3471, %v3503
        %v3512 = vadd.f32 %v3472, %v3504
        %v3513 = vmul.f32 %v3505, 0.25
        %v3514 = vmul.f32 %v3506, 0.25
        %v3515 = vmul.f32 %v3507, 0.25
        %v3516 = vmul.f32 %v3508, 0.25
        %v3517 = vmul.f32 %v3509, 0.25
        %v3518 = vmul.f32 %v3510, 0.25
        %v3519 = vmul.f32 %v3511, 0.25
        %v3520 = vmul.f32 %v3512, 0.25
        %v3521 = vpack.c.bf16 %v3514, %v3513
        %v3522 = vpack.c.bf16 %v3516, %v3515
        %v3523 = vpack.c.bf16 %v3518, %v3517
        %v3524 = vpack.c.bf16 %v3520, %v3519
        %v3525 = vld [vmem:[#allocation9] sm:$0xf]
        %v3526 = vld [vmem:[#allocation9 + $0x4] sm:$0xf]
        %v3527 = vld [vmem:[#allocation9 + $0x8] sm:$0xf]
        %v3528 = vld [vmem:[#allocation9 + $0xc] sm:$0xf]
        %v3529 = vld [vmem:[#allocation9 + $0x10] sm:$0xf]
        %v3530 = vld [vmem:[#allocation9 + $0x14] sm:$0xf]
        %v3531 = vld [vmem:[#allocation9 + $0x18] sm:$0xf]
        %v3532 = vld [vmem:[#allocation9 + $0x1c] sm:$0xf]
        %v3533 = vld [vmem:[#allocation9 + $0x20] sm:$0xf]
        %v3534 = vld [vmem:[#allocation9 + $0x24] sm:$0xf]
        %v3535 = vld [vmem:[#allocation9 + $0x28] sm:$0xf]
        %v3536 = vld [vmem:[#allocation9 + $0x2c] sm:$0xf]
        %v3537 = vld [vmem:[#allocation9 + $0x30] sm:$0xf]
        %v3538 = vld [vmem:[#allocation9 + $0x34] sm:$0xf]
        %v3539 = vld [vmem:[#allocation9 + $0x38] sm:$0xf]
        %v3540 = vld [vmem:[#allocation9 + $0x3c] sm:$0xf]
        %v3541 = vld [vmem:[%s4 + $0x1] sm:$0x1]
        %v3542 = vlaneseq
        %v3543 = vshrl.u32 %v3542, 7
        %v3544 = vsub.s32 0, %v3543
        %v3545 = vrot.slane %v3541, %v3544
        %v3562 = vunpack.c.l.b16 %v3525
        %v3563 = vunpack.c.l.b16 %v3526
        %v3564 = vunpack.c.l.b16 %v3527
        %v3565 = vunpack.c.l.b16 %v3528
        %v3566 = vunpack.c.l.b16 %v3529
        %v3567 = vunpack.c.l.b16 %v3530
        %v3568 = vunpack.c.l.b16 %v3531
        %v3569 = vunpack.c.l.b16 %v3532
        %v3570 = vunpack.c.l.b16 %v3533
        %v3571 = vunpack.c.l.b16 %v3534
        %v3572 = vunpack.c.l.b16 %v3535
        %v3573 = vunpack.c.l.b16 %v3536
        %v3574 = vunpack.c.l.b16 %v3537
        %v3575 = vunpack.c.l.b16 %v3538
        %v3576 = vunpack.c.l.b16 %v3539
        %v3577 = vunpack.c.l.b16 %v3540
        %v3578 = vpack.c.b16 %v3563, %v3562
        %v3579 = vpack.c.b16 %v3565, %v3564
        %v3580 = vpack.c.b16 %v3567, %v3566
        %v3581 = vpack.c.b16 %v3569, %v3568
        %v3582 = vpack.c.b16 %v3571, %v3570
        %v3583 = vpack.c.b16 %v3573, %v3572
        %v3584 = vpack.c.b16 %v3575, %v3574
        %v3585 = vpack.c.b16 %v3577, %v3576
        %3594 = vmatprep.subr.bf16.mxu0 0
        %3595 = vmatpush1.bf16.msra.mxu0 %v3578
        %3596 = vmatprep.subr.bf16.mxu0 0
        %3597 = vmatpush1.bf16.msra.mxu0 %v3579
        %3598 = vmatprep.subr.bf16.mxu0 0
        %3599 = vmatpush1.bf16.msra.mxu0 %v3580
        %3600 = vmatprep.subr.bf16.mxu0 0
        %3601 = vmatpush1.bf16.msra.mxu0 %v3581
        %3602 = vmatprep.subr.bf16.mxu0 0
        %3603 = vmatpush1.bf16.msra.mxu0 %v3582
        %3604 = vmatprep.subr.bf16.mxu0 0
        %3605 = vmatpush1.bf16.msra.mxu0 %v3583
        %3606 = vmatprep.subr.bf16.mxu0 0
        %3607 = vmatpush1.bf16.msra.mxu0 %v3584
        %3608 = vmatprep.subr.bf16.mxu0 0
        %3609 = vmatpush1.bf16.msra.mxu0 %v3585
        %3610 = vmatprep.subr.bf16.mxu0 0
        %3611 = vmatpush1.bf16.msra.mxu0 0
        %3612 = vmatprep.subr.bf16.mxu0 0
        %3613 = vmatpush1.bf16.msra.mxu0 0
        %3614 = vmatprep.subr.bf16.mxu0 0
        %3615 = vmatpush1.bf16.msra.mxu0 0
        %3616 = vmatprep.subr.bf16.mxu0 0
        %3617 = vmatpush1.bf16.msra.mxu0 0
        %3618 = vmatprep.subr.bf16.mxu0 0
        %3619 = vmatpush1.bf16.msra.mxu0 0
        %3620 = vmatprep.subr.bf16.mxu0 0
        %3621 = vmatpush1.bf16.msra.mxu0 0
        %3622 = vmatprep.subr.bf16.mxu0 0
        %3623 = vmatpush1.bf16.msra.mxu0 0
        %3624 = vmatprep.subr.bf16.mxu0 0
        %3625 = vmatpush1.bf16.msra.mxu0 0
        %3626 = vmatprep.mubr.bf16.mxu0 0
        %3627 = vmatmul.mubr.bf16.gmra.mrb[0].mxu0 %v3521
        %v3628 = vpop.f32.mrb[0].mxu0
        %v3629 = vadd.f32 %v3545, %v3628
        %v3630 = vpop.f32.mrb[0].mxu0
        %v3631 = vpop.f32.mrb[0].mxu0
        %v3632 = vadd.f32 %v3545, %v3631
        %v3633 = vpop.f32.mrb[0].mxu0
        %3634 = vmatprep.mubr.bf16.mxu0 0
        %3635 = vmatmul.mubr.bf16.gmra.mrb[0].mxu0 %v3522
        %v3636 = vpop.f32.mrb[0].mxu0
        %v3637 = vadd.f32 %v3545, %v3636
        %v3638 = vpop.f32.mrb[0].mxu0
        %v3639 = vpop.f32.mrb[0].mxu0
        %v3640 = vadd.f32 %v3545, %v3639
        %v3641 = vpop.f32.mrb[0].mxu0
        %3642 = vmatprep.mubr.bf16.mxu0 0
        %3643 = vmatmul.mubr.bf16.gmra.mrb[0].mxu0 %v3523
        %v3644 = vpop.f32.mrb[0].mxu0
        %v3645 = vadd.f32 %v3545, %v3644
        %v3646 = vpop.f32.mrb[0].mxu0
        %v3647 = vpop.f32.mrb[0].mxu0
        %v3648 = vadd.f32 %v3545, %v3647
        %v3649 = vpop.f32.mrb[0].mxu0
        %3650 = vmatprep.mubr.bf16.mxu0 0
        %3651 = vmatmul.mubr.bf16.gmra.mrb[0].mxu0 %v3524
        %v3652 = vpop.f32.mrb[0].mxu0
        %v3653 = vadd.f32 %v3545, %v3652
        %v3654 = vpop.f32.mrb[0].mxu0
        %v3655 = vpop.f32.mrb[0].mxu0
        %v3656 = vadd.f32 %v3545, %v3655
        %v3657 = vpop.f32.mrb[0].mxu0
        %3658 = vdwg.mxu0
        %v3659 = vpack.c.bf16 %v3629, %v3629
        %v3660 = vpack.c.bf16 %v3632, %v3632
        %v3661 = vpack.c.bf16 %v3637, %v3637
        %v3662 = vpack.c.bf16 %v3640, %v3640
        %v3663 = vpack.c.bf16 %v3645, %v3645
        %v3664 = vpack.c.bf16 %v3648, %v3648
        %v3665 = vpack.c.bf16 %v3653, %v3653
        %v3666 = vpack.c.bf16 %v3656, %v3656
        %3667 = vst [vmem:[%s441] sm:$0xf] %v3659
        %3668 = vst [vmem:[%s441 + $0x4] sm:$0xf] %v3660
        %3669 = vst [vmem:[%s441 + $0x8] sm:$0xf] %v3661
        %3670 = vst [vmem:[%s441 + $0xc] sm:$0xf] %v3662
        %3671 = vst [vmem:[%s441 + $0x10] sm:$0xf] %v3663
        %3672 = vst [vmem:[%s441 + $0x14] sm:$0xf] %v3664
        %3673 = vst [vmem:[%s441 + $0x18] sm:$0xf] %v3665
        %3674 = vst [vmem:[%s441 + $0x1c] sm:$0xf] %v3666
        // Predicated region
        $region65: #{tpu_custom_call.1} parent=39 // pred_check
          %p3675 = pneg %p843
        $region66: #{tpu_custom_call.1} parent=39 // pred_check_branch
          %3677 = sbr.rel (%p3675) target = $region68
        $region67: #{tpu_custom_call.1} parent=39 // pred_region
          %3678 = vst [vmem:[%s448] sm:$0xff] 0.0
          %3679 = vst [vmem:[%s455] sm:$0xff] 0.0
        $region68: #{tpu_custom_call.1} parent=39 // pred_fallthru
          _
        %v3680 = vld [vmem:[%s448] sm:$0x1]
        %v3681 = vadd.f32 %v3369, %v3370
        %v3682 = vadd.f32 %v3681, %v3371
        %v3683 = vadd.f32 %v3682, %v3372
        %v3684 = vadd.f32 %v3683, %v3373
        %v3685 = vadd.f32 %v3684, %v3374
        %v3686 = vadd.f32 %v3685, %v3375
        %v3687 = vadd.f32 %v3686, %v3376
        %v3688 = vrot.slane %v3687, 4
        %v3689 = vadd.f32 %v3687, %v3688
        %v3690 = vrot.slane %v3689, 2
        %v3691 = vadd.f32 %v3689, %v3690
        %v3692 = vrot.slane %v3691, 1
        %v3693 = vadd.f32 %v3691, %v3692
        %v3694 = vadd.f32 %v3680, %v3693
        %3695 = vst [vmem:[%s448] sm:$0x1] %v3694
        %v3696 = vld [vmem:[%s448 + $0x1] sm:$0x1]
        %v3697 = vmul.f32 %v3369, %v3369
        %v3698 = vmul.f32 %v3370, %v3370
        %v3699 = vmul.f32 %v3371, %v3371
        %v3700 = vmul.f32 %v3372, %v3372
        %v3701 = vmul.f32 %v3373, %v3373
        %v3702 = vmul.f32 %v3374, %v3374
        %v3703 = vmul.f32 %v3375, %v3375
        %v3704 = vmul.f32 %v3376, %v3376
        %v3705 = vadd.f32 %v3697, %v3698
        %v3706 = vadd.f32 %v3705, %v3699
        %v3707 = vadd.f32 %v3706, %v3700
        %v3708 = vadd.f32 %v3707, %v3701
        %v3709 = vadd.f32 %v3708, %v3702
        %v3710 = vadd.f32 %v3709, %v3703
        %v3711 = vadd.f32 %v3710, %v3704
        %v3712 = vrot.slane %v3711, 4
        %v3713 = vadd.f32 %v3711, %v3712
        %v3714 = vrot.slane %v3713, 2
        %v3715 = vadd.f32 %v3713, %v3714
        %v3716 = vrot.slane %v3715, 1
        %v3717 = vadd.f32 %v3715, %v3716
        %v3718 = vadd.f32 %v3696, %v3717
        %3719 = vst [vmem:[%s448 + $0x1] sm:$0x1] %v3718
        %v3720 = vld [vmem:[%s455] sm:$0x1]
        %v3721 = vadd.f32 %v3629, %v3632
        %v3722 = vadd.f32 %v3721, %v3637
        %v3723 = vadd.f32 %v3722, %v3640
        %v3724 = vadd.f32 %v3723, %v3645
        %v3725 = vadd.f32 %v3724, %v3648
        %v3726 = vadd.f32 %v3725, %v3653
        %v3727 = vadd.f32 %v3726, %v3656
        %v3728 = vrot.slane %v3727, 4
        %v3729 = vadd.f32 %v3727, %v3728
        %v3730 = vrot.slane %v3729, 2
        %v3731 = vadd.f32 %v3729, %v3730
        %v3732 = vrot.slane %v3731, 1
        %v3733 = vadd.f32 %v3731, %v3732
        %v3734 = vadd.f32 %v3720, %v3733
        %3735 = vst [vmem:[%s455] sm:$0x1] %v3734
        %v3736 = vld [vmem:[%s455 + $0x1] sm:$0x1]
        %v3737 = vmul.f32 %v3629, %v3629
        %v3738 = vmul.f32 %v3632, %v3632
        %v3739 = vmul.f32 %v3637, %v3637
        %v3740 = vmul.f32 %v3640, %v3640
        %v3741 = vmul.f32 %v3645, %v3645
        %v3742 = vmul.f32 %v3648, %v3648
        %v3743 = vmul.f32 %v3653, %v3653
        %v3744 = vmul.f32 %v3656, %v3656
        %v3745 = vadd.f32 %v3737, %v3738
        %v3746 = vadd.f32 %v3745, %v3739
        %v3747 = vadd.f32 %v3746, %v3740
        %v3748 = vadd.f32 %v3747, %v3741
        %v3749 = vadd.f32 %v3748, %v3742
        %v3750 = vadd.f32 %v3749, %v3743
        %v3751 = vadd.f32 %v3750, %v3744
        %v3752 = vrot.slane %v3751, 4
        %v3753 = vadd.f32 %v3751, %v3752
        %v3754 = vrot.slane %v3753, 2
        %v3755 = vadd.f32 %v3753, %v3754
        %v3756 = vrot.slane %v3755, 1
        %v3757 = vadd.f32 %v3755, %v3756
        %v3758 = vadd.f32 %v3736, %v3757
        %3759 = vst [vmem:[%s455 + $0x1] sm:$0x1] %v3758
        %s3760 = sand.u32 %s185, 1
        %s3761 = scalar_lea.sflag [#allocation5], %s3760
        %s3762 = sand.u32 %s185, 1
        %s3763 = smul.addr %s3762, 32
        %s3764 = scalar_lea.vmem [#allocation11], %s3763
        %s3765 = sand.u32 %s36, 1
        %s3766 = scalar_lea.sflag [#allocation13], %s3765
        %s3767 = sand.u32 %s213, 1
        %s3768 = smul.addr %s3767, 32
        %s3769 = scalar_lea.vmem [#allocation12], %s3768
        %s3770 = sand.u32 %s36, 1
        %s3771 = scalar_lea.sflag [#allocation13], %s3770
        %s3772 = sand.u32 %s239, 1
        %s3773 = smul.addr %s3772, 8
        %s3774 = scalar_lea.vmem [#allocation14], %s3773
        %s3775 = sand.u32 %s265, 1
        %s3776 = scalar_lea.sflag [#allocation16], %s3775
        %s3777 = sand.u32 %s265, 1
        %s3778 = smul.addr %s3777, 8
        %s3779 = scalar_lea.vmem [#allocation15], %s3778
        // Predicated region
        $region69: #{tpu_custom_call.1} parent=39 // pred_check
          %p3780 = pneg %p195
        $region70: #{tpu_custom_call.1} parent=39 // pred_check_branch
          %3782 = sbr.rel (%p3780) target = $region72
        $region71: #{tpu_custom_call.1} parent=39 // pred_region
          %s3783 = smul.u32 8, %s41
          %s3785 = ssub.s32 512, 512
          %3786 = vsyncadd %s3761, %s3785
          %s3787 = smul.addr %s40, 8
          %s3788 = sadd.s32 %s3783, %s3787
          %s3789 = smul.addr %s3788, 64
          %s3790 = scalar_lea.hbm %s5, %s3789
          %s3791 = sshll.u32 %s3764, 4
          %s3792 = int_to_ptr.vmem [resolvable:$true] %s3791
          %3797 = dma.vmem_to_hbm [thread:$0]  %s3792, 512, %s3790, %s3761, 64, 64, 4
        $region72: #{tpu_custom_call.1} parent=39 // pred_fallthru
          _
        // Predicated region
        $region73: #{tpu_custom_call.1} parent=39 // pred_check
          %p3798 = pneg %p223
        $region74: #{tpu_custom_call.1} parent=39 // pred_check_branch
          %3800 = sbr.rel (%p3798) target = $region76
        $region75: #{tpu_custom_call.1} parent=39 // pred_region
          %s3801 = smul.u32 8, %s41
          %s3803 = ssub.s32 512, 512
          %3804 = vsyncadd %s3766, %s3803
          %s3805 = smul.addr %s40, 8
          %s3806 = sadd.s32 %s3801, %s3805
          %s3807 = smul.addr %s3806, 64
          %s3808 = scalar_lea.hbm %s6, %s3807
          %s3809 = sshll.u32 %s3769, 4
          %s3810 = int_to_ptr.vmem [resolvable:$true] %s3809
          %3815 = dma.vmem_to_hbm [thread:$0]  %s3810, 512, %s3808, %s3766, 64, 64, 4
        $region76: #{tpu_custom_call.1} parent=39 // pred_fallthru
          _
        // Predicated region
        $region77: #{tpu_custom_call.1} parent=39 // pred_check
          %p3816 = pneg %p249
        $region78: #{tpu_custom_call.1} parent=39 // pred_check_branch
          %3818 = sbr.rel (%p3816) target = $region80
        $region79: #{tpu_custom_call.1} parent=39 // pred_region
          %s3820 = ssub.s32 128, 128
          %3821 = vsyncadd %s3771, %s3820
          %s3822 = smul.addr %s40, 128
          %s3823 = scalar_lea.hbm %s7, %s3822
          %s3825 = sshll.u32 %s3774, 4
          %s3826 = int_to_ptr.vmem [resolvable:$true] %s3825
          %3828 = dma.vmem_to_hbm [thread:$0]  %s3826, 128, %s3823, %s3771
        $region80: #{tpu_custom_call.1} parent=39 // pred_fallthru
          _
        // Predicated region
        $region81: #{tpu_custom_call.1} parent=39 // pred_check
          %p3829 = pneg %p275
        $region82: #{tpu_custom_call.1} parent=39 // pred_check_branch
          %3831 = sbr.rel (%p3829) target = $region84
        $region83: #{tpu_custom_call.1} parent=39 // pred_region
          %s3833 = ssub.s32 128, 128
          %3834 = vsyncadd %s3776, %s3833
          %s3835 = smul.addr %s40, 128
          %s3836 = scalar_lea.hbm %s8, %s3835
          %s3838 = sshll.u32 %s3779, 4
          %s3839 = int_to_ptr.vmem [resolvable:$true] %s3838
          %3841 = dma.vmem_to_hbm [thread:$0]  %s3839, 128, %s3836, %s3776
        $region84: #{tpu_custom_call.1} parent=39 // pred_fallthru
          _
      $region40: #{tpu_custom_call.1} parent=5 // pred_fallthru
        _
      %p3842 = scmp.le.s32.totalorder 2, %s31
      // Predicated region
      $region85: #{tpu_custom_call.1} parent=5 // pred_check
        %p3843 = pneg %p3842
      $region86: #{tpu_custom_call.1} parent=5 // pred_check_branch
        %3845 = sbr.rel (%p3843) target = $region88
      $region87: #{tpu_custom_call.1} parent=5 // pred_region
        %s3846 = ssub.s32 %s31, 2
        // Predicated region
        $region89: #{tpu_custom_call.1} parent=87 // pred_check
          %p3847 = pneg %p201
        $region90: #{tpu_custom_call.1} parent=87 // pred_check_branch
          %3849 = sbr.rel (%p3847) target = $region92
        $region91: #{tpu_custom_call.1} parent=87 // pred_region
          %s3850 = sand.u32 %s186, 1
          %s3851 = scalar_lea.sflag [#allocation5], %s3850
          %s3852 = sand.u32 %s186, 1
          %s3853 = smul.addr %s3852, 32
          %s3854 = scalar_lea.vmem [#allocation11], %s3853
          %3855 = dma.done %s3851, 512
        $region92: #{tpu_custom_call.1} parent=87 // pred_fallthru
          _
        // Predicated region
        $region93: #{tpu_custom_call.1} parent=87 // pred_check
          %p3856 = pneg %p229
        $region94: #{tpu_custom_call.1} parent=87 // pred_check_branch
          %3858 = sbr.rel (%p3856) target = $region96
        $region95: #{tpu_custom_call.1} parent=87 // pred_region
          %s3859 = sand.u32 %s37, 1
          %s3860 = scalar_lea.sflag [#allocation13], %s3859
          %s3861 = sand.u32 %s214, 1
          %s3862 = smul.addr %s3861, 32
          %s3863 = scalar_lea.vmem [#allocation12], %s3862
          %3864 = dma.done %s3860, 512
        $region96: #{tpu_custom_call.1} parent=87 // pred_fallthru
          _
        // Predicated region
        $region97: #{tpu_custom_call.1} parent=87 // pred_check
          %p3865 = pneg %p255
        $region98: #{tpu_custom_call.1} parent=87 // pred_check_branch
          %3867 = sbr.rel (%p3865) target = $region100
        $region99: #{tpu_custom_call.1} parent=87 // pred_region
          %s3868 = sand.u32 %s37, 1
          %s3869 = scalar_lea.sflag [#allocation13], %s3868
          %s3870 = sand.u32 %s240, 1
          %s3871 = smul.addr %s3870, 8
          %s3872 = scalar_lea.vmem [#allocation14], %s3871
          %3873 = dma.done %s3869, 128
        $region100: #{tpu_custom_call.1} parent=87 // pred_fallthru
          _
        // Predicated region
        $region101: #{tpu_custom_call.1} parent=87 // pred_check
          %p3874 = pneg %p281
        $region102: #{tpu_custom_call.1} parent=87 // pred_check_branch
          %3876 = sbr.rel (%p3874) target = $region104
        $region103: #{tpu_custom_call.1} parent=87 // pred_region
          %s3877 = sand.u32 %s266, 1
          %s3878 = scalar_lea.sflag [#allocation16], %s3877
          %s3879 = sand.u32 %s266, 1
          %s3880 = smul.addr %s3879, 8
          %s3881 = scalar_lea.vmem [#allocation15], %s3880
          %3882 = dma.done %s3878, 128
        $region104: #{tpu_custom_call.1} parent=87 // pred_fallthru
          _
      $region88: #{tpu_custom_call.1} parent=5 // pred_fallthru
        _
    $region6: #{tpu_custom_call.1} parent=1 // loop_footer
      %s35 = sadd.s32 1, %s31
    $region7: #{tpu_custom_call.1} parent=1 // loop_footer_branch
      %30 = sbr.rel target = $region3
    $region8: #{tpu_custom_call.1} parent=1 // loop_exit
      _
    %3883 = vsyncpa [#allocation4], 1
    %s3884 = scalar_lea.sflag [#allocation4], 1
    %3885 = vsyncpa %s3884, 1
    %3886 = vsyncpa [#allocation7], 1
    %s3887 = scalar_lea.sflag [#allocation7], 1
    %3888 = vsyncpa %s3887, 1
    %3889 = vsyncpa [#allocation10], 1
    %3890 = vsyncpa [#allocation5], 1
    %s3891 = scalar_lea.sflag [#allocation5], 1
    %3892 = vsyncpa %s3891, 1
    %3893 = vsyncpa [#allocation13], 1
    %s3894 = scalar_lea.sflag [#allocation13], 1
    %3895 = vsyncpa %s3894, 1
    %3896 = vsyncpa [#allocation16], 1
    %s3897 = scalar_lea.sflag [#allocation16], 1
    %3898 = vsyncpa %s3897, 1

</llo_original>
